<compile_context>
chip_gen: v5e
topology: v5e:2x2
jax: 0.10.0
libtpu: 0.0.40
codegen_flags: <defaults>
</compile_context>

<pallas_src>
import functools

import numpy as np

import jax
import jax.numpy as jnp
from jax.experimental import pallas as pl
from jax.experimental.pallas import tpu as pltpu


def _round_up(x: int, m: int) -> int:
    return (x + m - 1) // m * m


# ---------------------------------------------------------------------------
# Pallas kernels
# ---------------------------------------------------------------------------
def _conv_pool_kernel(x_ref, w_ref, b_ref, o_ref, *, ksize, ph, half_h):
    """Fused valid conv (stride 1) + bias + ReLU + 2x2/2 max-pool, one image.

    x_ref: [1, H, W*Cin]        bf16, rows parity-ordered ([even | odd]).
    w_ref: [2*KH, W*Cin, PW*Cout] bf16 banded weights, index = qw*KH + kh.
    b_ref: [1, PW*Cout]         f32, bias tiled over pw.
    o_ref: [1, PH, PW*Cout]     bf16 pooled output (rows = ph, lanes = pw*Cout+co).
    """
    pooled = None
    for qh in range(2):                      # pooling-window row quadrant
        for qw in range(2):                  # pooling-window col quadrant
            acc = None
            for kh in range(ksize):          # conv kernel row taps
                r = qh + kh                  # starting input row (natural index)
                # parity-reordered position of rows r, r+2, ..., r+2*(ph-1):
                off = (r % 2) * half_h + r // 2          # static python int
                lhs = x_ref[0, pl.ds(off, ph), :]        # [PH, W*Cin] bf16
                t = jnp.dot(lhs, w_ref[qw * ksize + kh],
                            preferred_element_type=jnp.float32)
                acc = t if acc is None else acc + t
            pooled = acc if pooled is None else jnp.maximum(pooled, acc)
    # bias+ReLU commute with the quadrant max (same bias, monotone relu).
    y = jnp.maximum(pooled + b_ref[...], 0.0)
    o_ref[0] = y.astype(o_ref.dtype)


def _fc_fused_kernel(x_ref, w1_ref, b1_ref, w2_ref, b2_ref, w3_ref, b3_ref,
                     o_ref):
    """Fused fc1(+ReLU) -> fc2(+ReLU) -> fc3 for one batch tile."""
    h = jnp.dot(x_ref[...], w1_ref[...], preferred_element_type=jnp.float32)
    h = jnp.maximum(h + b1_ref[...], 0.0).astype(jnp.bfloat16)
    h = jnp.dot(h, w2_ref[...], preferred_element_type=jnp.float32)
    h = jnp.maximum(h + b2_ref[...], 0.0).astype(jnp.bfloat16)
    h = jnp.dot(h, w3_ref[...], preferred_element_type=jnp.float32)
    o_ref[...] = (h + b3_ref[...]).astype(o_ref.dtype)


# ---------------------------------------------------------------------------
# pallas_call wrappers
# ---------------------------------------------------------------------------
def conv_pool(x, w_band, b_tile, *, ksize):
    """x: [B, H, W*Cin] bf16 (rows parity-ordered) -> [B, PH, PW*Cout] bf16."""
    B, H, WC = x.shape
    PWC = w_band.shape[2]
    PH = (H - ksize + 1) // 2

    flops = B * 2 * 2 * ksize * 2 * PH * WC * PWC
    bytes_accessed = (x.size * 2 + w_band.size * 2 + b_tile.size * 4
                      + B * PH * PWC * 2)

    return pl.pallas_call(
        functools.partial(_conv_pool_kernel, ksize=ksize, ph=PH, half_h=H // 2),
        out_shape=jax.ShapeDtypeStruct((B, PH, PWC), jnp.bfloat16),
        grid=(B,),
        in_specs=[
            pl.BlockSpec((1, H, WC), lambda b: (b, 0, 0)),
            pl.BlockSpec((2 * ksize, WC, PWC), lambda b: (0, 0, 0)),
            pl.BlockSpec((1, PWC), lambda b: (0, 0)),
        ],
        out_specs=pl.BlockSpec((1, PH, PWC), lambda b: (b, 0, 0)),
        compiler_params=pltpu.CompilerParams(
            dimension_semantics=("parallel",),
            vmem_limit_bytes=32 * 1024 * 1024),
        cost_estimate=pl.CostEstimate(flops=flops, transcendentals=0,
                                      bytes_accessed=bytes_accessed),
    )(x, w_band, b_tile)


def fc_fused(x, w1, b1, w2, b2, w3, b3):
    """x: [B, 400] bf16 -> logits [B, num_classes] f32 (fc1+fc2+fc3 fused)."""
    B, K = x.shape
    N1, N2, N3 = w1.shape[1], w2.shape[1], w3.shape[1]

    TB = 128
    if B <= TB:
        TB, Bp, xp = B, B, x
    else:
        Bp = _round_up(B, TB)
        xp = jnp.pad(x, ((0, Bp - B), (0, 0)))

    flops = 2 * Bp * (K * N1 + N1 * N2 + N2 * N3)
    bytes_accessed = (xp.size * 2 + (w1.size + w2.size + w3.size) * 2
                      + (b1.size + b2.size + b3.size) * 4 + Bp * N3 * 4)

    out = pl.pallas_call(
        _fc_fused_kernel,
        out_shape=jax.ShapeDtypeStruct((Bp, N3), jnp.float32),
        grid=(Bp // TB,),
        in_specs=[
            pl.BlockSpec((TB, K), lambda i: (i, 0)),
            pl.BlockSpec((K, N1), lambda i: (0, 0)),
            pl.BlockSpec((1, N1), lambda i: (0, 0)),
            pl.BlockSpec((N1, N2), lambda i: (0, 0)),
            pl.BlockSpec((1, N2), lambda i: (0, 0)),
            pl.BlockSpec((N2, N3), lambda i: (0, 0)),
            pl.BlockSpec((1, N3), lambda i: (0, 0)),
        ],
        out_specs=pl.BlockSpec((TB, N3), lambda i: (i, 0)),
        compiler_params=pltpu.CompilerParams(
            dimension_semantics=("parallel",),
            vmem_limit_bytes=32 * 1024 * 1024),
        cost_estimate=pl.CostEstimate(flops=flops, transcendentals=0,
                                      bytes_accessed=bytes_accessed),
    )(xp, w1, b1, w2, b2, w3, b3)
    return out[:B]


# ---------------------------------------------------------------------------
# Host-side parameter preparation (done once, outside the jitted forward)
# ---------------------------------------------------------------------------
def _band_conv_weight(w_oihw, w_in):
    """OIHW conv weight -> banded matmul weights [2*KH, w_in*Cin, PW*Cout].

    Index qw*KH + kh selects the matrix mapping an input-row slab
    [PH, w_in*Cin] to that quadrant's conv contribution [PH, PW*Cout], where
    lane index = pw*Cout + co and row index = w*Cin + ci."""
    w = np.asarray(w_oihw, dtype=np.float32)
    cout, cin, KH, KW = w.shape
    ow = w_in - KW + 1
    pw = ow // 2
    out = np.zeros((2 * KH, w_in * cin, pw * cout), np.float32)
    for qw in range(2):
        for kh in range(KH):
            m = out[qw * KH + kh]
            for p in range(pw):
                for kw in range(KW):
                    col = 2 * p + qw + kw                    # input column
                    m[col * cin:(col + 1) * cin,
                      p * cout:(p + 1) * cout] = w[:, :, kh, kw].T
    return out


def prepare_params(params):
    kp = {}
    kp["c1_w"] = jnp.asarray(_band_conv_weight(params["conv1_w"], 32),
                             jnp.bfloat16)
    kp["c1_b"] = jnp.tile(params["conv1_b"], 14).reshape(1, -1).astype(jnp.float32)
    kp["c2_w"] = jnp.asarray(_band_conv_weight(params["conv2_w"], 14),
                             jnp.bfloat16)
    kp["c2_b"] = jnp.tile(params["conv2_b"], 5).reshape(1, -1).astype(jnp.float32)
    kp["fc1_w"] = params["fc1_w"].T.astype(jnp.bfloat16)   # pre-transposed once
    kp["fc1_b"] = params["fc1_b"].reshape(1, -1).astype(jnp.float32)
    kp["fc2_w"] = params["fc2_w"].T.astype(jnp.bfloat16)
    kp["fc2_b"] = params["fc2_b"].reshape(1, -1).astype(jnp.float32)
    kp["fc3_w"] = params["fc3_w"].T.astype(jnp.bfloat16)
    kp["fc3_b"] = params["fc3_b"].reshape(1, -1).astype(jnp.float32)
    return kp


# ---------------------------------------------------------------------------
# CNNNet forward (Pallas)
# ---------------------------------------------------------------------------
def _parity_rows(x):
    """[B, H, WC] -> rows reordered as [even rows | odd rows]."""
    return jnp.concatenate([x[:, 0::2, :], x[:, 1::2, :]], axis=1)


def cnn_forward(x_nchw, kp):
    B = x_nchw.shape[0]
    # NCHW -> NHWC -> [B, H, W*Cin] (lane index = w*Cin + ci), parity rows, bf16.
    x = jnp.transpose(x_nchw, (0, 2, 3, 1)).reshape(B, 32, 32 * 3)
    x = _parity_rows(x).astype(jnp.bfloat16)
    x = conv_pool(x, kp["c1_w"], kp["c1_b"], ksize=5)      # [B, 14, 14*6]
    x = _parity_rows(x)
    x = conv_pool(x, kp["c2_w"], kp["c2_b"], ksize=5)      # [B, 5, 5*16]
    # PyTorch's view(-1, 16*5*5) flattens in (C, H, W) order.
    x = jnp.transpose(x.reshape(B, 5, 5, 16), (0, 3, 1, 2)).reshape(B, 400)
    return fc_fused(x, kp["fc1_w"], kp["fc1_b"], kp["fc2_w"], kp["fc2_b"],
                    kp["fc3_w"], kp["fc3_b"])


# ---------------------------------------------------------------------------
# Pure-JAX f32 reference (numerical sanity check)
# ---------------------------------------------------------------------------
def cnn_forward_ref(x_nchw, params):
    dn = ("NCHW", "OIHW", "NCHW")
    hp = jax.lax.Precision.HIGHEST

    def conv(x, w, b):
        y = jax.lax.conv_general_dilated(x, w, (1, 1), "VALID",
                                         dimension_numbers=dn, precision=hp)
        return jnp.maximum(y + b.reshape(1, -1, 1, 1), 0.0)

    def pool(x):
        return jax.lax.reduce_window(x, -jnp.inf, jax.lax.max,
                                     (1, 1, 2, 2), (1, 1, 2, 2), "VALID")

    x = pool(conv(x_nchw, params["conv1_w"], params["conv1_b"]))
    x = pool(conv(x, params["conv2_w"], params["conv2_b"]))
    x = x.reshape(x.shape[0], 16 * 5 * 5)
    x = jnp.maximum(jnp.dot(x, params["fc1_w"].T, precision=hp)
                    + params["fc1_b"], 0.0)
    x = jnp.maximum(jnp.dot(x, params["fc2_w"].T, precision=hp)
                    + params["fc2_b"], 0.0)
    return jnp.dot(x, params["fc3_w"].T, precision=hp) + params["fc3_b"]


# ---------------------------------------------------------------------------
def init_params(key, num_classes):
    ks = jax.random.split(key, 10)
    s = 0.1
    return {
        "conv1_w": s * jax.random.normal(ks[0], (6, 3, 5, 5), jnp.float32),
        "conv1_b": s * jax.random.normal(ks[1], (6,), jnp.float32),
        "conv2_w": s * jax.random.normal(ks[2], (16, 6, 5, 5), jnp.float32),
        "conv2_b": s * jax.random.normal(ks[3], (16,), jnp.float32),
        "fc1_w": s * jax.random.normal(ks[4], (120, 16 * 5 * 5), jnp.float32),
        "fc1_b": s * jax.random.normal(ks[5], (120,), jnp.float32),
        "fc2_w": s * jax.random.normal(ks[6], (84, 120), jnp.float32),
        "fc2_b": s * jax.random.normal(ks[7], (84,), jnp.float32),
        "fc3_w": s * jax.random.normal(ks[8], (num_classes, 84), jnp.float32),
        "fc3_b": s * jax.random.normal(ks[9], (num_classes,), jnp.float32),
    }


if __name__ == "__main__":
    num_classes = 10
    key = jax.random.PRNGKey(0)
    k_x, k_p = jax.random.split(key)

    # fc1 expects 16*5*5 features -> 32x32 RGB input (CIFAR-like), batch=2.
    x = jax.random.uniform(k_x, (2, 3, 32, 32), jnp.float32)
    params = init_params(k_p, num_classes)
    kparams = prepare_params(params)

    out = jax.jit(cnn_forward)(x, kparams)
    out = jax.block_until_ready(out)
    assert out.shape == (2, num_classes), out.shape

    ref = cnn_forward_ref(x, params)
    max_err = float(jnp.max(jnp.abs(out - ref)))
    # bf16 MXU operands -> loose tolerance vs. the f32 reference.
    assert jnp.allclose(out, ref, rtol=5e-2, atol=5e-2), max_err

    print("KERNEL_OK")
</pallas_src>

<mosaic_0001>
module attributes {stable_mosaic.version = 11 : i64} {
  func.func @_conv_pool_kernel(%arg0: i32, %arg1: memref<1x14x84xbf16, #tpu.memory_space<vmem>>, %arg2: memref<10x84x80xbf16, #tpu.memory_space<vmem>>, %arg3: memref<1x80xf32, #tpu.memory_space<vmem>>, %arg4: memref<1x5x80xbf16, #tpu.memory_space<vmem>>) attributes {dimension_semantics = [#tpu.dimension_semantics<parallel>], iteration_bounds = array<i64: 2>, scalar_prefetch = 0 : i64, scratch_operands = 0 : i64, tpu.core_type = #tpu.core_type<tc>, window_params = [{transform_indices = @transform_0, window_bounds = array<i64: 1, 14, 84>}, {pipeline_mode = #tpu.pipeline_mode<synchronous>, transform_indices = @transform_1, window_bounds = array<i64: 10, 84, 80>}, {pipeline_mode = #tpu.pipeline_mode<synchronous>, transform_indices = @transform_2, window_bounds = array<i64: 1, 80>}, {transform_indices = @transform_3, window_bounds = array<i64: 1, 5, 80>}]} {
    %c0 = arith.constant 0 : index
    %c0_0 = arith.constant 0 : index
    %c0_1 = arith.constant 0 : index
    %0 = vector.load %arg1[%c0, %c0_0, %c0_1] : memref<1x14x84xbf16, #tpu.memory_space<vmem>>, vector<1x5x84xbf16>
    %1 = vector.shape_cast %0 : vector<1x5x84xbf16> to vector<5x84xbf16>
    %c0_2 = arith.constant 0 : index
    %c0_3 = arith.constant 0 : index
    %c0_4 = arith.constant 0 : index
    %2 = vector.load %arg2[%c0_2, %c0_3, %c0_4] : memref<10x84x80xbf16, #tpu.memory_space<vmem>>, vector<1x84x80xbf16>
    %3 = vector.shape_cast %2 : vector<1x84x80xbf16> to vector<84x80xbf16>
    %cst = arith.constant dense<0.000000e+00> : vector<5x80xf32>
    %4 = tpu.matmul %1, %3, %cst {dimension_numbers = #tpu.dot_dimension_numbers<[1], [0], [0], [1], [0, 0, 1, 1], [], []>} : vector<5x84xbf16>, vector<84x80xbf16>, vector<5x80xf32> -> vector<5x80xf32>
    %c0_5 = arith.constant 0 : index
    %c7 = arith.constant 7 : index
    %c0_6 = arith.constant 0 : index
    %5 = vector.load %arg1[%c0_5, %c7, %c0_6] : memref<1x14x84xbf16, #tpu.memory_space<vmem>>, vector<1x5x84xbf16>
    %6 = vector.shape_cast %5 : vector<1x5x84xbf16> to vector<5x84xbf16>
    %c1 = arith.constant 1 : index
    %c0_7 = arith.constant 0 : index
    %c0_8 = arith.constant 0 : index
    %7 = vector.load %arg2[%c1, %c0_7, %c0_8] : memref<10x84x80xbf16, #tpu.memory_space<vmem>>, vector<1x84x80xbf16>
    %8 = vector.shape_cast %7 : vector<1x84x80xbf16> to vector<84x80xbf16>
    %cst_9 = arith.constant dense<0.000000e+00> : vector<5x80xf32>
    %9 = tpu.matmul %6, %8, %cst_9 {dimension_numbers = #tpu.dot_dimension_numbers<[1], [0], [0], [1], [0, 0, 1, 1], [], []>} : vector<5x84xbf16>, vector<84x80xbf16>, vector<5x80xf32> -> vector<5x80xf32>
    %10 = arith.addf %4, %9 : vector<5x80xf32>
    %c0_10 = arith.constant 0 : index
    %c1_11 = arith.constant 1 : index
    %c0_12 = arith.constant 0 : index
    %11 = vector.load %arg1[%c0_10, %c1_11, %c0_12] : memref<1x14x84xbf16, #tpu.memory_space<vmem>>, vector<1x5x84xbf16>
    %12 = vector.shape_cast %11 : vector<1x5x84xbf16> to vector<5x84xbf16>
    %c2 = arith.constant 2 : index
    %c0_13 = arith.constant 0 : index
    %c0_14 = arith.constant 0 : index
    %13 = vector.load %arg2[%c2, %c0_13, %c0_14] : memref<10x84x80xbf16, #tpu.memory_space<vmem>>, vector<1x84x80xbf16>
    %14 = vector.shape_cast %13 : vector<1x84x80xbf16> to vector<84x80xbf16>
    %cst_15 = arith.constant dense<0.000000e+00> : vector<5x80xf32>
    %15 = tpu.matmul %12, %14, %cst_15 {dimension_numbers = #tpu.dot_dimension_numbers<[1], [0], [0], [1], [0, 0, 1, 1], [], []>} : vector<5x84xbf16>, vector<84x80xbf16>, vector<5x80xf32> -> vector<5x80xf32>
    %16 = arith.addf %10, %15 : vector<5x80xf32>
    %c0_16 = arith.constant 0 : index
    %c8 = arith.constant 8 : index
    %c0_17 = arith.constant 0 : index
    %17 = vector.load %arg1[%c0_16, %c8, %c0_17] : memref<1x14x84xbf16, #tpu.memory_space<vmem>>, vector<1x5x84xbf16>
    %18 = vector.shape_cast %17 : vector<1x5x84xbf16> to vector<5x84xbf16>
    %c3 = arith.constant 3 : index
    %c0_18 = arith.constant 0 : index
    %c0_19 = arith.constant 0 : index
    %19 = vector.load %arg2[%c3, %c0_18, %c0_19] : memref<10x84x80xbf16, #tpu.memory_space<vmem>>, vector<1x84x80xbf16>
    %20 = vector.shape_cast %19 : vector<1x84x80xbf16> to vector<84x80xbf16>
    %cst_20 = arith.constant dense<0.000000e+00> : vector<5x80xf32>
    %21 = tpu.matmul %18, %20, %cst_20 {dimension_numbers = #tpu.dot_dimension_numbers<[1], [0], [0], [1], [0, 0, 1, 1], [], []>} : vector<5x84xbf16>, vector<84x80xbf16>, vector<5x80xf32> -> vector<5x80xf32>
    %22 = arith.addf %16, %21 : vector<5x80xf32>
    %c0_21 = arith.constant 0 : index
    %c2_22 = arith.constant 2 : index
    %c0_23 = arith.constant 0 : index
    %23 = vector.load %arg1[%c0_21, %c2_22, %c0_23] : memref<1x14x84xbf16, #tpu.memory_space<vmem>>, vector<1x5x84xbf16>
    %24 = vector.shape_cast %23 : vector<1x5x84xbf16> to vector<5x84xbf16>
    %c4 = arith.constant 4 : index
    %c0_24 = arith.constant 0 : index
    %c0_25 = arith.constant 0 : index
    %25 = vector.load %arg2[%c4, %c0_24, %c0_25] : memref<10x84x80xbf16, #tpu.memory_space<vmem>>, vector<1x84x80xbf16>
    %26 = vector.shape_cast %25 : vector<1x84x80xbf16> to vector<84x80xbf16>
    %cst_26 = arith.constant dense<0.000000e+00> : vector<5x80xf32>
    %27 = tpu.matmul %24, %26, %cst_26 {dimension_numbers = #tpu.dot_dimension_numbers<[1], [0], [0], [1], [0, 0, 1, 1], [], []>} : vector<5x84xbf16>, vector<84x80xbf16>, vector<5x80xf32> -> vector<5x80xf32>
    %28 = arith.addf %22, %27 : vector<5x80xf32>
    %c0_27 = arith.constant 0 : index
    %c0_28 = arith.constant 0 : index
    %c0_29 = arith.constant 0 : index
    %29 = vector.load %arg1[%c0_27, %c0_28, %c0_29] : memref<1x14x84xbf16, #tpu.memory_space<vmem>>, vector<1x5x84xbf16>
    %30 = vector.shape_cast %29 : vector<1x5x84xbf16> to vector<5x84xbf16>
    %c5 = arith.constant 5 : index
    %c0_30 = arith.constant 0 : index
    %c0_31 = arith.constant 0 : index
    %31 = vector.load %arg2[%c5, %c0_30, %c0_31] : memref<10x84x80xbf16, #tpu.memory_space<vmem>>, vector<1x84x80xbf16>
    %32 = vector.shape_cast %31 : vector<1x84x80xbf16> to vector<84x80xbf16>
    %cst_32 = arith.constant dense<0.000000e+00> : vector<5x80xf32>
    %33 = tpu.matmul %30, %32, %cst_32 {dimension_numbers = #tpu.dot_dimension_numbers<[1], [0], [0], [1], [0, 0, 1, 1], [], []>} : vector<5x84xbf16>, vector<84x80xbf16>, vector<5x80xf32> -> vector<5x80xf32>
    %c0_33 = arith.constant 0 : index
    %c7_34 = arith.constant 7 : index
    %c0_35 = arith.constant 0 : index
    %34 = vector.load %arg1[%c0_33, %c7_34, %c0_35] : memref<1x14x84xbf16, #tpu.memory_space<vmem>>, vector<1x5x84xbf16>
    %35 = vector.shape_cast %34 : vector<1x5x84xbf16> to vector<5x84xbf16>
    %c6 = arith.constant 6 : index
    %c0_36 = arith.constant 0 : index
    %c0_37 = arith.constant 0 : index
    %36 = vector.load %arg2[%c6, %c0_36, %c0_37] : memref<10x84x80xbf16, #tpu.memory_space<vmem>>, vector<1x84x80xbf16>
    %37 = vector.shape_cast %36 : vector<1x84x80xbf16> to vector<84x80xbf16>
    %cst_38 = arith.constant dense<0.000000e+00> : vector<5x80xf32>
    %38 = tpu.matmul %35, %37, %cst_38 {dimension_numbers = #tpu.dot_dimension_numbers<[1], [0], [0], [1], [0, 0, 1, 1], [], []>} : vector<5x84xbf16>, vector<84x80xbf16>, vector<5x80xf32> -> vector<5x80xf32>
    %39 = arith.addf %33, %38 : vector<5x80xf32>
    %c0_39 = arith.constant 0 : index
    %c1_40 = arith.constant 1 : index
    %c0_41 = arith.constant 0 : index
    %40 = vector.load %arg1[%c0_39, %c1_40, %c0_41] : memref<1x14x84xbf16, #tpu.memory_space<vmem>>, vector<1x5x84xbf16>
    %41 = vector.shape_cast %40 : vector<1x5x84xbf16> to vector<5x84xbf16>
    %c7_42 = arith.constant 7 : index
    %c0_43 = arith.constant 0 : index
    %c0_44 = arith.constant 0 : index
    %42 = vector.load %arg2[%c7_42, %c0_43, %c0_44] : memref<10x84x80xbf16, #tpu.memory_space<vmem>>, vector<1x84x80xbf16>
    %43 = vector.shape_cast %42 : vector<1x84x80xbf16> to vector<84x80xbf16>
    %cst_45 = arith.constant dense<0.000000e+00> : vector<5x80xf32>
    %44 = tpu.matmul %41, %43, %cst_45 {dimension_numbers = #tpu.dot_dimension_numbers<[1], [0], [0], [1], [0, 0, 1, 1], [], []>} : vector<5x84xbf16>, vector<84x80xbf16>, vector<5x80xf32> -> vector<5x80xf32>
    %45 = arith.addf %39, %44 : vector<5x80xf32>
    %c0_46 = arith.constant 0 : index
    %c8_47 = arith.constant 8 : index
    %c0_48 = arith.constant 0 : index
    %46 = vector.load %arg1[%c0_46, %c8_47, %c0_48] : memref<1x14x84xbf16, #tpu.memory_space<vmem>>, vector<1x5x84xbf16>
    %47 = vector.shape_cast %46 : vector<1x5x84xbf16> to vector<5x84xbf16>
    %c8_49 = arith.constant 8 : index
    %c0_50 = arith.constant 0 : index
    %c0_51 = arith.constant 0 : index
    %48 = vector.load %arg2[%c8_49, %c0_50, %c0_51] : memref<10x84x80xbf16, #tpu.memory_space<vmem>>, vector<1x84x80xbf16>
    %49 = vector.shape_cast %48 : vector<1x84x80xbf16> to vector<84x80xbf16>
    %cst_52 = arith.constant dense<0.000000e+00> : vector<5x80xf32>
    %50 = tpu.matmul %47, %49, %cst_52 {dimension_numbers = #tpu.dot_dimension_numbers<[1], [0], [0], [1], [0, 0, 1, 1], [], []>} : vector<5x84xbf16>, vector<84x80xbf16>, vector<5x80xf32> -> vector<5x80xf32>
    %51 = arith.addf %45, %50 : vector<5x80xf32>
    %c0_53 = arith.constant 0 : index
    %c2_54 = arith.constant 2 : index
    %c0_55 = arith.constant 0 : index
    %52 = vector.load %arg1[%c0_53, %c2_54, %c0_55] : memref<1x14x84xbf16, #tpu.memory_space<vmem>>, vector<1x5x84xbf16>
    %53 = vector.shape_cast %52 : vector<1x5x84xbf16> to vector<5x84xbf16>
    %c9 = arith.constant 9 : index
    %c0_56 = arith.constant 0 : index
    %c0_57 = arith.constant 0 : index
    %54 = vector.load %arg2[%c9, %c0_56, %c0_57] : memref<10x84x80xbf16, #tpu.memory_space<vmem>>, vector<1x84x80xbf16>
    %55 = vector.shape_cast %54 : vector<1x84x80xbf16> to vector<84x80xbf16>
    %cst_58 = arith.constant dense<0.000000e+00> : vector<5x80xf32>
    %56 = tpu.matmul %53, %55, %cst_58 {dimension_numbers = #tpu.dot_dimension_numbers<[1], [0], [0], [1], [0, 0, 1, 1], [], []>} : vector<5x84xbf16>, vector<84x80xbf16>, vector<5x80xf32> -> vector<5x80xf32>
    %57 = arith.addf %51, %56 : vector<5x80xf32>
    %58 = arith.maximumf %28, %57 : vector<5x80xf32>
    %c0_59 = arith.constant 0 : index
    %c7_60 = arith.constant 7 : index
    %c0_61 = arith.constant 0 : index
    %59 = vector.load %arg1[%c0_59, %c7_60, %c0_61] : memref<1x14x84xbf16, #tpu.memory_space<vmem>>, vector<1x5x84xbf16>
    %60 = vector.shape_cast %59 : vector<1x5x84xbf16> to vector<5x84xbf16>
    %c0_62 = arith.constant 0 : index
    %c0_63 = arith.constant 0 : index
    %c0_64 = arith.constant 0 : index
    %61 = vector.load %arg2[%c0_62, %c0_63, %c0_64] : memref<10x84x80xbf16, #tpu.memory_space<vmem>>, vector<1x84x80xbf16>
    %62 = vector.shape_cast %61 : vector<1x84x80xbf16> to vector<84x80xbf16>
    %cst_65 = arith.constant dense<0.000000e+00> : vector<5x80xf32>
    %63 = tpu.matmul %60, %62, %cst_65 {dimension_numbers = #tpu.dot_dimension_numbers<[1], [0], [0], [1], [0, 0, 1, 1], [], []>} : vector<5x84xbf16>, vector<84x80xbf16>, vector<5x80xf32> -> vector<5x80xf32>
    %c0_66 = arith.constant 0 : index
    %c1_67 = arith.constant 1 : index
    %c0_68 = arith.constant 0 : index
    %64 = vector.load %arg1[%c0_66, %c1_67, %c0_68] : memref<1x14x84xbf16, #tpu.memory_space<vmem>>, vector<1x5x84xbf16>
    %65 = vector.shape_cast %64 : vector<1x5x84xbf16> to vector<5x84xbf16>
    %c1_69 = arith.constant 1 : index
    %c0_70 = arith.constant 0 : index
    %c0_71 = arith.constant 0 : index
    %66 = vector.load %arg2[%c1_69, %c0_70, %c0_71] : memref<10x84x80xbf16, #tpu.memory_space<vmem>>, vector<1x84x80xbf16>
    %67 = vector.shape_cast %66 : vector<1x84x80xbf16> to vector<84x80xbf16>
    %cst_72 = arith.constant dense<0.000000e+00> : vector<5x80xf32>
    %68 = tpu.matmul %65, %67, %cst_72 {dimension_numbers = #tpu.dot_dimension_numbers<[1], [0], [0], [1], [0, 0, 1, 1], [], []>} : vector<5x84xbf16>, vector<84x80xbf16>, vector<5x80xf32> -> vector<5x80xf32>
    %69 = arith.addf %63, %68 : vector<5x80xf32>
    %c0_73 = arith.constant 0 : index
    %c8_74 = arith.constant 8 : index
    %c0_75 = arith.constant 0 : index
    %70 = vector.load %arg1[%c0_73, %c8_74, %c0_75] : memref<1x14x84xbf16, #tpu.memory_space<vmem>>, vector<1x5x84xbf16>
    %71 = vector.shape_cast %70 : vector<1x5x84xbf16> to vector<5x84xbf16>
    %c2_76 = arith.constant 2 : index
    %c0_77 = arith.constant 0 : index
    %c0_78 = arith.constant 0 : index
    %72 = vector.load %arg2[%c2_76, %c0_77, %c0_78] : memref<10x84x80xbf16, #tpu.memory_space<vmem>>, vector<1x84x80xbf16>
    %73 = vector.shape_cast %72 : vector<1x84x80xbf16> to vector<84x80xbf16>
    %cst_79 = arith.constant dense<0.000000e+00> : vector<5x80xf32>
    %74 = tpu.matmul %71, %73, %cst_79 {dimension_numbers = #tpu.dot_dimension_numbers<[1], [0], [0], [1], [0, 0, 1, 1], [], []>} : vector<5x84xbf16>, vector<84x80xbf16>, vector<5x80xf32> -> vector<5x80xf32>
    %75 = arith.addf %69, %74 : vector<5x80xf32>
    %c0_80 = arith.constant 0 : index
    %c2_81 = arith.constant 2 : index
    %c0_82 = arith.constant 0 : index
    %76 = vector.load %arg1[%c0_80, %c2_81, %c0_82] : memref<1x14x84xbf16, #tpu.memory_space<vmem>>, vector<1x5x84xbf16>
    %77 = vector.shape_cast %76 : vector<1x5x84xbf16> to vector<5x84xbf16>
    %c3_83 = arith.constant 3 : index
    %c0_84 = arith.constant 0 : index
    %c0_85 = arith.constant 0 : index
    %78 = vector.load %arg2[%c3_83, %c0_84, %c0_85] : memref<10x84x80xbf16, #tpu.memory_space<vmem>>, vector<1x84x80xbf16>
    %79 = vector.shape_cast %78 : vector<1x84x80xbf16> to vector<84x80xbf16>
    %cst_86 = arith.constant dense<0.000000e+00> : vector<5x80xf32>
    %80 = tpu.matmul %77, %79, %cst_86 {dimension_numbers = #tpu.dot_dimension_numbers<[1], [0], [0], [1], [0, 0, 1, 1], [], []>} : vector<5x84xbf16>, vector<84x80xbf16>, vector<5x80xf32> -> vector<5x80xf32>
    %81 = arith.addf %75, %80 : vector<5x80xf32>
    %c0_87 = arith.constant 0 : index
    %c9_88 = arith.constant 9 : index
    %c0_89 = arith.constant 0 : index
    %82 = vector.load %arg1[%c0_87, %c9_88, %c0_89] : memref<1x14x84xbf16, #tpu.memory_space<vmem>>, vector<1x5x84xbf16>
    %83 = vector.shape_cast %82 : vector<1x5x84xbf16> to vector<5x84xbf16>
    %c4_90 = arith.constant 4 : index
    %c0_91 = arith.constant 0 : index
    %c0_92 = arith.constant 0 : index
    %84 = vector.load %arg2[%c4_90, %c0_91, %c0_92] : memref<10x84x80xbf16, #tpu.memory_space<vmem>>, vector<1x84x80xbf16>
    %85 = vector.shape_cast %84 : vector<1x84x80xbf16> to vector<84x80xbf16>
    %cst_93 = arith.constant dense<0.000000e+00> : vector<5x80xf32>
    %86 = tpu.matmul %83, %85, %cst_93 {dimension_numbers = #tpu.dot_dimension_numbers<[1], [0], [0], [1], [0, 0, 1, 1], [], []>} : vector<5x84xbf16>, vector<84x80xbf16>, vector<5x80xf32> -> vector<5x80xf32>
    %87 = arith.addf %81, %86 : vector<5x80xf32>
    %88 = arith.maximumf %58, %87 : vector<5x80xf32>
    %c0_94 = arith.constant 0 : index
    %c7_95 = arith.constant 7 : index
    %c0_96 = arith.constant 0 : index
    %89 = vector.load %arg1[%c0_94, %c7_95, %c0_96] : memref<1x14x84xbf16, #tpu.memory_space<vmem>>, vector<1x5x84xbf16>
    %90 = vector.shape_cast %89 : vector<1x5x84xbf16> to vector<5x84xbf16>
    %c5_97 = arith.constant 5 : index
    %c0_98 = arith.constant 0 : index
    %c0_99 = arith.constant 0 : index
    %91 = vector.load %arg2[%c5_97, %c0_98, %c0_99] : memref<10x84x80xbf16, #tpu.memory_space<vmem>>, vector<1x84x80xbf16>
    %92 = vector.shape_cast %91 : vector<1x84x80xbf16> to vector<84x80xbf16>
    %cst_100 = arith.constant dense<0.000000e+00> : vector<5x80xf32>
    %93 = tpu.matmul %90, %92, %cst_100 {dimension_numbers = #tpu.dot_dimension_numbers<[1], [0], [0], [1], [0, 0, 1, 1], [], []>} : vector<5x84xbf16>, vector<84x80xbf16>, vector<5x80xf32> -> vector<5x80xf32>
    %c0_101 = arith.constant 0 : index
    %c1_102 = arith.constant 1 : index
    %c0_103 = arith.constant 0 : index
    %94 = vector.load %arg1[%c0_101, %c1_102, %c0_103] : memref<1x14x84xbf16, #tpu.memory_space<vmem>>, vector<1x5x84xbf16>
    %95 = vector.shape_cast %94 : vector<1x5x84xbf16> to vector<5x84xbf16>
    %c6_104 = arith.constant 6 : index
    %c0_105 = arith.constant 0 : index
    %c0_106 = arith.constant 0 : index
    %96 = vector.load %arg2[%c6_104, %c0_105, %c0_106] : memref<10x84x80xbf16, #tpu.memory_space<vmem>>, vector<1x84x80xbf16>
    %97 = vector.shape_cast %96 : vector<1x84x80xbf16> to vector<84x80xbf16>
    %cst_107 = arith.constant dense<0.000000e+00> : vector<5x80xf32>
    %98 = tpu.matmul %95, %97, %cst_107 {dimension_numbers = #tpu.dot_dimension_numbers<[1], [0], [0], [1], [0, 0, 1, 1], [], []>} : vector<5x84xbf16>, vector<84x80xbf16>, vector<5x80xf32> -> vector<5x80xf32>
    %99 = arith.addf %93, %98 : vector<5x80xf32>
    %c0_108 = arith.constant 0 : index
    %c8_109 = arith.constant 8 : index
    %c0_110 = arith.constant 0 : index
    %100 = vector.load %arg1[%c0_108, %c8_109, %c0_110] : memref<1x14x84xbf16, #tpu.memory_space<vmem>>, vector<1x5x84xbf16>
    %101 = vector.shape_cast %100 : vector<1x5x84xbf16> to vector<5x84xbf16>
    %c7_111 = arith.constant 7 : index
    %c0_112 = arith.constant 0 : index
    %c0_113 = arith.constant 0 : index
    %102 = vector.load %arg2[%c7_111, %c0_112, %c0_113] : memref<10x84x80xbf16, #tpu.memory_space<vmem>>, vector<1x84x80xbf16>
    %103 = vector.shape_cast %102 : vector<1x84x80xbf16> to vector<84x80xbf16>
    %cst_114 = arith.constant dense<0.000000e+00> : vector<5x80xf32>
    %104 = tpu.matmul %101, %103, %cst_114 {dimension_numbers = #tpu.dot_dimension_numbers<[1], [0], [0], [1], [0, 0, 1, 1], [], []>} : vector<5x84xbf16>, vector<84x80xbf16>, vector<5x80xf32> -> vector<5x80xf32>
    %105 = arith.addf %99, %104 : vector<5x80xf32>
    %c0_115 = arith.constant 0 : index
    %c2_116 = arith.constant 2 : index
    %c0_117 = arith.constant 0 : index
    %106 = vector.load %arg1[%c0_115, %c2_116, %c0_117] : memref<1x14x84xbf16, #tpu.memory_space<vmem>>, vector<1x5x84xbf16>
    %107 = vector.shape_cast %106 : vector<1x5x84xbf16> to vector<5x84xbf16>
    %c8_118 = arith.constant 8 : index
    %c0_119 = arith.constant 0 : index
    %c0_120 = arith.constant 0 : index
    %108 = vector.load %arg2[%c8_118, %c0_119, %c0_120] : memref<10x84x80xbf16, #tpu.memory_space<vmem>>, vector<1x84x80xbf16>
    %109 = vector.shape_cast %108 : vector<1x84x80xbf16> to vector<84x80xbf16>
    %cst_121 = arith.constant dense<0.000000e+00> : vector<5x80xf32>
    %110 = tpu.matmul %107, %109, %cst_121 {dimension_numbers = #tpu.dot_dimension_numbers<[1], [0], [0], [1], [0, 0, 1, 1], [], []>} : vector<5x84xbf16>, vector<84x80xbf16>, vector<5x80xf32> -> vector<5x80xf32>
    %111 = arith.addf %105, %110 : vector<5x80xf32>
    %c0_122 = arith.constant 0 : index
    %c9_123 = arith.constant 9 : index
    %c0_124 = arith.constant 0 : index
    %112 = vector.load %arg1[%c0_122, %c9_123, %c0_124] : memref<1x14x84xbf16, #tpu.memory_space<vmem>>, vector<1x5x84xbf16>
    %113 = vector.shape_cast %112 : vector<1x5x84xbf16> to vector<5x84xbf16>
    %c9_125 = arith.constant 9 : index
    %c0_126 = arith.constant 0 : index
    %c0_127 = arith.constant 0 : index
    %114 = vector.load %arg2[%c9_125, %c0_126, %c0_127] : memref<10x84x80xbf16, #tpu.memory_space<vmem>>, vector<1x84x80xbf16>
    %115 = vector.shape_cast %114 : vector<1x84x80xbf16> to vector<84x80xbf16>
    %cst_128 = arith.constant dense<0.000000e+00> : vector<5x80xf32>
    %116 = tpu.matmul %113, %115, %cst_128 {dimension_numbers = #tpu.dot_dimension_numbers<[1], [0], [0], [1], [0, 0, 1, 1], [], []>} : vector<5x84xbf16>, vector<84x80xbf16>, vector<5x80xf32> -> vector<5x80xf32>
    %117 = arith.addf %111, %116 : vector<5x80xf32>
    %118 = arith.maximumf %88, %117 : vector<5x80xf32>
    %c0_129 = arith.constant 0 : index
    %c0_130 = arith.constant 0 : index
    %119 = vector.load %arg3[%c0_129, %c0_130] : memref<1x80xf32, #tpu.memory_space<vmem>>, vector<1x80xf32>
    %120 = vector.broadcast %119 : vector<1x80xf32> to vector<5x80xf32>
    %121 = arith.addf %118, %120 : vector<5x80xf32>
    %cst_131 = arith.constant 0.000000e+00 : f32
    %122 = vector.broadcast %cst_131 : f32 to vector<5x80xf32>
    %123 = arith.maximumf %121, %122 : vector<5x80xf32>
    %124 = arith.truncf %123 : vector<5x80xf32> to vector<5x80xbf16>
    %c0_132 = arith.constant 0 : index
    %c0_133 = arith.constant 0 : index
    %c0_134 = arith.constant 0 : index
    %125 = vector.load %arg4[%c0_132, %c0_133, %c0_134] : memref<1x5x80xbf16, #tpu.memory_space<vmem>>, vector<1x5x80xbf16>
    %126 = vector.shape_cast %125 : vector<1x5x80xbf16> to vector<5x80xbf16>
    %127 = vector.shape_cast %124 : vector<5x80xbf16> to vector<1x5x80xbf16>
    tpu.vector_store %arg4[%c0_132, %c0_133, %c0_134], %127 {strides = array<i32>} : memref<1x5x80xbf16, #tpu.memory_space<vmem>>, vector<1x5x80xbf16>,
    return
  }
  func.func @transform_0(%arg0: i32) -> (i32, i32, i32) {
    %c0_i32 = arith.constant 0 : i32
    %c0_i32_0 = arith.constant 0 : i32
    %c0_i32_1 = arith.constant 0 : i32
    return %arg0, %c0_i32, %c0_i32_0 : i32, i32, i32
  }
  func.func @transform_1(%arg0: i32) -> (i32, i32, i32) {
    %c0_i32 = arith.constant 0 : i32
    %c0_i32_0 = arith.constant 0 : i32
    %c0_i32_1 = arith.constant 0 : i32
    %c0_i32_2 = arith.constant 0 : i32
    return %c0_i32, %c0_i32_0, %c0_i32_1 : i32, i32, i32
  }
  func.func @transform_2(%arg0: i32) -> (i32, i32) {
    %c0_i32 = arith.constant 0 : i32
    %c0_i32_0 = arith.constant 0 : i32
    %c0_i32_1 = arith.constant 0 : i32
    return %c0_i32, %c0_i32_0 : i32, i32
  }
  func.func @transform_3(%arg0: i32) -> (i32, i32, i32) {
    %c0_i32 = arith.constant 0 : i32
    %c0_i32_0 = arith.constant 0 : i32
    %c0_i32_1 = arith.constant 0 : i32
    return %arg0, %c0_i32, %c0_i32_0 : i32, i32, i32
  }
}

module attributes {stable_mosaic.version = 11 : i64} {
  func.func @_conv_pool_kernel(%arg0: i32, %arg1: memref<1x32x96xbf16, #tpu.memory_space<vmem>>, %arg2: memref<10x96x84xbf16, #tpu.memory_space<vmem>>, %arg3: memref<1x84xf32, #tpu.memory_space<vmem>>, %arg4: memref<1x14x84xbf16, #tpu.memory_space<vmem>>) attributes {dimension_semantics = [#tpu.dimension_semantics<parallel>], iteration_bounds = array<i64: 2>, scalar_prefetch = 0 : i64, scratch_operands = 0 : i64, tpu.core_type = #tpu.core_type<tc>, window_params = [{transform_indices = @transform_0, window_bounds = array<i64: 1, 32, 96>}, {pipeline_mode = #tpu.pipeline_mode<synchronous>, transform_indices = @transform_1, window_bounds = array<i64: 10, 96, 84>}, {pipeline_mode = #tpu.pipeline_mode<synchronous>, transform_indices = @transform_2, window_bounds = array<i64: 1, 84>}, {transform_indices = @transform_3, window_bounds = array<i64: 1, 14, 84>}]} {
    %c0 = arith.constant 0 : index
    %c0_0 = arith.constant 0 : index
    %c0_1 = arith.constant 0 : index
    %0 = vector.load %arg1[%c0, %c0_0, %c0_1] : memref<1x32x96xbf16, #tpu.memory_space<vmem>>, vector<1x14x96xbf16>
    %1 = vector.shape_cast %0 : vector<1x14x96xbf16> to vector<14x96xbf16>
    %c0_2 = arith.constant 0 : index
    %c0_3 = arith.constant 0 : index
    %c0_4 = arith.constant 0 : index
    %2 = vector.load %arg2[%c0_2, %c0_3, %c0_4] : memref<10x96x84xbf16, #tpu.memory_space<vmem>>, vector<1x96x84xbf16>
    %3 = vector.shape_cast %2 : vector<1x96x84xbf16> to vector<96x84xbf16>
    %cst = arith.constant dense<0.000000e+00> : vector<14x84xf32>
    %4 = tpu.matmul %1, %3, %cst {dimension_numbers = #tpu.dot_dimension_numbers<[1], [0], [0], [1], [0, 0, 1, 1], [], []>} : vector<14x96xbf16>, vector<96x84xbf16>, vector<14x84xf32> -> vector<14x84xf32>
    %c0_5 = arith.constant 0 : index
    %c16 = arith.constant 16 : index
    %c0_6 = arith.constant 0 : index
    %5 = vector.load %arg1[%c0_5, %c16, %c0_6] : memref<1x32x96xbf16, #tpu.memory_space<vmem>>, vector<1x14x96xbf16>
    %6 = vector.shape_cast %5 : vector<1x14x96xbf16> to vector<14x96xbf16>
    %c1 = arith.constant 1 : index
    %c0_7 = arith.constant 0 : index
    %c0_8 = arith.constant 0 : index
    %7 = vector.load %arg2[%c1, %c0_7, %c0_8] : memref<10x96x84xbf16, #tpu.memory_space<vmem>>, vector<1x96x84xbf16>
    %8 = vector.shape_cast %7 : vector<1x96x84xbf16> to vector<96x84xbf16>
    %cst_9 = arith.constant dense<0.000000e+00> : vector<14x84xf32>
    %9 = tpu.matmul %6, %8, %cst_9 {dimension_numbers = #tpu.dot_dimension_numbers<[1], [0], [0], [1], [0, 0, 1, 1], [], []>} : vector<14x96xbf16>, vector<96x84xbf16>, vector<14x84xf32> -> vector<14x84xf32>
    %10 = arith.addf %4, %9 : vector<14x84xf32>
    %c0_10 = arith.constant 0 : index
    %c1_11 = arith.constant 1 : index
    %c0_12 = arith.constant 0 : index
    %11 = vector.load %arg1[%c0_10, %c1_11, %c0_12] : memref<1x32x96xbf16, #tpu.memory_space<vmem>>, vector<1x14x96xbf16>
    %12 = vector.shape_cast %11 : vector<1x14x96xbf16> to vector<14x96xbf16>
    %c2 = arith.constant 2 : index
    %c0_13 = arith.constant 0 : index
    %c0_14 = arith.constant 0 : index
    %13 = vector.load %arg2[%c2, %c0_13, %c0_14] : memref<10x96x84xbf16, #tpu.memory_space<vmem>>, vector<1x96x84xbf16>
    %14 = vector.shape_cast %13 : vector<1x96x84xbf16> to vector<96x84xbf16>
    %cst_15 = arith.constant dense<0.000000e+00> : vector<14x84xf32>
    %15 = tpu.matmul %12, %14, %cst_15 {dimension_numbers = #tpu.dot_dimension_numbers<[1], [0], [0], [1], [0, 0, 1, 1], [], []>} : vector<14x96xbf16>, vector<96x84xbf16>, vector<14x84xf32> -> vector<14x84xf32>
    %16 = arith.addf %10, %15 : vector<14x84xf32>
    %c0_16 = arith.constant 0 : index
    %c17 = arith.constant 17 : index
    %c0_17 = arith.constant 0 : index
    %17 = vector.load %arg1[%c0_16, %c17, %c0_17] : memref<1x32x96xbf16, #tpu.memory_space<vmem>>, vector<1x14x96xbf16>
    %18 = vector.shape_cast %17 : vector<1x14x96xbf16> to vector<14x96xbf16>
    %c3 = arith.constant 3 : index
    %c0_18 = arith.constant 0 : index
    %c0_19 = arith.constant 0 : index
    %19 = vector.load %arg2[%c3, %c0_18, %c0_19] : memref<10x96x84xbf16, #tpu.memory_space<vmem>>, vector<1x96x84xbf16>
    %20 = vector.shape_cast %19 : vector<1x96x84xbf16> to vector<96x84xbf16>
    %cst_20 = arith.constant dense<0.000000e+00> : vector<14x84xf32>
    %21 = tpu.matmul %18, %20, %cst_20 {dimension_numbers = #tpu.dot_dimension_numbers<[1], [0], [0], [1], [0, 0, 1, 1], [], []>} : vector<14x96xbf16>, vector<96x84xbf16>, vector<14x84xf32> -> vector<14x84xf32>
    %22 = arith.addf %16, %21 : vector<14x84xf32>
    %c0_21 = arith.constant 0 : index
    %c2_22 = arith.constant 2 : index
    %c0_23 = arith.constant 0 : index
    %23 = vector.load %arg1[%c0_21, %c2_22, %c0_23] : memref<1x32x96xbf16, #tpu.memory_space<vmem>>, vector<1x14x96xbf16>
    %24 = vector.shape_cast %23 : vector<1x14x96xbf16> to vector<14x96xbf16>
    %c4 = arith.constant 4 : index
    %c0_24 = arith.constant 0 : index
    %c0_25 = arith.constant 0 : index
    %25 = vector.load %arg2[%c4, %c0_24, %c0_25] : memref<10x96x84xbf16, #tpu.memory_space<vmem>>, vector<1x96x84xbf16>
    %26 = vector.shape_cast %25 : vector<1x96x84xbf16> to vector<96x84xbf16>
    %cst_26 = arith.constant dense<0.000000e+00> : vector<14x84xf32>
    %27 = tpu.matmul %24, %26, %cst_26 {dimension_numbers = #tpu.dot_dimension_numbers<[1], [0], [0], [1], [0, 0, 1, 1], [], []>} : vector<14x96xbf16>, vector<96x84xbf16>, vector<14x84xf32> -> vector<14x84xf32>
    %28 = arith.addf %22, %27 : vector<14x84xf32>
    %c0_27 = arith.constant 0 : index
    %c0_28 = arith.constant 0 : index
    %c0_29 = arith.constant 0 : index
    %29 = vector.load %arg1[%c0_27, %c0_28, %c0_29] : memref<1x32x96xbf16, #tpu.memory_space<vmem>>, vector<1x14x96xbf16>
    %30 = vector.shape_cast %29 : vector<1x14x96xbf16> to vector<14x96xbf16>
    %c5 = arith.constant 5 : index
    %c0_30 = arith.constant 0 : index
    %c0_31 = arith.constant 0 : index
    %31 = vector.load %arg2[%c5, %c0_30, %c0_31] : memref<10x96x84xbf16, #tpu.memory_space<vmem>>, vector<1x96x84xbf16>
    %32 = vector.shape_cast %31 : vector<1x96x84xbf16> to vector<96x84xbf16>
    %cst_32 = arith.constant dense<0.000000e+00> : vector<14x84xf32>
    %33 = tpu.matmul %30, %32, %cst_32 {dimension_numbers = #tpu.dot_dimension_numbers<[1], [0], [0], [1], [0, 0, 1, 1], [], []>} : vector<14x96xbf16>, vector<96x84xbf16>, vector<14x84xf32> -> vector<14x84xf32>
    %c0_33 = arith.constant 0 : index
    %c16_34 = arith.constant 16 : index
    %c0_35 = arith.constant 0 : index
    %34 = vector.load %arg1[%c0_33, %c16_34, %c0_35] : memref<1x32x96xbf16, #tpu.memory_space<vmem>>, vector<1x14x96xbf16>
    %35 = vector.shape_cast %34 : vector<1x14x96xbf16> to vector<14x96xbf16>
    %c6 = arith.constant 6 : index
    %c0_36 = arith.constant 0 : index
    %c0_37 = arith.constant 0 : index
    %36 = vector.load %arg2[%c6, %c0_36, %c0_37] : memref<10x96x84xbf16, #tpu.memory_space<vmem>>, vector<1x96x84xbf16>
    %37 = vector.shape_cast %36 : vector<1x96x84xbf16> to vector<96x84xbf16>
    %cst_38 = arith.constant dense<0.000000e+00> : vector<14x84xf32>
    %38 = tpu.matmul %35, %37, %cst_38 {dimension_numbers = #tpu.dot_dimension_numbers<[1], [0], [0], [1], [0, 0, 1, 1], [], []>} : vector<14x96xbf16>, vector<96x84xbf16>, vector<14x84xf32> -> vector<14x84xf32>
    %39 = arith.addf %33, %38 : vector<14x84xf32>
    %c0_39 = arith.constant 0 : index
    %c1_40 = arith.constant 1 : index
    %c0_41 = arith.constant 0 : index
    %40 = vector.load %arg1[%c0_39, %c1_40, %c0_41] : memref<1x32x96xbf16, #tpu.memory_space<vmem>>, vector<1x14x96xbf16>
    %41 = vector.shape_cast %40 : vector<1x14x96xbf16> to vector<14x96xbf16>
    %c7 = arith.constant 7 : index
    %c0_42 = arith.constant 0 : index
    %c0_43 = arith.constant 0 : index
    %42 = vector.load %arg2[%c7, %c0_42, %c0_43] : memref<10x96x84xbf16, #tpu.memory_space<vmem>>, vector<1x96x84xbf16>
    %43 = vector.shape_cast %42 : vector<1x96x84xbf16> to vector<96x84xbf16>
    %cst_44 = arith.constant dense<0.000000e+00> : vector<14x84xf32>
    %44 = tpu.matmul %41, %43, %cst_44 {dimension_numbers = #tpu.dot_dimension_numbers<[1], [0], [0], [1], [0, 0, 1, 1], [], []>} : vector<14x96xbf16>, vector<96x84xbf16>, vector<14x84xf32> -> vector<14x84xf32>
    %45 = arith.addf %39, %44 : vector<14x84xf32>
    %c0_45 = arith.constant 0 : index
    %c17_46 = arith.constant 17 : index
    %c0_47 = arith.constant 0 : index
    %46 = vector.load %arg1[%c0_45, %c17_46, %c0_47] : memref<1x32x96xbf16, #tpu.memory_space<vmem>>, vector<1x14x96xbf16>
    %47 = vector.shape_cast %46 : vector<1x14x96xbf16> to vector<14x96xbf16>
    %c8 = arith.constant 8 : index
    %c0_48 = arith.constant 0 : index
    %c0_49 = arith.constant 0 : index
    %48 = vector.load %arg2[%c8, %c0_48, %c0_49] : memref<10x96x84xbf16, #tpu.memory_space<vmem>>, vector<1x96x84xbf16>
    %49 = vector.shape_cast %48 : vector<1x96x84xbf16> to vector<96x84xbf16>
    %cst_50 = arith.constant dense<0.000000e+00> : vector<14x84xf32>
    %50 = tpu.matmul %47, %49, %cst_50 {dimension_numbers = #tpu.dot_dimension_numbers<[1], [0], [0], [1], [0, 0, 1, 1], [], []>} : vector<14x96xbf16>, vector<96x84xbf16>, vector<14x84xf32> -> vector<14x84xf32>
    %51 = arith.addf %45, %50 : vector<14x84xf32>
    %c0_51 = arith.constant 0 : index
    %c2_52 = arith.constant 2 : index
    %c0_53 = arith.constant 0 : index
    %52 = vector.load %arg1[%c0_51, %c2_52, %c0_53] : memref<1x32x96xbf16, #tpu.memory_space<vmem>>, vector<1x14x96xbf16>
    %53 = vector.shape_cast %52 : vector<1x14x96xbf16> to vector<14x96xbf16>
    %c9 = arith.constant 9 : index
    %c0_54 = arith.constant 0 : index
    %c0_55 = arith.constant 0 : index
    %54 = vector.load %arg2[%c9, %c0_54, %c0_55] : memref<10x96x84xbf16, #tpu.memory_space<vmem>>, vector<1x96x84xbf16>
    %55 = vector.shape_cast %54 : vector<1x96x84xbf16> to vector<96x84xbf16>
    %cst_56 = arith.constant dense<0.000000e+00> : vector<14x84xf32>
    %56 = tpu.matmul %53, %55, %cst_56 {dimension_numbers = #tpu.dot_dimension_numbers<[1], [0], [0], [1], [0, 0, 1, 1], [], []>} : vector<14x96xbf16>, vector<96x84xbf16>, vector<14x84xf32> -> vector<14x84xf32>
    %57 = arith.addf %51, %56 : vector<14x84xf32>
    %58 = arith.maximumf %28, %57 : vector<14x84xf32>
    %c0_57 = arith.constant 0 : index
    %c16_58 = arith.constant 16 : index
    %c0_59 = arith.constant 0 : index
    %59 = vector.load %arg1[%c0_57, %c16_58, %c0_59] : memref<1x32x96xbf16, #tpu.memory_space<vmem>>, vector<1x14x96xbf16>
    %60 = vector.shape_cast %59 : vector<1x14x96xbf16> to vector<14x96xbf16>
    %c0_60 = arith.constant 0 : index
    %c0_61 = arith.constant 0 : index
    %c0_62 = arith.constant 0 : index
    %61 = vector.load %arg2[%c0_60, %c0_61, %c0_62] : memref<10x96x84xbf16, #tpu.memory_space<vmem>>, vector<1x96x84xbf16>
    %62 = vector.shape_cast %61 : vector<1x96x84xbf16> to vector<96x84xbf16>
    %cst_63 = arith.constant dense<0.000000e+00> : vector<14x84xf32>
    %63 = tpu.matmul %60, %62, %cst_63 {dimension_numbers = #tpu.dot_dimension_numbers<[1], [0], [0], [1], [0, 0, 1, 1], [], []>} : vector<14x96xbf16>, vector<96x84xbf16>, vector<14x84xf32> -> vector<14x84xf32>
    %c0_64 = arith.constant 0 : index
    %c1_65 = arith.constant 1 : index
    %c0_66 = arith.constant 0 : index
    %64 = vector.load %arg1[%c0_64, %c1_65, %c0_66] : memref<1x32x96xbf16, #tpu.memory_space<vmem>>, vector<1x14x96xbf16>
    %65 = vector.shape_cast %64 : vector<1x14x96xbf16> to vector<14x96xbf16>
    %c1_67 = arith.constant 1 : index
    %c0_68 = arith.constant 0 : index
    %c0_69 = arith.constant 0 : index
    %66 = vector.load %arg2[%c1_67, %c0_68, %c0_69] : memref<10x96x84xbf16, #tpu.memory_space<vmem>>, vector<1x96x84xbf16>
    %67 = vector.shape_cast %66 : vector<1x96x84xbf16> to vector<96x84xbf16>
    %cst_70 = arith.constant dense<0.000000e+00> : vector<14x84xf32>
    %68 = tpu.matmul %65, %67, %cst_70 {dimension_numbers = #tpu.dot_dimension_numbers<[1], [0], [0], [1], [0, 0, 1, 1], [], []>} : vector<14x96xbf16>, vector<96x84xbf16>, vector<14x84xf32> -> vector<14x84xf32>
    %69 = arith.addf %63, %68 : vector<14x84xf32>
    %c0_71 = arith.constant 0 : index
    %c17_72 = arith.constant 17 : index
    %c0_73 = arith.constant 0 : index
    %70 = vector.load %arg1[%c0_71, %c17_72, %c0_73] : memref<1x32x96xbf16, #tpu.memory_space<vmem>>, vector<1x14x96xbf16>
    %71 = vector.shape_cast %70 : vector<1x14x96xbf16> to vector<14x96xbf16>
    %c2_74 = arith.constant 2 : index
    %c0_75 = arith.constant 0 : index
    %c0_76 = arith.constant 0 : index
    %72 = vector.load %arg2[%c2_74, %c0_75, %c0_76] : memref<10x96x84xbf16, #tpu.memory_space<vmem>>, vector<1x96x84xbf16>
    %73 = vector.shape_cast %72 : vector<1x96x84xbf16> to vector<96x84xbf16>
    %cst_77 = arith.constant dense<0.000000e+00> : vector<14x84xf32>
    %74 = tpu.matmul %71, %73, %cst_77 {dimension_numbers = #tpu.dot_dimension_numbers<[1], [0], [0], [1], [0, 0, 1, 1], [], []>} : vector<14x96xbf16>, vector<96x84xbf16>, vector<14x84xf32> -> vector<14x84xf32>
    %75 = arith.addf %69, %74 : vector<14x84xf32>
    %c0_78 = arith.constant 0 : index
    %c2_79 = arith.constant 2 : index
    %c0_80 = arith.constant 0 : index
    %76 = vector.load %arg1[%c0_78, %c2_79, %c0_80] : memref<1x32x96xbf16, #tpu.memory_space<vmem>>, vector<1x14x96xbf16>
    %77 = vector.shape_cast %76 : vector<1x14x96xbf16> to vector<14x96xbf16>
    %c3_81 = arith.constant 3 : index
    %c0_82 = arith.constant 0 : index
    %c0_83 = arith.constant 0 : index
    %78 = vector.load %arg2[%c3_81, %c0_82, %c0_83] : memref<10x96x84xbf16, #tpu.memory_space<vmem>>, vector<1x96x84xbf16>
    %79 = vector.shape_cast %78 : vector<1x96x84xbf16> to vector<96x84xbf16>
    %cst_84 = arith.constant dense<0.000000e+00> : vector<14x84xf32>
    %80 = tpu.matmul %77, %79, %cst_84 {dimension_numbers = #tpu.dot_dimension_numbers<[1], [0], [0], [1], [0, 0, 1, 1], [], []>} : vector<14x96xbf16>, vector<96x84xbf16>, vector<14x84xf32> -> vector<14x84xf32>
    %81 = arith.addf %75, %80 : vector<14x84xf32>
    %c0_85 = arith.constant 0 : index
    %c18 = arith.constant 18 : index
    %c0_86 = arith.constant 0 : index
    %82 = vector.load %arg1[%c0_85, %c18, %c0_86] : memref<1x32x96xbf16, #tpu.memory_space<vmem>>, vector<1x14x96xbf16>
    %83 = vector.shape_cast %82 : vector<1x14x96xbf16> to vector<14x96xbf16>
    %c4_87 = arith.constant 4 : index
    %c0_88 = arith.constant 0 : index
    %c0_89 = arith.constant 0 : index
    %84 = vector.load %arg2[%c4_87, %c0_88, %c0_89] : memref<10x96x84xbf16, #tpu.memory_space<vmem>>, vector<1x96x84xbf16>
    %85 = vector.shape_cast %84 : vector<1x96x84xbf16> to vector<96x84xbf16>
    %cst_90 = arith.constant dense<0.000000e+00> : vector<14x84xf32>
    %86 = tpu.matmul %83, %85, %cst_90 {dimension_numbers = #tpu.dot_dimension_numbers<[1], [0], [0], [1], [0, 0, 1, 1], [], []>} : vector<14x96xbf16>, vector<96x84xbf16>, vector<14x84xf32> -> vector<14x84xf32>
    %87 = arith.addf %81, %86 : vector<14x84xf32>
    %88 = arith.maximumf %58, %87 : vector<14x84xf32>
    %c0_91 = arith.constant 0 : index
    %c16_92 = arith.constant 16 : index
    %c0_93 = arith.constant 0 : index
    %89 = vector.load %arg1[%c0_91, %c16_92, %c0_93] : memref<1x32x96xbf16, #tpu.memory_space<vmem>>, vector<1x14x96xbf16>
    %90 = vector.shape_cast %89 : vector<1x14x96xbf16> to vector<14x96xbf16>
    %c5_94 = arith.constant 5 : index
    %c0_95 = arith.constant 0 : index
    %c0_96 = arith.constant 0 : index
    %91 = vector.load %arg2[%c5_94, %c0_95, %c0_96] : memref<10x96x84xbf16, #tpu.memory_space<vmem>>, vector<1x96x84xbf16>
    %92 = vector.shape_cast %91 : vector<1x96x84xbf16> to vector<96x84xbf16>
    %cst_97 = arith.constant dense<0.000000e+00> : vector<14x84xf32>
    %93 = tpu.matmul %90, %92, %cst_97 {dimension_numbers = #tpu.dot_dimension_numbers<[1], [0], [0], [1], [0, 0, 1, 1], [], []>} : vector<14x96xbf16>, vector<96x84xbf16>, vector<14x84xf32> -> vector<14x84xf32>
    %c0_98 = arith.constant 0 : index
    %c1_99 = arith.constant 1 : index
    %c0_100 = arith.constant 0 : index
    %94 = vector.load %arg1[%c0_98, %c1_99, %c0_100] : memref<1x32x96xbf16, #tpu.memory_space<vmem>>, vector<1x14x96xbf16>
    %95 = vector.shape_cast %94 : vector<1x14x96xbf16> to vector<14x96xbf16>
    %c6_101 = arith.constant 6 : index
    %c0_102 = arith.constant 0 : index
    %c0_103 = arith.constant 0 : index
    %96 = vector.load %arg2[%c6_101, %c0_102, %c0_103] : memref<10x96x84xbf16, #tpu.memory_space<vmem>>, vector<1x96x84xbf16>
    %97 = vector.shape_cast %96 : vector<1x96x84xbf16> to vector<96x84xbf16>
    %cst_104 = arith.constant dense<0.000000e+00> : vector<14x84xf32>
    %98 = tpu.matmul %95, %97, %cst_104 {dimension_numbers = #tpu.dot_dimension_numbers<[1], [0], [0], [1], [0, 0, 1, 1], [], []>} : vector<14x96xbf16>, vector<96x84xbf16>, vector<14x84xf32> -> vector<14x84xf32>
    %99 = arith.addf %93, %98 : vector<14x84xf32>
    %c0_105 = arith.constant 0 : index
    %c17_106 = arith.constant 17 : index
    %c0_107 = arith.constant 0 : index
    %100 = vector.load %arg1[%c0_105, %c17_106, %c0_107] : memref<1x32x96xbf16, #tpu.memory_space<vmem>>, vector<1x14x96xbf16>
    %101 = vector.shape_cast %100 : vector<1x14x96xbf16> to vector<14x96xbf16>
    %c7_108 = arith.constant 7 : index
    %c0_109 = arith.constant 0 : index
    %c0_110 = arith.constant 0 : index
    %102 = vector.load %arg2[%c7_108, %c0_109, %c0_110] : memref<10x96x84xbf16, #tpu.memory_space<vmem>>, vector<1x96x84xbf16>
    %103 = vector.shape_cast %102 : vector<1x96x84xbf16> to vector<96x84xbf16>
    %cst_111 = arith.constant dense<0.000000e+00> : vector<14x84xf32>
    %104 = tpu.matmul %101, %103, %cst_111 {dimension_numbers = #tpu.dot_dimension_numbers<[1], [0], [0], [1], [0, 0, 1, 1], [], []>} : vector<14x96xbf16>, vector<96x84xbf16>, vector<14x84xf32> -> vector<14x84xf32>
    %105 = arith.addf %99, %104 : vector<14x84xf32>
    %c0_112 = arith.constant 0 : index
    %c2_113 = arith.constant 2 : index
    %c0_114 = arith.constant 0 : index
    %106 = vector.load %arg1[%c0_112, %c2_113, %c0_114] : memref<1x32x96xbf16, #tpu.memory_space<vmem>>, vector<1x14x96xbf16>
    %107 = vector.shape_cast %106 : vector<1x14x96xbf16> to vector<14x96xbf16>
    %c8_115 = arith.constant 8 : index
    %c0_116 = arith.constant 0 : index
    %c0_117 = arith.constant 0 : index
    %108 = vector.load %arg2[%c8_115, %c0_116, %c0_117] : memref<10x96x84xbf16, #tpu.memory_space<vmem>>, vector<1x96x84xbf16>
    %109 = vector.shape_cast %108 : vector<1x96x84xbf16> to vector<96x84xbf16>
    %cst_118 = arith.constant dense<0.000000e+00> : vector<14x84xf32>
    %110 = tpu.matmul %107, %109, %cst_118 {dimension_numbers = #tpu.dot_dimension_numbers<[1], [0], [0], [1], [0, 0, 1, 1], [], []>} : vector<14x96xbf16>, vector<96x84xbf16>, vector<14x84xf32> -> vector<14x84xf32>
    %111 = arith.addf %105, %110 : vector<14x84xf32>
    %c0_119 = arith.constant 0 : index
    %c18_120 = arith.constant 18 : index
    %c0_121 = arith.constant 0 : index
    %112 = vector.load %arg1[%c0_119, %c18_120, %c0_121] : memref<1x32x96xbf16, #tpu.memory_space<vmem>>, vector<1x14x96xbf16>
    %113 = vector.shape_cast %112 : vector<1x14x96xbf16> to vector<14x96xbf16>
    %c9_122 = arith.constant 9 : index
    %c0_123 = arith.constant 0 : index
    %c0_124 = arith.constant 0 : index
    %114 = vector.load %arg2[%c9_122, %c0_123, %c0_124] : memref<10x96x84xbf16, #tpu.memory_space<vmem>>, vector<1x96x84xbf16>
    %115 = vector.shape_cast %114 : vector<1x96x84xbf16> to vector<96x84xbf16>
    %cst_125 = arith.constant dense<0.000000e+00> : vector<14x84xf32>
    %116 = tpu.matmul %113, %115, %cst_125 {dimension_numbers = #tpu.dot_dimension_numbers<[1], [0], [0], [1], [0, 0, 1, 1], [], []>} : vector<14x96xbf16>, vector<96x84xbf16>, vector<14x84xf32> -> vector<14x84xf32>
    %117 = arith.addf %111, %116 : vector<14x84xf32>
    %118 = arith.maximumf %88, %117 : vector<14x84xf32>
    %c0_126 = arith.constant 0 : index
    %c0_127 = arith.constant 0 : index
    %119 = vector.load %arg3[%c0_126, %c0_127] : memref<1x84xf32, #tpu.memory_space<vmem>>, vector<1x84xf32>
    %120 = vector.broadcast %119 : vector<1x84xf32> to vector<14x84xf32>
    %121 = arith.addf %118, %120 : vector<14x84xf32>
    %cst_128 = arith.constant 0.000000e+00 : f32
    %122 = vector.broadcast %cst_128 : f32 to vector<14x84xf32>
    %123 = arith.maximumf %121, %122 : vector<14x84xf32>
    %124 = arith.truncf %123 : vector<14x84xf32> to vector<14x84xbf16>
    %c0_129 = arith.constant 0 : index
    %c0_130 = arith.constant 0 : index
    %c0_131 = arith.constant 0 : index
    %125 = vector.load %arg4[%c0_129, %c0_130, %c0_131] : memref<1x14x84xbf16, #tpu.memory_space<vmem>>, vector<1x14x84xbf16>
    %126 = vector.shape_cast %125 : vector<1x14x84xbf16> to vector<14x84xbf16>
    %127 = vector.shape_cast %124 : vector<14x84xbf16> to vector<1x14x84xbf16>
    tpu.vector_store %arg4[%c0_129, %c0_130, %c0_131], %127 {strides = array<i32>} : memref<1x14x84xbf16, #tpu.memory_space<vmem>>, vector<1x14x84xbf16>,
    return
  }
  func.func @transform_0(%arg0: i32) -> (i32, i32, i32) {
    %c0_i32 = arith.constant 0 : i32
    %c0_i32_0 = arith.constant 0 : i32
    %c0_i32_1 = arith.constant 0 : i32
    return %arg0, %c0_i32, %c0_i32_0 : i32, i32, i32
  }
  func.func @transform_1(%arg0: i32) -> (i32, i32, i32) {
    %c0_i32 = arith.constant 0 : i32
    %c0_i32_0 = arith.constant 0 : i32
    %c0_i32_1 = arith.constant 0 : i32
    %c0_i32_2 = arith.constant 0 : i32
    return %c0_i32, %c0_i32_0, %c0_i32_1 : i32, i32, i32
  }
  func.func @transform_2(%arg0: i32) -> (i32, i32) {
    %c0_i32 = arith.constant 0 : i32
    %c0_i32_0 = arith.constant 0 : i32
    %c0_i32_1 = arith.constant 0 : i32
    return %c0_i32, %c0_i32_0 : i32, i32
  }
  func.func @transform_3(%arg0: i32) -> (i32, i32, i32) {
    %c0_i32 = arith.constant 0 : i32
    %c0_i32_0 = arith.constant 0 : i32
    %c0_i32_1 = arith.constant 0 : i32
    return %arg0, %c0_i32, %c0_i32_0 : i32, i32, i32
  }
}

module attributes {stable_mosaic.version = 11 : i64} {
  func.func @_fc_fused_kernel(%arg0: i32, %arg1: memref<2x400xbf16, #tpu.memory_space<vmem>>, %arg2: memref<400x120xbf16, #tpu.memory_space<vmem>>, %arg3: memref<1x120xf32, #tpu.memory_space<vmem>>, %arg4: memref<120x84xbf16, #tpu.memory_space<vmem>>, %arg5: memref<1x84xf32, #tpu.memory_space<vmem>>, %arg6: memref<84x10xbf16, #tpu.memory_space<vmem>>, %arg7: memref<1x10xf32, #tpu.memory_space<vmem>>, %arg8: memref<2x10xf32, #tpu.memory_space<vmem>>) attributes {dimension_semantics = [#tpu.dimension_semantics<parallel>], iteration_bounds = array<i64: 1>, scalar_prefetch = 0 : i64, scratch_operands = 0 : i64, tpu.core_type = #tpu.core_type<tc>, window_params = [{transform_indices = @transform_0, window_bounds = array<i64: 2, 400>}, {pipeline_mode = #tpu.pipeline_mode<synchronous>, transform_indices = @transform_1, window_bounds = array<i64: 400, 120>}, {pipeline_mode = #tpu.pipeline_mode<synchronous>, transform_indices = @transform_2, window_bounds = array<i64: 1, 120>}, {pipeline_mode = #tpu.pipeline_mode<synchronous>, transform_indices = @transform_3, window_bounds = array<i64: 120, 84>}, {pipeline_mode = #tpu.pipeline_mode<synchronous>, transform_indices = @transform_4, window_bounds = array<i64: 1, 84>}, {pipeline_mode = #tpu.pipeline_mode<synchronous>, transform_indices = @transform_5, window_bounds = array<i64: 84, 10>}, {pipeline_mode = #tpu.pipeline_mode<synchronous>, transform_indices = @transform_6, window_bounds = array<i64: 1, 10>}, {transform_indices = @transform_7, window_bounds = array<i64: 2, 10>}]} {
    %c0 = arith.constant 0 : index
    %c0_0 = arith.constant 0 : index
    %0 = vector.load %arg1[%c0, %c0_0] : memref<2x400xbf16, #tpu.memory_space<vmem>>, vector<2x400xbf16>
    %c0_1 = arith.constant 0 : index
    %c0_2 = arith.constant 0 : index
    %1 = vector.load %arg2[%c0_1, %c0_2] : memref<400x120xbf16, #tpu.memory_space<vmem>>, vector<400x120xbf16>
    %cst = arith.constant dense<0.000000e+00> : vector<2x120xf32>
    %2 = tpu.matmul %0, %1, %cst {dimension_numbers = #tpu.dot_dimension_numbers<[1], [0], [0], [1], [0, 0, 1, 1], [], []>} : vector<2x400xbf16>, vector<400x120xbf16>, vector<2x120xf32> -> vector<2x120xf32>
    %c0_3 = arith.constant 0 : index
    %c0_4 = arith.constant 0 : index
    %3 = vector.load %arg3[%c0_3, %c0_4] : memref<1x120xf32, #tpu.memory_space<vmem>>, vector<1x120xf32>
    %4 = vector.broadcast %3 : vector<1x120xf32> to vector<2x120xf32>
    %5 = arith.addf %2, %4 : vector<2x120xf32>
    %cst_5 = arith.constant 0.000000e+00 : f32
    %6 = vector.broadcast %cst_5 : f32 to vector<2x120xf32>
    %7 = arith.maximumf %5, %6 : vector<2x120xf32>
    %8 = arith.truncf %7 : vector<2x120xf32> to vector<2x120xbf16>
    %c0_6 = arith.constant 0 : index
    %c0_7 = arith.constant 0 : index
    %9 = vector.load %arg4[%c0_6, %c0_7] : memref<120x84xbf16, #tpu.memory_space<vmem>>, vector<120x84xbf16>
    %cst_8 = arith.constant dense<0.000000e+00> : vector<2x84xf32>
    %10 = tpu.matmul %8, %9, %cst_8 {dimension_numbers = #tpu.dot_dimension_numbers<[1], [0], [0], [1], [0, 0, 1, 1], [], []>} : vector<2x120xbf16>, vector<120x84xbf16>, vector<2x84xf32> -> vector<2x84xf32>
    %c0_9 = arith.constant 0 : index
    %c0_10 = arith.constant 0 : index
    %11 = vector.load %arg5[%c0_9, %c0_10] : memref<1x84xf32, #tpu.memory_space<vmem>>, vector<1x84xf32>
    %12 = vector.broadcast %11 : vector<1x84xf32> to vector<2x84xf32>
    %13 = arith.addf %10, %12 : vector<2x84xf32>
    %cst_11 = arith.constant 0.000000e+00 : f32
    %14 = vector.broadcast %cst_11 : f32 to vector<2x84xf32>
    %15 = arith.maximumf %13, %14 : vector<2x84xf32>
    %16 = arith.truncf %15 : vector<2x84xf32> to vector<2x84xbf16>
    %c0_12 = arith.constant 0 : index
    %c0_13 = arith.constant 0 : index
    %17 = vector.load %arg6[%c0_12, %c0_13] : memref<84x10xbf16, #tpu.memory_space<vmem>>, vector<84x10xbf16>
    %cst_14 = arith.constant dense<0.000000e+00> : vector<2x10xf32>
    %18 = tpu.matmul %16, %17, %cst_14 {dimension_numbers = #tpu.dot_dimension_numbers<[1], [0], [0], [1], [0, 0, 1, 1], [], []>} : vector<2x84xbf16>, vector<84x10xbf16>, vector<2x10xf32> -> vector<2x10xf32>
    %c0_15 = arith.constant 0 : index
    %c0_16 = arith.constant 0 : index
    %19 = vector.load %arg7[%c0_15, %c0_16] : memref<1x10xf32, #tpu.memory_space<vmem>>, vector<1x10xf32>
    %20 = vector.broadcast %19 : vector<1x10xf32> to vector<2x10xf32>
    %21 = arith.addf %18, %20 : vector<2x10xf32>
    %c0_17 = arith.constant 0 : index
    %c0_18 = arith.constant 0 : index
    %22 = vector.load %arg8[%c0_17, %c0_18] : memref<2x10xf32, #tpu.memory_space<vmem>>, vector<2x10xf32>
    tpu.vector_store %arg8[%c0_17, %c0_18], %21 {strides = array<i32>} : memref<2x10xf32, #tpu.memory_space<vmem>>, vector<2x10xf32>,
    return
  }
  func.func @transform_0(%arg0: i32) -> (i32, i32) {
    %c0_i32 = arith.constant 0 : i32
    %c0_i32_0 = arith.constant 0 : i32
    return %arg0, %c0_i32 : i32, i32
  }
  func.func @transform_1(%arg0: i32) -> (i32, i32) {
    %c0_i32 = arith.constant 0 : i32
    %c0_i32_0 = arith.constant 0 : i32
    %c0_i32_1 = arith.constant 0 : i32
    return %c0_i32, %c0_i32_0 : i32, i32
  }
  func.func @transform_2(%arg0: i32) -> (i32, i32) {
    %c0_i32 = arith.constant 0 : i32
    %c0_i32_0 = arith.constant 0 : i32
    %c0_i32_1 = arith.constant 0 : i32
    return %c0_i32, %c0_i32_0 : i32, i32
  }
  func.func @transform_3(%arg0: i32) -> (i32, i32) {
    %c0_i32 = arith.constant 0 : i32
    %c0_i32_0 = arith.constant 0 : i32
    %c0_i32_1 = arith.constant 0 : i32
    return %c0_i32, %c0_i32_0 : i32, i32
  }
  func.func @transform_4(%arg0: i32) -> (i32, i32) {
    %c0_i32 = arith.constant 0 : i32
    %c0_i32_0 = arith.constant 0 : i32
    %c0_i32_1 = arith.constant 0 : i32
    return %c0_i32, %c0_i32_0 : i32, i32
  }
  func.func @transform_5(%arg0: i32) -> (i32, i32) {
    %c0_i32 = arith.constant 0 : i32
    %c0_i32_0 = arith.constant 0 : i32
    %c0_i32_1 = arith.constant 0 : i32
    return %c0_i32, %c0_i32_0 : i32, i32
  }
  func.func @transform_6(%arg0: i32) -> (i32, i32) {
    %c0_i32 = arith.constant 0 : i32
    %c0_i32_0 = arith.constant 0 : i32
    %c0_i32_1 = arith.constant 0 : i32
    return %c0_i32, %c0_i32_0 : i32, i32
  }
  func.func @transform_7(%arg0: i32) -> (i32, i32) {
    %c0_i32 = arith.constant 0 : i32
    %c0_i32_0 = arith.constant 0 : i32
    return %arg0, %c0_i32 : i32, i32
  }
}

</mosaic_0001>

<llo_original>
// kernel: cnn_forward.4
$region0: #{cnn_forward.4}
  #allocation0 [shape = 'u32[]', space=smem, size = 0x4, offset = 0x4, fixed_abs, tag = 'smem constant byte address 0x4 - core index']
  #allocation1 [shape = 'u32[72,128]{1,0:T(1,128)}', space=vmem, size = 0x9000, scoped, tag = 'internal scratch']
  %s0 = inlined_call_operand.vmem [shape: bf16[2,14,84], index: 0, kind: input, shape index: {}]
  %s1 = inlined_call_operand.vmem [shape: bf16[10,84,80], index: 1, kind: input, shape index: {}]
  %s2 = inlined_call_operand.vmem [shape: f32[1,80], index: 2, kind: input, shape index: {}]
  %s3 = inlined_call_operand.vmem [shape: bf16[2,5,80], index: 3, kind: output, shape index: {}]
  %s4 = sld [smem:[#allocation0]]
  $region45: #{cnn_forward.4} parent=0
    _
  %s6 = ssub.s32 1, %s4
  %s7 = scalar_select 0, %s6, %s4
  loop: start=0, step=1, limit=4
  $region2: #{cnn_forward.4} parent=0 // loop_pre_header
    _
  $region3: #{cnn_forward.4} parent=0 // loop_header
    %s9 = sphi 0, %s13
    %p10 = scmp.ge.s32.totalorder %s9, 4
    %s19 = sphi 0, %s21
    %s22 = sphi 0, %s19
    %s23 = sphi 0, %s22
    %s39 = sphi 0, %s23
    %s43 = sphi 0, %s43
    %s45 = sphi 0, %s43
    %s46 = sphi 0, %s45
    %s60 = sphi 0, %s46
    %s64 = sphi 0, %s64
    %s66 = sphi 0, %s64
    %s67 = sphi 0, %s66
    %s81 = sphi 0, %s67
    %s87 = sphi 0, %s89
    %s90 = sphi 0, %s87
    %s91 = sphi 0, %s90
    %s107 = sphi 0, %s91
  $region4: #{cnn_forward.4} parent=0 // loop_header_branch
    %12 = sbr.rel (%p10) target = $region8
  $region5: #{cnn_forward.4} parent=0 // loop_body
    %s14 = ssub.s32 %s9, 1
    %s15 = ssub.s32 %s9, 2
    %s16 = sadd.s32 %s9, 1
    %s17 = ssub.s32 %s9, %s16
    %p18 = scmp.eq.s32.totalorder %s17, 0
    %s20 = sadd.s32 %s19, 1
    %s21 = scalar_select %p18, %s19, %s20
    %p24 = pneg %p18
    %p25 = scmp.eq.s32.totalorder %s9, 1
    %p26 = por %p24, %p25
    %p27 = scmp.ne.s32.totalorder %s19, %s22
    %p28 = scmp.eq.s32.totalorder %s9, 0
    %p29 = por %p27, %p28
    %p30 = scmp.ne.s32.totalorder %s19, %s22
    %p31 = scmp.eq.s32.totalorder %s14, 1
    %p32 = por %p30, %p31
    %p33 = scmp.ne.s32.totalorder %s22, %s23
    %p34 = scmp.eq.s32.totalorder %s14, 0
    %p35 = por %p33, %p34
    %p36 = scmp.ne.s32.totalorder %s22, %s23
    %p37 = scmp.eq.s32.totalorder %s15, 1
    %p38 = por %p36, %p37
    %p40 = scmp.ne.s32.totalorder %s23, %s39
    %p41 = scmp.eq.s32.totalorder %s15, 0
    %p42 = por %p40, %p41
    %s44 = sadd.s32 %s43, 1
    %p47 = scmp.eq.s32.totalorder %s9, 1
    %p48 = scmp.ne.s32.totalorder %s43, %s45
    %p49 = scmp.eq.s32.totalorder %s9, 0
    %p50 = por %p48, %p49
    %p51 = scmp.ne.s32.totalorder %s43, %s45
    %p52 = scmp.eq.s32.totalorder %s14, 1
    %p53 = por %p51, %p52
    %p54 = scmp.ne.s32.totalorder %s45, %s46
    %p55 = scmp.eq.s32.totalorder %s14, 0
    %p56 = por %p54, %p55
    %p57 = scmp.ne.s32.totalorder %s45, %s46
    %p58 = scmp.eq.s32.totalorder %s15, 1
    %p59 = por %p57, %p58
    %p61 = scmp.ne.s32.totalorder %s46, %s60
    %p62 = scmp.eq.s32.totalorder %s15, 0
    %p63 = por %p61, %p62
    %s65 = sadd.s32 %s64, 1
    %p68 = scmp.eq.s32.totalorder %s9, 1
    %p69 = scmp.ne.s32.totalorder %s64, %s66
    %p70 = scmp.eq.s32.totalorder %s9, 0
    %p71 = por %p69, %p70
    %p72 = scmp.ne.s32.totalorder %s64, %s66
    %p73 = scmp.eq.s32.totalorder %s14, 1
    %p74 = por %p72, %p73
    %p75 = scmp.ne.s32.totalorder %s66, %s67
    %p76 = scmp.eq.s32.totalorder %s14, 0
    %p77 = por %p75, %p76
    %p78 = scmp.ne.s32.totalorder %s66, %s67
    %p79 = scmp.eq.s32.totalorder %s15, 1
    %p80 = por %p78, %p79
    %p82 = scmp.ne.s32.totalorder %s67, %s81
    %p83 = scmp.eq.s32.totalorder %s15, 0
    %p84 = por %p82, %p83
    %s85 = ssub.s32 %s9, %s16
    %p86 = scmp.eq.s32.totalorder %s85, 0
    %s88 = sadd.s32 %s87, 1
    %s89 = scalar_select %p86, %s87, %s88
    %p92 = pneg %p86
    %p93 = scmp.eq.s32.totalorder %s9, 1
    %p94 = por %p92, %p93
    %p95 = scmp.ne.s32.totalorder %s87, %s90
    %p96 = scmp.eq.s32.totalorder %s9, 0
    %p97 = por %p95, %p96
    %p98 = scmp.ne.s32.totalorder %s87, %s90
    %p99 = scmp.eq.s32.totalorder %s14, 1
    %p100 = por %p98, %p99
    %p101 = scmp.ne.s32.totalorder %s90, %s91
    %p102 = scmp.eq.s32.totalorder %s14, 0
    %p103 = por %p101, %p102
    %p104 = scmp.ne.s32.totalorder %s90, %s91
    %p105 = scmp.eq.s32.totalorder %s15, 1
    %p106 = por %p104, %p105
    %p108 = scmp.ne.s32.totalorder %s91, %s107
    %p109 = scmp.eq.s32.totalorder %s15, 0
    %p110 = por %p108, %p109
    %p111 = scmp.le.s32.totalorder 1, %s9
    %p112 = scmp.lt.s32.totalorder %s9, 3
    %p113 = pnand %p111, %p112
    %p114 = pneg %p113
    // Predicated region
    $region9: #{cnn_forward.4} parent=5 // pred_check
      _
    $region10: #{cnn_forward.4} parent=5 // pred_check_branch
      %116 = sbr.rel (%p113) target = $region12
    $region11: #{cnn_forward.4} parent=5 // pred_region
      %s117 = ssub.s32 %s9, 1
      // Predicated region
      $region13: #{cnn_forward.4} parent=11 // pred_check
        %p118 = pneg %p56
      $region14: #{cnn_forward.4} parent=11 // pred_check_branch
        %120 = sbr.rel (%p118) target = $region16
      $region15: #{cnn_forward.4} parent=11 // pred_region
        _
      $region16: #{cnn_forward.4} parent=11 // pred_fallthru
        _
      // Predicated region
      $region17: #{cnn_forward.4} parent=11 // pred_check
        %p121 = pneg %p77
      $region18: #{cnn_forward.4} parent=11 // pred_check_branch
        %123 = sbr.rel (%p121) target = $region20
      $region19: #{cnn_forward.4} parent=11 // pred_region
        _
      $region20: #{cnn_forward.4} parent=11 // pred_fallthru
        _
    $region12: #{cnn_forward.4} parent=5 // pred_fallthru
      _
    %p124 = scmp.lt.s32.totalorder %s9, 2
    // Predicated region
    $region21: #{cnn_forward.4} parent=5 // pred_check
      %p125 = pneg %p124
    $region22: #{cnn_forward.4} parent=5 // pred_check_branch
      %127 = sbr.rel (%p125) target = $region24
    $region23: #{cnn_forward.4} parent=5 // pred_region
      // Predicated region
      $region25: #{cnn_forward.4} parent=23 // pred_check
        %p128 = pneg %p29
      $region26: #{cnn_forward.4} parent=23 // pred_check_branch
        %130 = sbr.rel (%p128) target = $region28
      $region27: #{cnn_forward.4} parent=23 // pred_region
        %p131 = scmp.lt.s32.totalorder %s9, 1
        %s132 = scalar_select %p131, %s9, 1
        %s133 = smul.addr %s132, 2
        %s134 = smul.addr %s133, 4
        %s135 = scalar_lea.vmem %s0, %s134
      $region28: #{cnn_forward.4} parent=23 // pred_fallthru
        _
    $region24: #{cnn_forward.4} parent=5 // pred_fallthru
      _
    %p136 = scmp.le.s32.totalorder 1, %s9
    %p137 = scmp.lt.s32.totalorder %s9, 3
    %p138 = pnand %p136, %p137
    %p139 = pneg %p138
    // Predicated region
    $region29: #{cnn_forward.4} parent=5 // pred_check
      _
    $region30: #{cnn_forward.4} parent=5 // pred_check_branch
      %141 = sbr.rel (%p138) target = $region32
    $region31: #{cnn_forward.4} parent=5 // pred_region
      %s142 = ssub.s32 %s9, 1
      %p143 = scmp.lt.s32.totalorder %s14, 1
      %s144 = scalar_select %p143, %s14, 1
      %s145 = smul.addr %s144, 2
      %s146 = smul.addr %s145, 4
      %s147 = scalar_lea.vmem %s0, %s146
      %p148 = pneg %p35
      %p149 = pneg %p32
      %p150 = pneg %p56
      %p151 = pneg %p53
      %p152 = pneg %p77
      %p153 = pneg %p74
      %p154 = pneg %p103
      %p155 = pneg %p100
      %p156 = scmp.lt.s32.totalorder %s14, 1
      %s157 = scalar_select %p156, %s14, 1
      %s158 = smul.addr %s157, 4
      %s159 = scalar_lea.vmem %s3, %s158
      %p160 = scmp.lt.s32.totalorder %s14, 1
      %s161 = scalar_select %p160, %s14, 1
      %s162 = smul.addr %s161, 2
      %s163 = smul.addr %s162, 4
      %s164 = scalar_lea.vmem %s0, %s163
      %p165 = scmp.lt.s32.totalorder %s14, 1
      %s166 = scalar_select %p165, %s14, 1
      %s167 = smul.addr %s166, 4
      %s168 = scalar_lea.vmem %s3, %s167
      %v170 = vld [vmem:[%s164] sm:$0x7]
      %v171 = vld [vmem:[%s1] sm:$0xf]
      %v172 = vld [vmem:[%s1 + $0x4] sm:$0xf]
      %v173 = vld [vmem:[%s1 + $0x8] sm:$0xf]
      %v174 = vld [vmem:[%s1 + $0xc] sm:$0xf]
      %v175 = vld [vmem:[%s1 + $0x10] sm:$0xf]
      %v176 = vld [vmem:[%s1 + $0x14] sm:$0xf]
      %v177 = vld [vmem:[%s1 + $0x18] sm:$0xf]
      %v178 = vld [vmem:[%s1 + $0x1c] sm:$0xf]
      %v179 = vld [vmem:[%s1 + $0x20] sm:$0xf]
      %v180 = vld [vmem:[%s1 + $0x24] sm:$0xf]
      %v181 = vld [vmem:[%s1 + $0x28] sm:$0x3]
      %v182 = vld [vmem:[%s164] sm:$0x8]
      %v183 = vld [vmem:[%s164 + $0x4] sm:$0x3]
      %s184 = scalar_lea.vmem %s1, 44
      %v185 = vld [vmem:[%s184] sm:$0xf]
      %v186 = vld [vmem:[%s184 + $0x4] sm:$0xf]
      %v187 = vld [vmem:[%s184 + $0x8] sm:$0xf]
      %v188 = vld [vmem:[%s184 + $0xc] sm:$0xf]
      %v189 = vld [vmem:[%s184 + $0x10] sm:$0xf]
      %v190 = vld [vmem:[%s184 + $0x14] sm:$0xf]
      %v191 = vld [vmem:[%s184 + $0x18] sm:$0xf]
      %v192 = vld [vmem:[%s184 + $0x1c] sm:$0xf]
      %v193 = vld [vmem:[%s184 + $0x20] sm:$0xf]
      %v194 = vld [vmem:[%s184 + $0x24] sm:$0xf]
      %v195 = vld [vmem:[%s184 + $0x28] sm:$0x3]
      %v198 = vunpack.c.l.b16 %v182
      %v199 = vunpack.c.l.b16 %v183
      %v200 = vpack.c.b16 %v199, %v198
      %v202 = vshrl.u32 %v200, 16
      %v204 = vrot.slane %v202, 3
      %v205 = vshll.u32 %v200, 16
      %v207 = vrot.slane %v205, 4
      %v208 = vor.u32 %v204, %v207
      %v220 = vunpack.c.l.b16 %v185
      %v221 = vunpack.c.l.b16 %v186
      %v222 = vunpack.c.l.b16 %v187
      %v223 = vunpack.c.l.b16 %v188
      %v224 = vunpack.c.l.b16 %v189
      %v225 = vunpack.c.l.b16 %v190
      %v226 = vunpack.c.l.b16 %v191
      %v227 = vunpack.c.l.b16 %v192
      %v228 = vunpack.c.l.b16 %v193
      %v229 = vunpack.c.l.b16 %v194
      %v230 = vunpack.c.l.b16 %v195
      %v231 = vpack.c.b16 %v221, %v220
      %v232 = vpack.c.b16 %v223, %v222
      %v233 = vpack.c.b16 %v225, %v224
      %v234 = vpack.c.b16 %v227, %v226
      %v235 = vpack.c.b16 %v229, %v228
      %v236 = vpack.c.b16 %v230, %v230
      %vm242 = vcmask 687104
      %v244 = vsel %vm242, %v208, 0
      %vm246 = vcmask 1041408
      %v248 = vsel %vm246, %v236, 0
      %250 = vmatpush.bf16.msra.mxu0 0
      %251 = vmatpush.bf16.msra.mxu0 0
      %252 = vmatpush.bf16.msra.mxu0 %v248
      %253 = vmatpush.bf16.msra.mxu0 %v235
      %254 = vmatpush.bf16.msra.mxu0 %v234
      %255 = vmatpush.bf16.msra.mxu0 %v233
      %256 = vmatpush.bf16.msra.mxu0 %v232
      %257 = vmatpush.bf16.msra.mxu0 %v231
      %258 = vmatmul.bf16.gmra.mxu0 %v244
      %v259 = vpop.f32.mrf.mxu0
      %v260 = vadd.f32 0.0, %v259
      %v261 = vpop.f32.mrf.mxu0
      %262 = vdwg.mxu0
      %v274 = vunpack.c.l.b16 %v171
      %v275 = vunpack.c.l.b16 %v172
      %v276 = vunpack.c.l.b16 %v173
      %v277 = vunpack.c.l.b16 %v174
      %v278 = vunpack.c.l.b16 %v175
      %v279 = vunpack.c.l.b16 %v176
      %v280 = vunpack.c.l.b16 %v177
      %v281 = vunpack.c.l.b16 %v178
      %v282 = vunpack.c.l.b16 %v179
      %v283 = vunpack.c.l.b16 %v180
      %v284 = vunpack.c.l.b16 %v181
      %v285 = vpack.c.b16 %v275, %v274
      %v286 = vpack.c.b16 %v277, %v276
      %v287 = vpack.c.b16 %v279, %v278
      %v288 = vpack.c.b16 %v281, %v280
      %v289 = vpack.c.b16 %v283, %v282
      %v290 = vpack.c.b16 %v284, %v284
      %v297 = vsel %vm242, %v170, 0
      %v300 = vsel %vm246, %v290, 0
      %302 = vmatpush.bf16.msra.mxu0 0
      %303 = vmatpush.bf16.msra.mxu0 0
      %304 = vmatpush.bf16.msra.mxu0 %v300
      %305 = vmatpush.bf16.msra.mxu0 %v289
      %306 = vmatpush.bf16.msra.mxu0 %v288
      %307 = vmatpush.bf16.msra.mxu0 %v287
      %308 = vmatpush.bf16.msra.mxu0 %v286
      %309 = vmatpush.bf16.msra.mxu0 %v285
      %310 = vmatmul.bf16.gmra.mxu0 %v297
      %v311 = vpop.f32.mrf.mxu0
      %v312 = vadd.f32 %v260, %v311
      %v313 = vpop.f32.mrf.mxu0
      %314 = vdwg.mxu0
      %s315 = scalar_lea.vmem %s1, 88
      %v316 = vld [vmem:[%s315] sm:$0xf]
      %v317 = vld [vmem:[%s315 + $0x4] sm:$0xf]
      %v318 = vld [vmem:[%s315 + $0x8] sm:$0xf]
      %v319 = vld [vmem:[%s315 + $0xc] sm:$0xf]
      %v320 = vld [vmem:[%s315 + $0x10] sm:$0xf]
      %v321 = vld [vmem:[%s315 + $0x14] sm:$0xf]
      %v322 = vld [vmem:[%s315 + $0x18] sm:$0xf]
      %v323 = vld [vmem:[%s315 + $0x1c] sm:$0xf]
      %v324 = vld [vmem:[%s315 + $0x20] sm:$0xf]
      %v325 = vld [vmem:[%s315 + $0x24] sm:$0xf]
      %v326 = vld [vmem:[%s315 + $0x28] sm:$0x3]
      %v328 = vunpack.c.l.b16 %v170
      %v329 = vpack.c.b16 %v328, %v328
      %v331 = vshrl.u32 %v329, 16
      %v333 = vshll.u32 %v329, 16
      %v335 = vrot.slane %v333, 1
      %v336 = vor.u32 %v331, %v335
      %v348 = vunpack.c.l.b16 %v316
      %v349 = vunpack.c.l.b16 %v317
      %v350 = vunpack.c.l.b16 %v318
      %v351 = vunpack.c.l.b16 %v319
      %v352 = vunpack.c.l.b16 %v320
      %v353 = vunpack.c.l.b16 %v321
      %v354 = vunpack.c.l.b16 %v322
      %v355 = vunpack.c.l.b16 %v323
      %v356 = vunpack.c.l.b16 %v324
      %v357 = vunpack.c.l.b16 %v325
      %v358 = vunpack.c.l.b16 %v326
      %v359 = vpack.c.b16 %v349, %v348
      %v360 = vpack.c.b16 %v351, %v350
      %v361 = vpack.c.b16 %v353, %v352
      %v362 = vpack.c.b16 %v355, %v354
      %v363 = vpack.c.b16 %v357, %v356
      %v364 = vpack.c.b16 %v358, %v358
      %v371 = vsel %vm242, %v336, 0
      %v374 = vsel %vm246, %v364, 0
      %376 = vmatpush.bf16.msra.mxu0 0
      %377 = vmatpush.bf16.msra.mxu0 0
      %378 = vmatpush.bf16.msra.mxu0 %v374
      %379 = vmatpush.bf16.msra.mxu0 %v363
      %380 = vmatpush.bf16.msra.mxu0 %v362
      %381 = vmatpush.bf16.msra.mxu0 %v361
      %382 = vmatpush.bf16.msra.mxu0 %v360
      %383 = vmatpush.bf16.msra.mxu0 %v359
      %384 = vmatmul.bf16.gmra.mxu0 %v371
      %v385 = vpop.f32.mrf.mxu0
      %v386 = vadd.f32 0.0, %v385
      %v387 = vpop.f32.mrf.mxu0
      %388 = vdwg.mxu0
      %v389 = vadd.f32 %v312, %v386
      %v390 = vld [vmem:[%s164 + $0x4] sm:$0x7]
      %s391 = scalar_lea.vmem %s1, 132
      %v392 = vld [vmem:[%s391] sm:$0xf]
      %v393 = vld [vmem:[%s391 + $0x4] sm:$0xf]
      %v394 = vld [vmem:[%s391 + $0x8] sm:$0xf]
      %v395 = vld [vmem:[%s391 + $0xc] sm:$0xf]
      %v396 = vld [vmem:[%s391 + $0x10] sm:$0xf]
      %v397 = vld [vmem:[%s391 + $0x14] sm:$0xf]
      %v398 = vld [vmem:[%s391 + $0x18] sm:$0xf]
      %v399 = vld [vmem:[%s391 + $0x1c] sm:$0xf]
      %v400 = vld [vmem:[%s391 + $0x20] sm:$0xf]
      %v401 = vld [vmem:[%s391 + $0x24] sm:$0xf]
      %v402 = vld [vmem:[%s391 + $0x28] sm:$0x3]
      %v414 = vunpack.c.l.b16 %v392
      %v415 = vunpack.c.l.b16 %v393
      %v416 = vunpack.c.l.b16 %v394
      %v417 = vunpack.c.l.b16 %v395
      %v418 = vunpack.c.l.b16 %v396
      %v419 = vunpack.c.l.b16 %v397
      %v420 = vunpack.c.l.b16 %v398
      %v421 = vunpack.c.l.b16 %v399
      %v422 = vunpack.c.l.b16 %v400
      %v423 = vunpack.c.l.b16 %v401
      %v424 = vunpack.c.l.b16 %v402
      %v425 = vpack.c.b16 %v415, %v414
      %v426 = vpack.c.b16 %v417, %v416
      %v427 = vpack.c.b16 %v419, %v418
      %v428 = vpack.c.b16 %v421, %v420
      %v429 = vpack.c.b16 %v423, %v422
      %v430 = vpack.c.b16 %v424, %v424
      %v437 = vsel %vm242, %v390, 0
      %v440 = vsel %vm246, %v430, 0
      %442 = vmatpush.bf16.msra.mxu0 0
      %443 = vmatpush.bf16.msra.mxu0 0
      %444 = vmatpush.bf16.msra.mxu0 %v440
      %445 = vmatpush.bf16.msra.mxu0 %v429
      %446 = vmatpush.bf16.msra.mxu0 %v428
      %447 = vmatpush.bf16.msra.mxu0 %v427
      %448 = vmatpush.bf16.msra.mxu0 %v426
      %449 = vmatpush.bf16.msra.mxu0 %v425
      %450 = vmatmul.bf16.gmra.mxu0 %v437
      %v451 = vpop.f32.mrf.mxu0
      %v452 = vadd.f32 0.0, %v451
      %v453 = vpop.f32.mrf.mxu0
      %454 = vdwg.mxu0
      %v455 = vadd.f32 %v389, %v452
      %v456 = vld [vmem:[%s164] sm:$0xe]
      %s457 = scalar_lea.vmem %s1, 176
      %v458 = vld [vmem:[%s457] sm:$0xf]
      %v459 = vld [vmem:[%s457 + $0x4] sm:$0xf]
      %v460 = vld [vmem:[%s457 + $0x8] sm:$0xf]
      %v461 = vld [vmem:[%s457 + $0xc] sm:$0xf]
      %v462 = vld [vmem:[%s457 + $0x10] sm:$0xf]
      %v463 = vld [vmem:[%s457 + $0x14] sm:$0xf]
      %v464 = vld [vmem:[%s457 + $0x18] sm:$0xf]
      %v465 = vld [vmem:[%s457 + $0x1c] sm:$0xf]
      %v466 = vld [vmem:[%s457 + $0x20] sm:$0xf]
      %v467 = vld [vmem:[%s457 + $0x24] sm:$0xf]
      %v468 = vld [vmem:[%s457 + $0x28] sm:$0x3]
      %v470 = vunpack.c.l.b16 %v456
      %v471 = vpack.c.b16 %v470, %v470
      %v472 = vrot.slane %v471, 1
      %v484 = vunpack.c.l.b16 %v458
      %v485 = vunpack.c.l.b16 %v459
      %v486 = vunpack.c.l.b16 %v460
      %v487 = vunpack.c.l.b16 %v461
      %v488 = vunpack.c.l.b16 %v462
      %v489 = vunpack.c.l.b16 %v463
      %v490 = vunpack.c.l.b16 %v464
      %v491 = vunpack.c.l.b16 %v465
      %v492 = vunpack.c.l.b16 %v466
      %v493 = vunpack.c.l.b16 %v467
      %v494 = vunpack.c.l.b16 %v468
      %v495 = vpack.c.b16 %v485, %v484
      %v496 = vpack.c.b16 %v487, %v486
      %v497 = vpack.c.b16 %v489, %v488
      %v498 = vpack.c.b16 %v491, %v490
      %v499 = vpack.c.b16 %v493, %v492
      %v500 = vpack.c.b16 %v494, %v494
      %v507 = vsel %vm242, %v472, 0
      %v510 = vsel %vm246, %v500, 0
      %512 = vmatpush.bf16.msra.mxu0 0
      %513 = vmatpush.bf16.msra.mxu0 0
      %514 = vmatpush.bf16.msra.mxu0 %v510
      %515 = vmatpush.bf16.msra.mxu0 %v499
      %516 = vmatpush.bf16.msra.mxu0 %v498
      %517 = vmatpush.bf16.msra.mxu0 %v497
      %518 = vmatpush.bf16.msra.mxu0 %v496
      %519 = vmatpush.bf16.msra.mxu0 %v495
      %520 = vmatmul.bf16.gmra.mxu0 %v507
      %v521 = vpop.f32.mrf.mxu0
      %v522 = vadd.f32 0.0, %v521
      %v523 = vpop.f32.mrf.mxu0
      %524 = vdwg.mxu0
      %v525 = vadd.f32 %v455, %v522
      %s526 = scalar_lea.vmem %s1, 220
      %v527 = vld [vmem:[%s526] sm:$0xf]
      %v528 = vld [vmem:[%s526 + $0x4] sm:$0xf]
      %v529 = vld [vmem:[%s526 + $0x8] sm:$0xf]
      %v530 = vld [vmem:[%s526 + $0xc] sm:$0xf]
      %v531 = vld [vmem:[%s526 + $0x10] sm:$0xf]
      %v532 = vld [vmem:[%s526 + $0x14] sm:$0xf]
      %v533 = vld [vmem:[%s526 + $0x18] sm:$0xf]
      %v534 = vld [vmem:[%s526 + $0x1c] sm:$0xf]
      %v535 = vld [vmem:[%s526 + $0x20] sm:$0xf]
      %v536 = vld [vmem:[%s526 + $0x24] sm:$0xf]
      %v537 = vld [vmem:[%s526 + $0x28] sm:$0x3]
      %s538 = scalar_lea.vmem %s1, 264
      %v539 = vld [vmem:[%s538] sm:$0xf]
      %v540 = vld [vmem:[%s538 + $0x4] sm:$0xf]
      %v541 = vld [vmem:[%s538 + $0x8] sm:$0xf]
      %v542 = vld [vmem:[%s538 + $0xc] sm:$0xf]
      %v543 = vld [vmem:[%s538 + $0x10] sm:$0xf]
      %v544 = vld [vmem:[%s538 + $0x14] sm:$0xf]
      %v545 = vld [vmem:[%s538 + $0x18] sm:$0xf]
      %v546 = vld [vmem:[%s538 + $0x1c] sm:$0xf]
      %v547 = vld [vmem:[%s538 + $0x20] sm:$0xf]
      %v548 = vld [vmem:[%s538 + $0x24] sm:$0xf]
      %v549 = vld [vmem:[%s538 + $0x28] sm:$0x3]
      %v561 = vunpack.c.l.b16 %v539
      %v562 = vunpack.c.l.b16 %v540
      %v563 = vunpack.c.l.b16 %v541
      %v564 = vunpack.c.l.b16 %v542
      %v565 = vunpack.c.l.b16 %v543
      %v566 = vunpack.c.l.b16 %v544
      %v567 = vunpack.c.l.b16 %v545
      %v568 = vunpack.c.l.b16 %v546
      %v569 = vunpack.c.l.b16 %v547
      %v570 = vunpack.c.l.b16 %v548
      %v571 = vunpack.c.l.b16 %v549
      %v572 = vpack.c.b16 %v562, %v561
      %v573 = vpack.c.b16 %v564, %v563
      %v574 = vpack.c.b16 %v566, %v565
      %v575 = vpack.c.b16 %v568, %v567
      %v576 = vpack.c.b16 %v570, %v569
      %v577 = vpack.c.b16 %v571, %v571
      %v584 = vsel %vm246, %v577, 0
      %586 = vmatpush.bf16.msra.mxu0 0
      %587 = vmatpush.bf16.msra.mxu0 0
      %588 = vmatpush.bf16.msra.mxu0 %v584
      %589 = vmatpush.bf16.msra.mxu0 %v576
      %590 = vmatpush.bf16.msra.mxu0 %v575
      %591 = vmatpush.bf16.msra.mxu0 %v574
      %592 = vmatpush.bf16.msra.mxu0 %v573
      %593 = vmatpush.bf16.msra.mxu0 %v572
      %594 = vmatmul.bf16.gmra.mxu0 %v244
      %v595 = vpop.f32.mrf.mxu0
      %v596 = vadd.f32 0.0, %v595
      %v597 = vpop.f32.mrf.mxu0
      %598 = vdwg.mxu0
      %v610 = vunpack.c.l.b16 %v527
      %v611 = vunpack.c.l.b16 %v528
      %v612 = vunpack.c.l.b16 %v529
      %v613 = vunpack.c.l.b16 %v530
      %v614 = vunpack.c.l.b16 %v531
      %v615 = vunpack.c.l.b16 %v532
      %v616 = vunpack.c.l.b16 %v533
      %v617 = vunpack.c.l.b16 %v534
      %v618 = vunpack.c.l.b16 %v535
      %v619 = vunpack.c.l.b16 %v536
      %v620 = vunpack.c.l.b16 %v537
      %v621 = vpack.c.b16 %v611, %v610
      %v622 = vpack.c.b16 %v613, %v612
      %v623 = vpack.c.b16 %v615, %v614
      %v624 = vpack.c.b16 %v617, %v616
      %v625 = vpack.c.b16 %v619, %v618
      %v626 = vpack.c.b16 %v620, %v620
      %v633 = vsel %vm246, %v626, 0
      %635 = vmatpush.bf16.msra.mxu0 0
      %636 = vmatpush.bf16.msra.mxu0 0
      %637 = vmatpush.bf16.msra.mxu0 %v633
      %638 = vmatpush.bf16.msra.mxu0 %v625
      %639 = vmatpush.bf16.msra.mxu0 %v624
      %640 = vmatpush.bf16.msra.mxu0 %v623
      %641 = vmatpush.bf16.msra.mxu0 %v622
      %642 = vmatpush.bf16.msra.mxu0 %v621
      %643 = vmatmul.bf16.gmra.mxu0 %v297
      %v644 = vpop.f32.mrf.mxu0
      %v645 = vadd.f32 %v596, %v644
      %v646 = vpop.f32.mrf.mxu0
      %647 = vdwg.mxu0
      %s648 = scalar_lea.vmem %s1, 308
      %v649 = vld [vmem:[%s648] sm:$0xf]
      %v650 = vld [vmem:[%s648 + $0x4] sm:$0xf]
      %v651 = vld [vmem:[%s648 + $0x8] sm:$0xf]
      %v652 = vld [vmem:[%s648 + $0xc] sm:$0xf]
      %v653 = vld [vmem:[%s648 + $0x10] sm:$0xf]
      %v654 = vld [vmem:[%s648 + $0x14] sm:$0xf]
      %v655 = vld [vmem:[%s648 + $0x18] sm:$0xf]
      %v656 = vld [vmem:[%s648 + $0x1c] sm:$0xf]
      %v657 = vld [vmem:[%s648 + $0x20] sm:$0xf]
      %v658 = vld [vmem:[%s648 + $0x24] sm:$0xf]
      %v659 = vld [vmem:[%s648 + $0x28] sm:$0x3]
      %v671 = vunpack.c.l.b16 %v649
      %v672 = vunpack.c.l.b16 %v650
      %v673 = vunpack.c.l.b16 %v651
      %v674 = vunpack.c.l.b16 %v652
      %v675 = vunpack.c.l.b16 %v653
      %v676 = vunpack.c.l.b16 %v654
      %v677 = vunpack.c.l.b16 %v655
      %v678 = vunpack.c.l.b16 %v656
      %v679 = vunpack.c.l.b16 %v657
      %v680 = vunpack.c.l.b16 %v658
      %v681 = vunpack.c.l.b16 %v659
      %v682 = vpack.c.b16 %v672, %v671
      %v683 = vpack.c.b16 %v674, %v673
      %v684 = vpack.c.b16 %v676, %v675
      %v685 = vpack.c.b16 %v678, %v677
      %v686 = vpack.c.b16 %v680, %v679
      %v687 = vpack.c.b16 %v681, %v681
      %v694 = vsel %vm246, %v687, 0
      %696 = vmatpush.bf16.msra.mxu0 0
      %697 = vmatpush.bf16.msra.mxu0 0
      %698 = vmatpush.bf16.msra.mxu0 %v694
      %699 = vmatpush.bf16.msra.mxu0 %v686
      %700 = vmatpush.bf16.msra.mxu0 %v685
      %701 = vmatpush.bf16.msra.mxu0 %v684
      %702 = vmatpush.bf16.msra.mxu0 %v683
      %703 = vmatpush.bf16.msra.mxu0 %v682
      %704 = vmatmul.bf16.gmra.mxu0 %v371
      %v705 = vpop.f32.mrf.mxu0
      %v706 = vadd.f32 0.0, %v705
      %v707 = vpop.f32.mrf.mxu0
      %708 = vdwg.mxu0
      %v709 = vadd.f32 %v645, %v706
      %s710 = scalar_lea.vmem %s1, 352
      %v711 = vld [vmem:[%s710] sm:$0xf]
      %v712 = vld [vmem:[%s710 + $0x4] sm:$0xf]
      %v713 = vld [vmem:[%s710 + $0x8] sm:$0xf]
      %v714 = vld [vmem:[%s710 + $0xc] sm:$0xf]
      %v715 = vld [vmem:[%s710 + $0x10] sm:$0xf]
      %v716 = vld [vmem:[%s710 + $0x14] sm:$0xf]
      %v717 = vld [vmem:[%s710 + $0x18] sm:$0xf]
      %v718 = vld [vmem:[%s710 + $0x1c] sm:$0xf]
      %v719 = vld [vmem:[%s710 + $0x20] sm:$0xf]
      %v720 = vld [vmem:[%s710 + $0x24] sm:$0xf]
      %v721 = vld [vmem:[%s710 + $0x28] sm:$0x3]
      %v733 = vunpack.c.l.b16 %v711
      %v734 = vunpack.c.l.b16 %v712
      %v735 = vunpack.c.l.b16 %v713
      %v736 = vunpack.c.l.b16 %v714
      %v737 = vunpack.c.l.b16 %v715
      %v738 = vunpack.c.l.b16 %v716
      %v739 = vunpack.c.l.b16 %v717
      %v740 = vunpack.c.l.b16 %v718
      %v741 = vunpack.c.l.b16 %v719
      %v742 = vunpack.c.l.b16 %v720
      %v743 = vunpack.c.l.b16 %v721
      %v744 = vpack.c.b16 %v734, %v733
      %v745 = vpack.c.b16 %v736, %v735
      %v746 = vpack.c.b16 %v738, %v737
      %v747 = vpack.c.b16 %v740, %v739
      %v748 = vpack.c.b16 %v742, %v741
      %v749 = vpack.c.b16 %v743, %v743
      %v756 = vsel %vm246, %v749, 0
      %758 = vmatpush.bf16.msra.mxu0 0
      %759 = vmatpush.bf16.msra.mxu0 0
      %760 = vmatpush.bf16.msra.mxu0 %v756
      %761 = vmatpush.bf16.msra.mxu0 %v748
      %762 = vmatpush.bf16.msra.mxu0 %v747
      %763 = vmatpush.bf16.msra.mxu0 %v746
      %764 = vmatpush.bf16.msra.mxu0 %v745
      %765 = vmatpush.bf16.msra.mxu0 %v744
      %766 = vmatmul.bf16.gmra.mxu0 %v437
      %v767 = vpop.f32.mrf.mxu0
      %v768 = vadd.f32 0.0, %v767
      %v769 = vpop.f32.mrf.mxu0
      %770 = vdwg.mxu0
      %v771 = vadd.f32 %v709, %v768
      %s772 = scalar_lea.vmem %s1, 396
      %v773 = vld [vmem:[%s772] sm:$0xf]
      %v774 = vld [vmem:[%s772 + $0x4] sm:$0xf]
      %v775 = vld [vmem:[%s772 + $0x8] sm:$0xf]
      %v776 = vld [vmem:[%s772 + $0xc] sm:$0xf]
      %v777 = vld [vmem:[%s772 + $0x10] sm:$0xf]
      %v778 = vld [vmem:[%s772 + $0x14] sm:$0xf]
      %v779 = vld [vmem:[%s772 + $0x18] sm:$0xf]
      %v780 = vld [vmem:[%s772 + $0x1c] sm:$0xf]
      %v781 = vld [vmem:[%s772 + $0x20] sm:$0xf]
      %v782 = vld [vmem:[%s772 + $0x24] sm:$0xf]
      %v783 = vld [vmem:[%s772 + $0x28] sm:$0x3]
      %v795 = vunpack.c.l.b16 %v773
      %v796 = vunpack.c.l.b16 %v774
      %v797 = vunpack.c.l.b16 %v775
      %v798 = vunpack.c.l.b16 %v776
      %v799 = vunpack.c.l.b16 %v777
      %v800 = vunpack.c.l.b16 %v778
      %v801 = vunpack.c.l.b16 %v779
      %v802 = vunpack.c.l.b16 %v780
      %v803 = vunpack.c.l.b16 %v781
      %v804 = vunpack.c.l.b16 %v782
      %v805 = vunpack.c.l.b16 %v783
      %v806 = vpack.c.b16 %v796, %v795
      %v807 = vpack.c.b16 %v798, %v797
      %v808 = vpack.c.b16 %v800, %v799
      %v809 = vpack.c.b16 %v802, %v801
      %v810 = vpack.c.b16 %v804, %v803
      %v811 = vpack.c.b16 %v805, %v805
      %v818 = vsel %vm246, %v811, 0
      %820 = vmatpush.bf16.msra.mxu0 0
      %821 = vmatpush.bf16.msra.mxu0 0
      %822 = vmatpush.bf16.msra.mxu0 %v818
      %823 = vmatpush.bf16.msra.mxu0 %v810
      %824 = vmatpush.bf16.msra.mxu0 %v809
      %825 = vmatpush.bf16.msra.mxu0 %v808
      %826 = vmatpush.bf16.msra.mxu0 %v807
      %827 = vmatpush.bf16.msra.mxu0 %v806
      %828 = vmatmul.bf16.gmra.mxu0 %v507
      %v829 = vpop.f32.mrf.mxu0
      %v830 = vadd.f32 0.0, %v829
      %v831 = vpop.f32.mrf.mxu0
      %832 = vdwg.mxu0
      %v833 = vadd.f32 %v771, %v830
      %v834 = vmax.f32 %v525, %v833
      %835 = vmatpush.bf16.msra.mxu0 0
      %836 = vmatpush.bf16.msra.mxu0 0
      %837 = vmatpush.bf16.msra.mxu0 %v248
      %838 = vmatpush.bf16.msra.mxu0 %v235
      %839 = vmatpush.bf16.msra.mxu0 %v234
      %840 = vmatpush.bf16.msra.mxu0 %v233
      %841 = vmatpush.bf16.msra.mxu0 %v232
      %842 = vmatpush.bf16.msra.mxu0 %v231
      %843 = vmatmul.bf16.gmra.mxu0 %v371
      %v844 = vpop.f32.mrf.mxu0
      %v845 = vadd.f32 0.0, %v844
      %v846 = vpop.f32.mrf.mxu0
      %847 = vdwg.mxu0
      %848 = vmatpush.bf16.msra.mxu0 0
      %849 = vmatpush.bf16.msra.mxu0 0
      %850 = vmatpush.bf16.msra.mxu0 %v300
      %851 = vmatpush.bf16.msra.mxu0 %v289
      %852 = vmatpush.bf16.msra.mxu0 %v288
      %853 = vmatpush.bf16.msra.mxu0 %v287
      %854 = vmatpush.bf16.msra.mxu0 %v286
      %855 = vmatpush.bf16.msra.mxu0 %v285
      %856 = vmatmul.bf16.gmra.mxu0 %v244
      %v857 = vpop.f32.mrf.mxu0
      %v858 = vadd.f32 %v845, %v857
      %v859 = vpop.f32.mrf.mxu0
      %860 = vdwg.mxu0
      %861 = vmatpush.bf16.msra.mxu0 0
      %862 = vmatpush.bf16.msra.mxu0 0
      %863 = vmatpush.bf16.msra.mxu0 %v374
      %864 = vmatpush.bf16.msra.mxu0 %v363
      %865 = vmatpush.bf16.msra.mxu0 %v362
      %866 = vmatpush.bf16.msra.mxu0 %v361
      %867 = vmatpush.bf16.msra.mxu0 %v360
      %868 = vmatpush.bf16.msra.mxu0 %v359
      %869 = vmatmul.bf16.gmra.mxu0 %v437
      %v870 = vpop.f32.mrf.mxu0
      %v871 = vadd.f32 0.0, %v870
      %v872 = vpop.f32.mrf.mxu0
      %873 = vdwg.mxu0
      %v874 = vadd.f32 %v858, %v871
      %875 = vmatpush.bf16.msra.mxu0 0
      %876 = vmatpush.bf16.msra.mxu0 0
      %877 = vmatpush.bf16.msra.mxu0 %v440
      %878 = vmatpush.bf16.msra.mxu0 %v429
      %879 = vmatpush.bf16.msra.mxu0 %v428
      %880 = vmatpush.bf16.msra.mxu0 %v427
      %881 = vmatpush.bf16.msra.mxu0 %v426
      %882 = vmatpush.bf16.msra.mxu0 %v425
      %883 = vmatmul.bf16.gmra.mxu0 %v507
      %v884 = vpop.f32.mrf.mxu0
      %v885 = vadd.f32 0.0, %v884
      %v886 = vpop.f32.mrf.mxu0
      %887 = vdwg.mxu0
      %v888 = vadd.f32 %v874, %v885
      %v890 = vunpack.c.l.b16 %v390
      %v891 = vpack.c.b16 %v890, %v890
      %v893 = vshrl.u32 %v891, 16
      %v895 = vshll.u32 %v891, 16
      %v897 = vrot.slane %v895, 1
      %v898 = vor.u32 %v893, %v897
      %v900 = vsel %vm242, %v898, 0
      %902 = vmatpush.bf16.msra.mxu0 0
      %903 = vmatpush.bf16.msra.mxu0 0
      %904 = vmatpush.bf16.msra.mxu0 %v510
      %905 = vmatpush.bf16.msra.mxu0 %v499
      %906 = vmatpush.bf16.msra.mxu0 %v498
      %907 = vmatpush.bf16.msra.mxu0 %v497
      %908 = vmatpush.bf16.msra.mxu0 %v496
      %909 = vmatpush.bf16.msra.mxu0 %v495
      %910 = vmatmul.bf16.gmra.mxu0 %v900
      %v911 = vpop.f32.mrf.mxu0
      %v912 = vadd.f32 0.0, %v911
      %v913 = vpop.f32.mrf.mxu0
      %914 = vdwg.mxu0
      %v915 = vadd.f32 %v888, %v912
      %v916 = vmax.f32 %v834, %v915
      %917 = vmatpush.bf16.msra.mxu0 0
      %918 = vmatpush.bf16.msra.mxu0 0
      %919 = vmatpush.bf16.msra.mxu0 %v584
      %920 = vmatpush.bf16.msra.mxu0 %v576
      %921 = vmatpush.bf16.msra.mxu0 %v575
      %922 = vmatpush.bf16.msra.mxu0 %v574
      %923 = vmatpush.bf16.msra.mxu0 %v573
      %924 = vmatpush.bf16.msra.mxu0 %v572
      %925 = vmatmul.bf16.gmra.mxu0 %v371
      %v926 = vpop.f32.mrf.mxu0
      %v927 = vadd.f32 0.0, %v926
      %v928 = vpop.f32.mrf.mxu0
      %929 = vdwg.mxu0
      %930 = vmatpush.bf16.msra.mxu0 0
      %931 = vmatpush.bf16.msra.mxu0 0
      %932 = vmatpush.bf16.msra.mxu0 %v633
      %933 = vmatpush.bf16.msra.mxu0 %v625
      %934 = vmatpush.bf16.msra.mxu0 %v624
      %935 = vmatpush.bf16.msra.mxu0 %v623
      %936 = vmatpush.bf16.msra.mxu0 %v622
      %937 = vmatpush.bf16.msra.mxu0 %v621
      %938 = vmatmul.bf16.gmra.mxu0 %v244
      %v939 = vpop.f32.mrf.mxu0
      %v940 = vadd.f32 %v927, %v939
      %v941 = vpop.f32.mrf.mxu0
      %942 = vdwg.mxu0
      %943 = vmatpush.bf16.msra.mxu0 0
      %944 = vmatpush.bf16.msra.mxu0 0
      %945 = vmatpush.bf16.msra.mxu0 %v694
      %946 = vmatpush.bf16.msra.mxu0 %v686
      %947 = vmatpush.bf16.msra.mxu0 %v685
      %948 = vmatpush.bf16.msra.mxu0 %v684
      %949 = vmatpush.bf16.msra.mxu0 %v683
      %950 = vmatpush.bf16.msra.mxu0 %v682
      %951 = vmatmul.bf16.gmra.mxu0 %v437
      %v952 = vpop.f32.mrf.mxu0
      %v953 = vadd.f32 0.0, %v952
      %v954 = vpop.f32.mrf.mxu0
      %955 = vdwg.mxu0
      %v956 = vadd.f32 %v940, %v953
      %957 = vmatpush.bf16.msra.mxu0 0
      %958 = vmatpush.bf16.msra.mxu0 0
      %959 = vmatpush.bf16.msra.mxu0 %v756
      %960 = vmatpush.bf16.msra.mxu0 %v748
      %961 = vmatpush.bf16.msra.mxu0 %v747
      %962 = vmatpush.bf16.msra.mxu0 %v746
      %963 = vmatpush.bf16.msra.mxu0 %v745
      %964 = vmatpush.bf16.msra.mxu0 %v744
      %965 = vmatmul.bf16.gmra.mxu0 %v507
      %v966 = vpop.f32.mrf.mxu0
      %v967 = vadd.f32 0.0, %v966
      %v968 = vpop.f32.mrf.mxu0
      %969 = vdwg.mxu0
      %v970 = vadd.f32 %v956, %v967
      %971 = vmatpush.bf16.msra.mxu0 0
      %972 = vmatpush.bf16.msra.mxu0 0
      %973 = vmatpush.bf16.msra.mxu0 %v818
      %974 = vmatpush.bf16.msra.mxu0 %v810
      %975 = vmatpush.bf16.msra.mxu0 %v809
      %976 = vmatpush.bf16.msra.mxu0 %v808
      %977 = vmatpush.bf16.msra.mxu0 %v807
      %978 = vmatpush.bf16.msra.mxu0 %v806
      %979 = vmatmul.bf16.gmra.mxu0 %v900
      %v980 = vpop.f32.mrf.mxu0
      %v981 = vadd.f32 0.0, %v980
      %v982 = vpop.f32.mrf.mxu0
      %983 = vdwg.mxu0
      %v984 = vadd.f32 %v970, %v981
      %v985 = vmax.f32 %v916, %v984
      %v986 = vld [vmem:[%s2] sm:$0x1]
      %v988 = vperm.slane %v986, 0
      %v990 = vadd.f32 %v985, %v988
      %v991 = vmax.f32 %v990, 0.0
      %v992 = vpack.c.bf16 %v991, %v991
      %vm993 = vcmask 649216
      %vm994 = vsmask.f32 2304
      %vm995 = vmand %vm993, %vm994
      %v996 = vld [vmem:[%s168] sm:$0x7]
      %v997 = vsel %vm995, %v992, %v996
      %998 = vst [vmem:[%s168] sm:$0x7] %v997
      %p999 = scmp.lt.s32.totalorder %s14, 1
      %s1000 = scalar_select %p999, %s14, 1
      %s1001 = smul.addr %s1000, 4
      %s1002 = scalar_lea.vmem %s3, %s1001
      // Predicated region
      $region33: #{cnn_forward.4} parent=31 // pred_check
        %p1003 = pneg %p100
      $region34: #{cnn_forward.4} parent=31 // pred_check_branch
        %1005 = sbr.rel (%p1003) target = $region36
      $region35: #{cnn_forward.4} parent=31 // pred_region
        _
      $region36: #{cnn_forward.4} parent=31 // pred_fallthru
        _
    $region32: #{cnn_forward.4} parent=5 // pred_fallthru
      _
    %p1006 = scmp.le.s32.totalorder 2, %s9
    // Predicated region
    $region37: #{cnn_forward.4} parent=5 // pred_check
      %p1007 = pneg %p1006
    $region38: #{cnn_forward.4} parent=5 // pred_check_branch
      %1009 = sbr.rel (%p1007) target = $region40
    $region39: #{cnn_forward.4} parent=5 // pred_region
      %s1010 = ssub.s32 %s9, 2
      // Predicated region
      $region41: #{cnn_forward.4} parent=39 // pred_check
        %p1011 = pneg %p106
      $region42: #{cnn_forward.4} parent=39 // pred_check_branch
        %1013 = sbr.rel (%p1011) target = $region44
      $region43: #{cnn_forward.4} parent=39 // pred_region
        %p1014 = scmp.lt.s32.totalorder %s15, 1
        %s1015 = scalar_select %p1014, %s15, 1
        %s1016 = smul.addr %s1015, 4
        %s1017 = scalar_lea.vmem %s3, %s1016
      $region44: #{cnn_forward.4} parent=39 // pred_fallthru
        _
    $region40: #{cnn_forward.4} parent=5 // pred_fallthru
      _
  $region6: #{cnn_forward.4} parent=0 // loop_footer
    %s13 = sadd.s32 1, %s9
  $region7: #{cnn_forward.4} parent=0 // loop_footer_branch
    %8 = sbr.rel target = $region3
  $region8: #{cnn_forward.4} parent=0 // loop_exit
    _

// kernel: cnn_forward.3
$region0: #{cnn_forward.3}
  #allocation0 [shape = 'u32[]', space=smem, size = 0x4, offset = 0x4, fixed_abs, tag = 'smem constant byte address 0x4 - core index']
  #allocation1 [shape = 'u32[72,128]{1,0:T(1,128)}', space=vmem, size = 0x9000, scoped, tag = 'internal scratch']
  %s0 = inlined_call_operand.vmem [shape: bf16[2,32,96], index: 0, kind: input, shape index: {}]
  %s1 = inlined_call_operand.vmem [shape: bf16[10,96,84], index: 1, kind: input, shape index: {}]
  %s2 = inlined_call_operand.vmem [shape: f32[1,84], index: 2, kind: input, shape index: {}]
  %s3 = inlined_call_operand.vmem [shape: bf16[2,14,84], index: 3, kind: output, shape index: {}]
  %s4 = sld [smem:[#allocation0]]
  $region45: #{cnn_forward.3} parent=0
    _
  %s6 = ssub.s32 1, %s4
  %s7 = scalar_select 0, %s6, %s4
  loop: start=0, step=1, limit=4
  $region2: #{cnn_forward.3} parent=0 // loop_pre_header
    _
  $region3: #{cnn_forward.3} parent=0 // loop_header
    %s9 = sphi 0, %s13
    %p10 = scmp.ge.s32.totalorder %s9, 4
    %s19 = sphi 0, %s21
    %s22 = sphi 0, %s19
    %s23 = sphi 0, %s22
    %s39 = sphi 0, %s23
    %s43 = sphi 0, %s43
    %s45 = sphi 0, %s43
    %s46 = sphi 0, %s45
    %s60 = sphi 0, %s46
    %s64 = sphi 0, %s64
    %s66 = sphi 0, %s64
    %s67 = sphi 0, %s66
    %s81 = sphi 0, %s67
    %s87 = sphi 0, %s89
    %s90 = sphi 0, %s87
    %s91 = sphi 0, %s90
    %s107 = sphi 0, %s91
  $region4: #{cnn_forward.3} parent=0 // loop_header_branch
    %12 = sbr.rel (%p10) target = $region8
  $region5: #{cnn_forward.3} parent=0 // loop_body
    %s14 = ssub.s32 %s9, 1
    %s15 = ssub.s32 %s9, 2
    %s16 = sadd.s32 %s9, 1
    %s17 = ssub.s32 %s9, %s16
    %p18 = scmp.eq.s32.totalorder %s17, 0
    %s20 = sadd.s32 %s19, 1
    %s21 = scalar_select %p18, %s19, %s20
    %p24 = pneg %p18
    %p25 = scmp.eq.s32.totalorder %s9, 1
    %p26 = por %p24, %p25
    %p27 = scmp.ne.s32.totalorder %s19, %s22
    %p28 = scmp.eq.s32.totalorder %s9, 0
    %p29 = por %p27, %p28
    %p30 = scmp.ne.s32.totalorder %s19, %s22
    %p31 = scmp.eq.s32.totalorder %s14, 1
    %p32 = por %p30, %p31
    %p33 = scmp.ne.s32.totalorder %s22, %s23
    %p34 = scmp.eq.s32.totalorder %s14, 0
    %p35 = por %p33, %p34
    %p36 = scmp.ne.s32.totalorder %s22, %s23
    %p37 = scmp.eq.s32.totalorder %s15, 1
    %p38 = por %p36, %p37
    %p40 = scmp.ne.s32.totalorder %s23, %s39
    %p41 = scmp.eq.s32.totalorder %s15, 0
    %p42 = por %p40, %p41
    %s44 = sadd.s32 %s43, 1
    %p47 = scmp.eq.s32.totalorder %s9, 1
    %p48 = scmp.ne.s32.totalorder %s43, %s45
    %p49 = scmp.eq.s32.totalorder %s9, 0
    %p50 = por %p48, %p49
    %p51 = scmp.ne.s32.totalorder %s43, %s45
    %p52 = scmp.eq.s32.totalorder %s14, 1
    %p53 = por %p51, %p52
    %p54 = scmp.ne.s32.totalorder %s45, %s46
    %p55 = scmp.eq.s32.totalorder %s14, 0
    %p56 = por %p54, %p55
    %p57 = scmp.ne.s32.totalorder %s45, %s46
    %p58 = scmp.eq.s32.totalorder %s15, 1
    %p59 = por %p57, %p58
    %p61 = scmp.ne.s32.totalorder %s46, %s60
    %p62 = scmp.eq.s32.totalorder %s15, 0
    %p63 = por %p61, %p62
    %s65 = sadd.s32 %s64, 1
    %p68 = scmp.eq.s32.totalorder %s9, 1
    %p69 = scmp.ne.s32.totalorder %s64, %s66
    %p70 = scmp.eq.s32.totalorder %s9, 0
    %p71 = por %p69, %p70
    %p72 = scmp.ne.s32.totalorder %s64, %s66
    %p73 = scmp.eq.s32.totalorder %s14, 1
    %p74 = por %p72, %p73
    %p75 = scmp.ne.s32.totalorder %s66, %s67
    %p76 = scmp.eq.s32.totalorder %s14, 0
    %p77 = por %p75, %p76
    %p78 = scmp.ne.s32.totalorder %s66, %s67
    %p79 = scmp.eq.s32.totalorder %s15, 1
    %p80 = por %p78, %p79
    %p82 = scmp.ne.s32.totalorder %s67, %s81
    %p83 = scmp.eq.s32.totalorder %s15, 0
    %p84 = por %p82, %p83
    %s85 = ssub.s32 %s9, %s16
    %p86 = scmp.eq.s32.totalorder %s85, 0
    %s88 = sadd.s32 %s87, 1
    %s89 = scalar_select %p86, %s87, %s88
    %p92 = pneg %p86
    %p93 = scmp.eq.s32.totalorder %s9, 1
    %p94 = por %p92, %p93
    %p95 = scmp.ne.s32.totalorder %s87, %s90
    %p96 = scmp.eq.s32.totalorder %s9, 0
    %p97 = por %p95, %p96
    %p98 = scmp.ne.s32.totalorder %s87, %s90
    %p99 = scmp.eq.s32.totalorder %s14, 1
    %p100 = por %p98, %p99
    %p101 = scmp.ne.s32.totalorder %s90, %s91
    %p102 = scmp.eq.s32.totalorder %s14, 0
    %p103 = por %p101, %p102
    %p104 = scmp.ne.s32.totalorder %s90, %s91
    %p105 = scmp.eq.s32.totalorder %s15, 1
    %p106 = por %p104, %p105
    %p108 = scmp.ne.s32.totalorder %s91, %s107
    %p109 = scmp.eq.s32.totalorder %s15, 0
    %p110 = por %p108, %p109
    %p111 = scmp.le.s32.totalorder 1, %s9
    %p112 = scmp.lt.s32.totalorder %s9, 3
    %p113 = pnand %p111, %p112
    %p114 = pneg %p113
    // Predicated region
    $region9: #{cnn_forward.3} parent=5 // pred_check
      _
    $region10: #{cnn_forward.3} parent=5 // pred_check_branch
      %116 = sbr.rel (%p113) target = $region12
    $region11: #{cnn_forward.3} parent=5 // pred_region
      %s117 = ssub.s32 %s9, 1
      // Predicated region
      $region13: #{cnn_forward.3} parent=11 // pred_check
        %p118 = pneg %p56
      $region14: #{cnn_forward.3} parent=11 // pred_check_branch
        %120 = sbr.rel (%p118) target = $region16
      $region15: #{cnn_forward.3} parent=11 // pred_region
        _
      $region16: #{cnn_forward.3} parent=11 // pred_fallthru
        _
      // Predicated region
      $region17: #{cnn_forward.3} parent=11 // pred_check
        %p121 = pneg %p77
      $region18: #{cnn_forward.3} parent=11 // pred_check_branch
        %123 = sbr.rel (%p121) target = $region20
      $region19: #{cnn_forward.3} parent=11 // pred_region
        _
      $region20: #{cnn_forward.3} parent=11 // pred_fallthru
        _
    $region12: #{cnn_forward.3} parent=5 // pred_fallthru
      _
    %p124 = scmp.lt.s32.totalorder %s9, 2
    // Predicated region
    $region21: #{cnn_forward.3} parent=5 // pred_check
      %p125 = pneg %p124
    $region22: #{cnn_forward.3} parent=5 // pred_check_branch
      %127 = sbr.rel (%p125) target = $region24
    $region23: #{cnn_forward.3} parent=5 // pred_region
      // Predicated region
      $region25: #{cnn_forward.3} parent=23 // pred_check
        %p128 = pneg %p29
      $region26: #{cnn_forward.3} parent=23 // pred_check_branch
        %130 = sbr.rel (%p128) target = $region28
      $region27: #{cnn_forward.3} parent=23 // pred_region
        %p131 = scmp.lt.s32.totalorder %s9, 1
        %s132 = scalar_select %p131, %s9, 1
        %s133 = smul.addr %s132, 4
        %s134 = smul.addr %s133, 4
        %s135 = scalar_lea.vmem %s0, %s134
      $region28: #{cnn_forward.3} parent=23 // pred_fallthru
        _
    $region24: #{cnn_forward.3} parent=5 // pred_fallthru
      _
    %p136 = scmp.le.s32.totalorder 1, %s9
    %p137 = scmp.lt.s32.totalorder %s9, 3
    %p138 = pnand %p136, %p137
    %p139 = pneg %p138
    // Predicated region
    $region29: #{cnn_forward.3} parent=5 // pred_check
      _
    $region30: #{cnn_forward.3} parent=5 // pred_check_branch
      %141 = sbr.rel (%p138) target = $region32
    $region31: #{cnn_forward.3} parent=5 // pred_region
      %s142 = ssub.s32 %s9, 1
      %p143 = scmp.lt.s32.totalorder %s14, 1
      %s144 = scalar_select %p143, %s14, 1
      %s145 = smul.addr %s144, 4
      %s146 = smul.addr %s145, 4
      %s147 = scalar_lea.vmem %s0, %s146
      %p148 = pneg %p35
      %p149 = pneg %p32
      %p150 = pneg %p56
      %p151 = pneg %p53
      %p152 = pneg %p77
      %p153 = pneg %p74
      %p154 = pneg %p103
      %p155 = pneg %p100
      %p156 = scmp.lt.s32.totalorder %s14, 1
      %s157 = scalar_select %p156, %s14, 1
      %s158 = smul.addr %s157, 2
      %s159 = smul.addr %s158, 4
      %s160 = scalar_lea.vmem %s3, %s159
      %p161 = scmp.lt.s32.totalorder %s14, 1
      %s162 = scalar_select %p161, %s14, 1
      %s163 = smul.addr %s162, 4
      %s164 = smul.addr %s163, 4
      %s165 = scalar_lea.vmem %s0, %s164
      %p166 = scmp.lt.s32.totalorder %s14, 1
      %s167 = scalar_select %p166, %s14, 1
      %s168 = smul.addr %s167, 2
      %s169 = smul.addr %s168, 4
      %s170 = scalar_lea.vmem %s3, %s169
      %v172 = vld [vmem:[%s165] sm:$0xf]
      %v173 = vld [vmem:[%s165 + $0x4] sm:$0x7]
      %v174 = vld [vmem:[%s1] sm:$0xf]
      %v175 = vld [vmem:[%s1 + $0x4] sm:$0xf]
      %v176 = vld [vmem:[%s1 + $0x8] sm:$0xf]
      %v177 = vld [vmem:[%s1 + $0xc] sm:$0xf]
      %v178 = vld [vmem:[%s1 + $0x10] sm:$0xf]
      %v179 = vld [vmem:[%s1 + $0x14] sm:$0xf]
      %v180 = vld [vmem:[%s1 + $0x18] sm:$0xf]
      %v181 = vld [vmem:[%s1 + $0x1c] sm:$0xf]
      %v182 = vld [vmem:[%s1 + $0x20] sm:$0xf]
      %v183 = vld [vmem:[%s1 + $0x24] sm:$0xf]
      %v184 = vld [vmem:[%s1 + $0x28] sm:$0xf]
      %v185 = vld [vmem:[%s1 + $0x2c] sm:$0xf]
      %v186 = vld [vmem:[%s165 + $0x8] sm:$0xf]
      %v187 = vld [vmem:[%s165 + $0xc] sm:$0x7]
      %s188 = scalar_lea.vmem %s1, 48
      %v189 = vld [vmem:[%s188] sm:$0xf]
      %v190 = vld [vmem:[%s188 + $0x4] sm:$0xf]
      %v191 = vld [vmem:[%s188 + $0x8] sm:$0xf]
      %v192 = vld [vmem:[%s188 + $0xc] sm:$0xf]
      %v193 = vld [vmem:[%s188 + $0x10] sm:$0xf]
      %v194 = vld [vmem:[%s188 + $0x14] sm:$0xf]
      %v195 = vld [vmem:[%s188 + $0x18] sm:$0xf]
      %v196 = vld [vmem:[%s188 + $0x1c] sm:$0xf]
      %v197 = vld [vmem:[%s188 + $0x20] sm:$0xf]
      %v198 = vld [vmem:[%s188 + $0x24] sm:$0xf]
      %v199 = vld [vmem:[%s188 + $0x28] sm:$0xf]
      %v200 = vld [vmem:[%s188 + $0x2c] sm:$0xf]
      %v203 = vunpack.c.l.b16 %v186
      %v204 = vunpack.c.l.b16 %v187
      %v205 = vpack.c.b16 %v204, %v203
      %v218 = vunpack.c.l.b16 %v189
      %v219 = vunpack.c.l.b16 %v190
      %v220 = vunpack.c.l.b16 %v191
      %v221 = vunpack.c.l.b16 %v192
      %v222 = vunpack.c.l.b16 %v193
      %v223 = vunpack.c.l.b16 %v194
      %v224 = vunpack.c.l.b16 %v195
      %v225 = vunpack.c.l.b16 %v196
      %v226 = vunpack.c.l.b16 %v197
      %v227 = vunpack.c.l.b16 %v198
      %v228 = vunpack.c.l.b16 %v199
      %v229 = vunpack.c.l.b16 %v200
      %v230 = vpack.c.b16 %v219, %v218
      %v231 = vpack.c.b16 %v221, %v220
      %v232 = vpack.c.b16 %v223, %v222
      %v233 = vpack.c.b16 %v225, %v224
      %v234 = vpack.c.b16 %v227, %v226
      %v235 = vpack.c.b16 %v229, %v228
      %vm242 = vcmask 785408
      %v244 = vsel %vm242, %v205, 0
      %246 = vmatpush.bf16.msra.mxu0 0
      %247 = vmatpush.bf16.msra.mxu0 0
      %248 = vmatpush.bf16.msra.mxu0 %v235
      %249 = vmatpush.bf16.msra.mxu0 %v234
      %250 = vmatpush.bf16.msra.mxu0 %v233
      %251 = vmatpush.bf16.msra.mxu0 %v232
      %252 = vmatpush.bf16.msra.mxu0 %v231
      %253 = vmatpush.bf16.msra.mxu0 %v230
      %254 = vmatmul.bf16.gmra.mxu0 %v244
      %v255 = vpop.f32.mrf.mxu0
      %v256 = vadd.f32 0.0, %v255
      %v257 = vpop.f32.mrf.mxu0
      %v258 = vadd.f32 0.0, %v257
      %259 = vdwg.mxu0
      %v262 = vunpack.c.l.b16 %v172
      %v263 = vunpack.c.l.b16 %v173
      %v264 = vpack.c.b16 %v263, %v262
      %v277 = vunpack.c.l.b16 %v174
      %v278 = vunpack.c.l.b16 %v175
      %v279 = vunpack.c.l.b16 %v176
      %v280 = vunpack.c.l.b16 %v177
      %v281 = vunpack.c.l.b16 %v178
      %v282 = vunpack.c.l.b16 %v179
      %v283 = vunpack.c.l.b16 %v180
      %v284 = vunpack.c.l.b16 %v181
      %v285 = vunpack.c.l.b16 %v182
      %v286 = vunpack.c.l.b16 %v183
      %v287 = vunpack.c.l.b16 %v184
      %v288 = vunpack.c.l.b16 %v185
      %v289 = vpack.c.b16 %v278, %v277
      %v290 = vpack.c.b16 %v280, %v279
      %v291 = vpack.c.b16 %v282, %v281
      %v292 = vpack.c.b16 %v284, %v283
      %v293 = vpack.c.b16 %v286, %v285
      %v294 = vpack.c.b16 %v288, %v287
      %v302 = vsel %vm242, %v264, 0
      %304 = vmatpush.bf16.msra.mxu0 0
      %305 = vmatpush.bf16.msra.mxu0 0
      %306 = vmatpush.bf16.msra.mxu0 %v294
      %307 = vmatpush.bf16.msra.mxu0 %v293
      %308 = vmatpush.bf16.msra.mxu0 %v292
      %309 = vmatpush.bf16.msra.mxu0 %v291
      %310 = vmatpush.bf16.msra.mxu0 %v290
      %311 = vmatpush.bf16.msra.mxu0 %v289
      %312 = vmatmul.bf16.gmra.mxu0 %v302
      %v313 = vpop.f32.mrf.mxu0
      %v314 = vadd.f32 %v256, %v313
      %v315 = vpop.f32.mrf.mxu0
      %v316 = vadd.f32 %v258, %v315
      %317 = vdwg.mxu0
      %v318 = vld [vmem:[%s165 + $0x4] sm:$0xf]
      %s319 = scalar_lea.vmem %s1, 96
      %v320 = vld [vmem:[%s319] sm:$0xf]
      %v321 = vld [vmem:[%s319 + $0x4] sm:$0xf]
      %v322 = vld [vmem:[%s319 + $0x8] sm:$0xf]
      %v323 = vld [vmem:[%s319 + $0xc] sm:$0xf]
      %v324 = vld [vmem:[%s319 + $0x10] sm:$0xf]
      %v325 = vld [vmem:[%s319 + $0x14] sm:$0xf]
      %v326 = vld [vmem:[%s319 + $0x18] sm:$0xf]
      %v327 = vld [vmem:[%s319 + $0x1c] sm:$0xf]
      %v328 = vld [vmem:[%s319 + $0x20] sm:$0xf]
      %v329 = vld [vmem:[%s319 + $0x24] sm:$0xf]
      %v330 = vld [vmem:[%s319 + $0x28] sm:$0xf]
      %v331 = vld [vmem:[%s319 + $0x2c] sm:$0xf]
      %v333 = vunpack.c.l.b16 %v318
      %v334 = vpack.c.b16 %v333, %v262
      %v336 = vshrl.u32 %v334, 16
      %v338 = vshll.u32 %v334, 16
      %v340 = vrot.slane %v338, 1
      %v341 = vor.u32 %v336, %v340
      %v354 = vunpack.c.l.b16 %v320
      %v355 = vunpack.c.l.b16 %v321
      %v356 = vunpack.c.l.b16 %v322
      %v357 = vunpack.c.l.b16 %v323
      %v358 = vunpack.c.l.b16 %v324
      %v359 = vunpack.c.l.b16 %v325
      %v360 = vunpack.c.l.b16 %v326
      %v361 = vunpack.c.l.b16 %v327
      %v362 = vunpack.c.l.b16 %v328
      %v363 = vunpack.c.l.b16 %v329
      %v364 = vunpack.c.l.b16 %v330
      %v365 = vunpack.c.l.b16 %v331
      %v366 = vpack.c.b16 %v355, %v354
      %v367 = vpack.c.b16 %v357, %v356
      %v368 = vpack.c.b16 %v359, %v358
      %v369 = vpack.c.b16 %v361, %v360
      %v370 = vpack.c.b16 %v363, %v362
      %v371 = vpack.c.b16 %v365, %v364
      %v379 = vsel %vm242, %v341, 0
      %381 = vmatpush.bf16.msra.mxu0 0
      %382 = vmatpush.bf16.msra.mxu0 0
      %383 = vmatpush.bf16.msra.mxu0 %v371
      %384 = vmatpush.bf16.msra.mxu0 %v370
      %385 = vmatpush.bf16.msra.mxu0 %v369
      %386 = vmatpush.bf16.msra.mxu0 %v368
      %387 = vmatpush.bf16.msra.mxu0 %v367
      %388 = vmatpush.bf16.msra.mxu0 %v366
      %389 = vmatmul.bf16.gmra.mxu0 %v379
      %v390 = vpop.f32.mrf.mxu0
      %v391 = vadd.f32 0.0, %v390
      %v392 = vpop.f32.mrf.mxu0
      %v393 = vadd.f32 0.0, %v392
      %394 = vdwg.mxu0
      %v395 = vadd.f32 %v314, %v391
      %v396 = vadd.f32 %v316, %v393
      %v397 = vld [vmem:[%s165 + $0xc] sm:$0xf]
      %s398 = scalar_lea.vmem %s1, 144
      %v399 = vld [vmem:[%s398] sm:$0xf]
      %v400 = vld [vmem:[%s398 + $0x4] sm:$0xf]
      %v401 = vld [vmem:[%s398 + $0x8] sm:$0xf]
      %v402 = vld [vmem:[%s398 + $0xc] sm:$0xf]
      %v403 = vld [vmem:[%s398 + $0x10] sm:$0xf]
      %v404 = vld [vmem:[%s398 + $0x14] sm:$0xf]
      %v405 = vld [vmem:[%s398 + $0x18] sm:$0xf]
      %v406 = vld [vmem:[%s398 + $0x1c] sm:$0xf]
      %v407 = vld [vmem:[%s398 + $0x20] sm:$0xf]
      %v408 = vld [vmem:[%s398 + $0x24] sm:$0xf]
      %v409 = vld [vmem:[%s398 + $0x28] sm:$0xf]
      %v410 = vld [vmem:[%s398 + $0x2c] sm:$0xf]
      %v412 = vunpack.c.l.b16 %v397
      %v413 = vpack.c.b16 %v412, %v203
      %v415 = vshrl.u32 %v413, 16
      %v417 = vshll.u32 %v413, 16
      %v419 = vrot.slane %v417, 1
      %v420 = vor.u32 %v415, %v419
      %v433 = vunpack.c.l.b16 %v399
      %v434 = vunpack.c.l.b16 %v400
      %v435 = vunpack.c.l.b16 %v401
      %v436 = vunpack.c.l.b16 %v402
      %v437 = vunpack.c.l.b16 %v403
      %v438 = vunpack.c.l.b16 %v404
      %v439 = vunpack.c.l.b16 %v405
      %v440 = vunpack.c.l.b16 %v406
      %v441 = vunpack.c.l.b16 %v407
      %v442 = vunpack.c.l.b16 %v408
      %v443 = vunpack.c.l.b16 %v409
      %v444 = vunpack.c.l.b16 %v410
      %v445 = vpack.c.b16 %v434, %v433
      %v446 = vpack.c.b16 %v436, %v435
      %v447 = vpack.c.b16 %v438, %v437
      %v448 = vpack.c.b16 %v440, %v439
      %v449 = vpack.c.b16 %v442, %v441
      %v450 = vpack.c.b16 %v444, %v443
      %v458 = vsel %vm242, %v420, 0
      %460 = vmatpush.bf16.msra.mxu0 0
      %461 = vmatpush.bf16.msra.mxu0 0
      %462 = vmatpush.bf16.msra.mxu0 %v450
      %463 = vmatpush.bf16.msra.mxu0 %v449
      %464 = vmatpush.bf16.msra.mxu0 %v448
      %465 = vmatpush.bf16.msra.mxu0 %v447
      %466 = vmatpush.bf16.msra.mxu0 %v446
      %467 = vmatpush.bf16.msra.mxu0 %v445
      %468 = vmatmul.bf16.gmra.mxu0 %v458
      %v469 = vpop.f32.mrf.mxu0
      %v470 = vadd.f32 0.0, %v469
      %v471 = vpop.f32.mrf.mxu0
      %v472 = vadd.f32 0.0, %v471
      %473 = vdwg.mxu0
      %v474 = vadd.f32 %v395, %v470
      %v475 = vadd.f32 %v396, %v472
      %v476 = vld [vmem:[%s165] sm:$0xe]
      %s477 = scalar_lea.vmem %s1, 192
      %v478 = vld [vmem:[%s477] sm:$0xf]
      %v479 = vld [vmem:[%s477 + $0x4] sm:$0xf]
      %v480 = vld [vmem:[%s477 + $0x8] sm:$0xf]
      %v481 = vld [vmem:[%s477 + $0xc] sm:$0xf]
      %v482 = vld [vmem:[%s477 + $0x10] sm:$0xf]
      %v483 = vld [vmem:[%s477 + $0x14] sm:$0xf]
      %v484 = vld [vmem:[%s477 + $0x18] sm:$0xf]
      %v485 = vld [vmem:[%s477 + $0x1c] sm:$0xf]
      %v486 = vld [vmem:[%s477 + $0x20] sm:$0xf]
      %v487 = vld [vmem:[%s477 + $0x24] sm:$0xf]
      %v488 = vld [vmem:[%s477 + $0x28] sm:$0xf]
      %v489 = vld [vmem:[%s477 + $0x2c] sm:$0xf]
      %v491 = vunpack.c.l.b16 %v476
      %v492 = vpack.c.b16 %v333, %v491
      %v493 = vrot.slane %v492, 1
      %v506 = vunpack.c.l.b16 %v478
      %v507 = vunpack.c.l.b16 %v479
      %v508 = vunpack.c.l.b16 %v480
      %v509 = vunpack.c.l.b16 %v481
      %v510 = vunpack.c.l.b16 %v482
      %v511 = vunpack.c.l.b16 %v483
      %v512 = vunpack.c.l.b16 %v484
      %v513 = vunpack.c.l.b16 %v485
      %v514 = vunpack.c.l.b16 %v486
      %v515 = vunpack.c.l.b16 %v487
      %v516 = vunpack.c.l.b16 %v488
      %v517 = vunpack.c.l.b16 %v489
      %v518 = vpack.c.b16 %v507, %v506
      %v519 = vpack.c.b16 %v509, %v508
      %v520 = vpack.c.b16 %v511, %v510
      %v521 = vpack.c.b16 %v513, %v512
      %v522 = vpack.c.b16 %v515, %v514
      %v523 = vpack.c.b16 %v517, %v516
      %v531 = vsel %vm242, %v493, 0
      %533 = vmatpush.bf16.msra.mxu0 0
      %534 = vmatpush.bf16.msra.mxu0 0
      %535 = vmatpush.bf16.msra.mxu0 %v523
      %536 = vmatpush.bf16.msra.mxu0 %v522
      %537 = vmatpush.bf16.msra.mxu0 %v521
      %538 = vmatpush.bf16.msra.mxu0 %v520
      %539 = vmatpush.bf16.msra.mxu0 %v519
      %540 = vmatpush.bf16.msra.mxu0 %v518
      %541 = vmatmul.bf16.gmra.mxu0 %v531
      %v542 = vpop.f32.mrf.mxu0
      %v543 = vadd.f32 0.0, %v542
      %v544 = vpop.f32.mrf.mxu0
      %v545 = vadd.f32 0.0, %v544
      %546 = vdwg.mxu0
      %v547 = vadd.f32 %v474, %v543
      %v548 = vadd.f32 %v475, %v545
      %s549 = scalar_lea.vmem %s1, 240
      %v550 = vld [vmem:[%s549] sm:$0xf]
      %v551 = vld [vmem:[%s549 + $0x4] sm:$0xf]
      %v552 = vld [vmem:[%s549 + $0x8] sm:$0xf]
      %v553 = vld [vmem:[%s549 + $0xc] sm:$0xf]
      %v554 = vld [vmem:[%s549 + $0x10] sm:$0xf]
      %v555 = vld [vmem:[%s549 + $0x14] sm:$0xf]
      %v556 = vld [vmem:[%s549 + $0x18] sm:$0xf]
      %v557 = vld [vmem:[%s549 + $0x1c] sm:$0xf]
      %v558 = vld [vmem:[%s549 + $0x20] sm:$0xf]
      %v559 = vld [vmem:[%s549 + $0x24] sm:$0xf]
      %v560 = vld [vmem:[%s549 + $0x28] sm:$0xf]
      %v561 = vld [vmem:[%s549 + $0x2c] sm:$0xf]
      %s562 = scalar_lea.vmem %s1, 288
      %v563 = vld [vmem:[%s562] sm:$0xf]
      %v564 = vld [vmem:[%s562 + $0x4] sm:$0xf]
      %v565 = vld [vmem:[%s562 + $0x8] sm:$0xf]
      %v566 = vld [vmem:[%s562 + $0xc] sm:$0xf]
      %v567 = vld [vmem:[%s562 + $0x10] sm:$0xf]
      %v568 = vld [vmem:[%s562 + $0x14] sm:$0xf]
      %v569 = vld [vmem:[%s562 + $0x18] sm:$0xf]
      %v570 = vld [vmem:[%s562 + $0x1c] sm:$0xf]
      %v571 = vld [vmem:[%s562 + $0x20] sm:$0xf]
      %v572 = vld [vmem:[%s562 + $0x24] sm:$0xf]
      %v573 = vld [vmem:[%s562 + $0x28] sm:$0xf]
      %v574 = vld [vmem:[%s562 + $0x2c] sm:$0xf]
      %v587 = vunpack.c.l.b16 %v563
      %v588 = vunpack.c.l.b16 %v564
      %v589 = vunpack.c.l.b16 %v565
      %v590 = vunpack.c.l.b16 %v566
      %v591 = vunpack.c.l.b16 %v567
      %v592 = vunpack.c.l.b16 %v568
      %v593 = vunpack.c.l.b16 %v569
      %v594 = vunpack.c.l.b16 %v570
      %v595 = vunpack.c.l.b16 %v571
      %v596 = vunpack.c.l.b16 %v572
      %v597 = vunpack.c.l.b16 %v573
      %v598 = vunpack.c.l.b16 %v574
      %v599 = vpack.c.b16 %v588, %v587
      %v600 = vpack.c.b16 %v590, %v589
      %v601 = vpack.c.b16 %v592, %v591
      %v602 = vpack.c.b16 %v594, %v593
      %v603 = vpack.c.b16 %v596, %v595
      %v604 = vpack.c.b16 %v598, %v597
      %611 = vmatpush.bf16.msra.mxu0 0
      %612 = vmatpush.bf16.msra.mxu0 0
      %613 = vmatpush.bf16.msra.mxu0 %v604
      %614 = vmatpush.bf16.msra.mxu0 %v603
      %615 = vmatpush.bf16.msra.mxu0 %v602
      %616 = vmatpush.bf16.msra.mxu0 %v601
      %617 = vmatpush.bf16.msra.mxu0 %v600
      %618 = vmatpush.bf16.msra.mxu0 %v599
      %619 = vmatmul.bf16.gmra.mxu0 %v244
      %v620 = vpop.f32.mrf.mxu0
      %v621 = vadd.f32 0.0, %v620
      %v622 = vpop.f32.mrf.mxu0
      %v623 = vadd.f32 0.0, %v622
      %624 = vdwg.mxu0
      %v637 = vunpack.c.l.b16 %v550
      %v638 = vunpack.c.l.b16 %v551
      %v639 = vunpack.c.l.b16 %v552
      %v640 = vunpack.c.l.b16 %v553
      %v641 = vunpack.c.l.b16 %v554
      %v642 = vunpack.c.l.b16 %v555
      %v643 = vunpack.c.l.b16 %v556
      %v644 = vunpack.c.l.b16 %v557
      %v645 = vunpack.c.l.b16 %v558
      %v646 = vunpack.c.l.b16 %v559
      %v647 = vunpack.c.l.b16 %v560
      %v648 = vunpack.c.l.b16 %v561
      %v649 = vpack.c.b16 %v638, %v637
      %v650 = vpack.c.b16 %v640, %v639
      %v651 = vpack.c.b16 %v642, %v641
      %v652 = vpack.c.b16 %v644, %v643
      %v653 = vpack.c.b16 %v646, %v645
      %v654 = vpack.c.b16 %v648, %v647
      %661 = vmatpush.bf16.msra.mxu0 0
      %662 = vmatpush.bf16.msra.mxu0 0
      %663 = vmatpush.bf16.msra.mxu0 %v654
      %664 = vmatpush.bf16.msra.mxu0 %v653
      %665 = vmatpush.bf16.msra.mxu0 %v652
      %666 = vmatpush.bf16.msra.mxu0 %v651
      %667 = vmatpush.bf16.msra.mxu0 %v650
      %668 = vmatpush.bf16.msra.mxu0 %v649
      %669 = vmatmul.bf16.gmra.mxu0 %v302
      %v670 = vpop.f32.mrf.mxu0
      %v671 = vadd.f32 %v621, %v670
      %v672 = vpop.f32.mrf.mxu0
      %v673 = vadd.f32 %v623, %v672
      %674 = vdwg.mxu0
      %s675 = scalar_lea.vmem %s1, 336
      %v676 = vld [vmem:[%s675] sm:$0xf]
      %v677 = vld [vmem:[%s675 + $0x4] sm:$0xf]
      %v678 = vld [vmem:[%s675 + $0x8] sm:$0xf]
      %v679 = vld [vmem:[%s675 + $0xc] sm:$0xf]
      %v680 = vld [vmem:[%s675 + $0x10] sm:$0xf]
      %v681 = vld [vmem:[%s675 + $0x14] sm:$0xf]
      %v682 = vld [vmem:[%s675 + $0x18] sm:$0xf]
      %v683 = vld [vmem:[%s675 + $0x1c] sm:$0xf]
      %v684 = vld [vmem:[%s675 + $0x20] sm:$0xf]
      %v685 = vld [vmem:[%s675 + $0x24] sm:$0xf]
      %v686 = vld [vmem:[%s675 + $0x28] sm:$0xf]
      %v687 = vld [vmem:[%s675 + $0x2c] sm:$0xf]
      %v700 = vunpack.c.l.b16 %v676
      %v701 = vunpack.c.l.b16 %v677
      %v702 = vunpack.c.l.b16 %v678
      %v703 = vunpack.c.l.b16 %v679
      %v704 = vunpack.c.l.b16 %v680
      %v705 = vunpack.c.l.b16 %v681
      %v706 = vunpack.c.l.b16 %v682
      %v707 = vunpack.c.l.b16 %v683
      %v708 = vunpack.c.l.b16 %v684
      %v709 = vunpack.c.l.b16 %v685
      %v710 = vunpack.c.l.b16 %v686
      %v711 = vunpack.c.l.b16 %v687
      %v712 = vpack.c.b16 %v701, %v700
      %v713 = vpack.c.b16 %v703, %v702
      %v714 = vpack.c.b16 %v705, %v704
      %v715 = vpack.c.b16 %v707, %v706
      %v716 = vpack.c.b16 %v709, %v708
      %v717 = vpack.c.b16 %v711, %v710
      %724 = vmatpush.bf16.msra.mxu0 0
      %725 = vmatpush.bf16.msra.mxu0 0
      %726 = vmatpush.bf16.msra.mxu0 %v717
      %727 = vmatpush.bf16.msra.mxu0 %v716
      %728 = vmatpush.bf16.msra.mxu0 %v715
      %729 = vmatpush.bf16.msra.mxu0 %v714
      %730 = vmatpush.bf16.msra.mxu0 %v713
      %731 = vmatpush.bf16.msra.mxu0 %v712
      %732 = vmatmul.bf16.gmra.mxu0 %v379
      %v733 = vpop.f32.mrf.mxu0
      %v734 = vadd.f32 0.0, %v733
      %v735 = vpop.f32.mrf.mxu0
      %v736 = vadd.f32 0.0, %v735
      %737 = vdwg.mxu0
      %v738 = vadd.f32 %v671, %v734
      %v739 = vadd.f32 %v673, %v736
      %s740 = scalar_lea.vmem %s1, 384
      %v741 = vld [vmem:[%s740] sm:$0xf]
      %v742 = vld [vmem:[%s740 + $0x4] sm:$0xf]
      %v743 = vld [vmem:[%s740 + $0x8] sm:$0xf]
      %v744 = vld [vmem:[%s740 + $0xc] sm:$0xf]
      %v745 = vld [vmem:[%s740 + $0x10] sm:$0xf]
      %v746 = vld [vmem:[%s740 + $0x14] sm:$0xf]
      %v747 = vld [vmem:[%s740 + $0x18] sm:$0xf]
      %v748 = vld [vmem:[%s740 + $0x1c] sm:$0xf]
      %v749 = vld [vmem:[%s740 + $0x20] sm:$0xf]
      %v750 = vld [vmem:[%s740 + $0x24] sm:$0xf]
      %v751 = vld [vmem:[%s740 + $0x28] sm:$0xf]
      %v752 = vld [vmem:[%s740 + $0x2c] sm:$0xf]
      %v765 = vunpack.c.l.b16 %v741
      %v766 = vunpack.c.l.b16 %v742
      %v767 = vunpack.c.l.b16 %v743
      %v768 = vunpack.c.l.b16 %v744
      %v769 = vunpack.c.l.b16 %v745
      %v770 = vunpack.c.l.b16 %v746
      %v771 = vunpack.c.l.b16 %v747
      %v772 = vunpack.c.l.b16 %v748
      %v773 = vunpack.c.l.b16 %v749
      %v774 = vunpack.c.l.b16 %v750
      %v775 = vunpack.c.l.b16 %v751
      %v776 = vunpack.c.l.b16 %v752
      %v777 = vpack.c.b16 %v766, %v765
      %v778 = vpack.c.b16 %v768, %v767
      %v779 = vpack.c.b16 %v770, %v769
      %v780 = vpack.c.b16 %v772, %v771
      %v781 = vpack.c.b16 %v774, %v773
      %v782 = vpack.c.b16 %v776, %v775
      %789 = vmatpush.bf16.msra.mxu0 0
      %790 = vmatpush.bf16.msra.mxu0 0
      %791 = vmatpush.bf16.msra.mxu0 %v782
      %792 = vmatpush.bf16.msra.mxu0 %v781
      %793 = vmatpush.bf16.msra.mxu0 %v780
      %794 = vmatpush.bf16.msra.mxu0 %v779
      %795 = vmatpush.bf16.msra.mxu0 %v778
      %796 = vmatpush.bf16.msra.mxu0 %v777
      %797 = vmatmul.bf16.gmra.mxu0 %v458
      %v798 = vpop.f32.mrf.mxu0
      %v799 = vadd.f32 0.0, %v798
      %v800 = vpop.f32.mrf.mxu0
      %v801 = vadd.f32 0.0, %v800
      %802 = vdwg.mxu0
      %v803 = vadd.f32 %v738, %v799
      %v804 = vadd.f32 %v739, %v801
      %s805 = scalar_lea.vmem %s1, 432
      %v806 = vld [vmem:[%s805] sm:$0xf]
      %v807 = vld [vmem:[%s805 + $0x4] sm:$0xf]
      %v808 = vld [vmem:[%s805 + $0x8] sm:$0xf]
      %v809 = vld [vmem:[%s805 + $0xc] sm:$0xf]
      %v810 = vld [vmem:[%s805 + $0x10] sm:$0xf]
      %v811 = vld [vmem:[%s805 + $0x14] sm:$0xf]
      %v812 = vld [vmem:[%s805 + $0x18] sm:$0xf]
      %v813 = vld [vmem:[%s805 + $0x1c] sm:$0xf]
      %v814 = vld [vmem:[%s805 + $0x20] sm:$0xf]
      %v815 = vld [vmem:[%s805 + $0x24] sm:$0xf]
      %v816 = vld [vmem:[%s805 + $0x28] sm:$0xf]
      %v817 = vld [vmem:[%s805 + $0x2c] sm:$0xf]
      %v830 = vunpack.c.l.b16 %v806
      %v831 = vunpack.c.l.b16 %v807
      %v832 = vunpack.c.l.b16 %v808
      %v833 = vunpack.c.l.b16 %v809
      %v834 = vunpack.c.l.b16 %v810
      %v835 = vunpack.c.l.b16 %v811
      %v836 = vunpack.c.l.b16 %v812
      %v837 = vunpack.c.l.b16 %v813
      %v838 = vunpack.c.l.b16 %v814
      %v839 = vunpack.c.l.b16 %v815
      %v840 = vunpack.c.l.b16 %v816
      %v841 = vunpack.c.l.b16 %v817
      %v842 = vpack.c.b16 %v831, %v830
      %v843 = vpack.c.b16 %v833, %v832
      %v844 = vpack.c.b16 %v835, %v834
      %v845 = vpack.c.b16 %v837, %v836
      %v846 = vpack.c.b16 %v839, %v838
      %v847 = vpack.c.b16 %v841, %v840
      %854 = vmatpush.bf16.msra.mxu0 0
      %855 = vmatpush.bf16.msra.mxu0 0
      %856 = vmatpush.bf16.msra.mxu0 %v847
      %857 = vmatpush.bf16.msra.mxu0 %v846
      %858 = vmatpush.bf16.msra.mxu0 %v845
      %859 = vmatpush.bf16.msra.mxu0 %v844
      %860 = vmatpush.bf16.msra.mxu0 %v843
      %861 = vmatpush.bf16.msra.mxu0 %v842
      %862 = vmatmul.bf16.gmra.mxu0 %v531
      %v863 = vpop.f32.mrf.mxu0
      %v864 = vadd.f32 0.0, %v863
      %v865 = vpop.f32.mrf.mxu0
      %v866 = vadd.f32 0.0, %v865
      %867 = vdwg.mxu0
      %v868 = vadd.f32 %v803, %v864
      %v869 = vadd.f32 %v804, %v866
      %v870 = vmax.f32 %v547, %v868
      %v871 = vmax.f32 %v548, %v869
      %872 = vmatpush.bf16.msra.mxu0 0
      %873 = vmatpush.bf16.msra.mxu0 0
      %874 = vmatpush.bf16.msra.mxu0 %v235
      %875 = vmatpush.bf16.msra.mxu0 %v234
      %876 = vmatpush.bf16.msra.mxu0 %v233
      %877 = vmatpush.bf16.msra.mxu0 %v232
      %878 = vmatpush.bf16.msra.mxu0 %v231
      %879 = vmatpush.bf16.msra.mxu0 %v230
      %880 = vmatmul.bf16.gmra.mxu0 %v379
      %v881 = vpop.f32.mrf.mxu0
      %v882 = vadd.f32 0.0, %v881
      %v883 = vpop.f32.mrf.mxu0
      %v884 = vadd.f32 0.0, %v883
      %885 = vdwg.mxu0
      %886 = vmatpush.bf16.msra.mxu0 0
      %887 = vmatpush.bf16.msra.mxu0 0
      %888 = vmatpush.bf16.msra.mxu0 %v294
      %889 = vmatpush.bf16.msra.mxu0 %v293
      %890 = vmatpush.bf16.msra.mxu0 %v292
      %891 = vmatpush.bf16.msra.mxu0 %v291
      %892 = vmatpush.bf16.msra.mxu0 %v290
      %893 = vmatpush.bf16.msra.mxu0 %v289
      %894 = vmatmul.bf16.gmra.mxu0 %v244
      %v895 = vpop.f32.mrf.mxu0
      %v896 = vadd.f32 %v882, %v895
      %v897 = vpop.f32.mrf.mxu0
      %v898 = vadd.f32 %v884, %v897
      %899 = vdwg.mxu0
      %900 = vmatpush.bf16.msra.mxu0 0
      %901 = vmatpush.bf16.msra.mxu0 0
      %902 = vmatpush.bf16.msra.mxu0 %v371
      %903 = vmatpush.bf16.msra.mxu0 %v370
      %904 = vmatpush.bf16.msra.mxu0 %v369
      %905 = vmatpush.bf16.msra.mxu0 %v368
      %906 = vmatpush.bf16.msra.mxu0 %v367
      %907 = vmatpush.bf16.msra.mxu0 %v366
      %908 = vmatmul.bf16.gmra.mxu0 %v458
      %v909 = vpop.f32.mrf.mxu0
      %v910 = vadd.f32 0.0, %v909
      %v911 = vpop.f32.mrf.mxu0
      %v912 = vadd.f32 0.0, %v911
      %913 = vdwg.mxu0
      %v914 = vadd.f32 %v896, %v910
      %v915 = vadd.f32 %v898, %v912
      %916 = vmatpush.bf16.msra.mxu0 0
      %917 = vmatpush.bf16.msra.mxu0 0
      %918 = vmatpush.bf16.msra.mxu0 %v450
      %919 = vmatpush.bf16.msra.mxu0 %v449
      %920 = vmatpush.bf16.msra.mxu0 %v448
      %921 = vmatpush.bf16.msra.mxu0 %v447
      %922 = vmatpush.bf16.msra.mxu0 %v446
      %923 = vmatpush.bf16.msra.mxu0 %v445
      %924 = vmatmul.bf16.gmra.mxu0 %v531
      %v925 = vpop.f32.mrf.mxu0
      %v926 = vadd.f32 0.0, %v925
      %v927 = vpop.f32.mrf.mxu0
      %v928 = vadd.f32 0.0, %v927
      %929 = vdwg.mxu0
      %v930 = vadd.f32 %v914, %v926
      %v931 = vadd.f32 %v915, %v928
      %v932 = vld [vmem:[%s165 + $0x8] sm:$0xe]
      %v934 = vunpack.c.l.b16 %v932
      %v935 = vpack.c.b16 %v412, %v934
      %v936 = vrot.slane %v935, 1
      %v938 = vsel %vm242, %v936, 0
      %940 = vmatpush.bf16.msra.mxu0 0
      %941 = vmatpush.bf16.msra.mxu0 0
      %942 = vmatpush.bf16.msra.mxu0 %v523
      %943 = vmatpush.bf16.msra.mxu0 %v522
      %944 = vmatpush.bf16.msra.mxu0 %v521
      %945 = vmatpush.bf16.msra.mxu0 %v520
      %946 = vmatpush.bf16.msra.mxu0 %v519
      %947 = vmatpush.bf16.msra.mxu0 %v518
      %948 = vmatmul.bf16.gmra.mxu0 %v938
      %v949 = vpop.f32.mrf.mxu0
      %v950 = vadd.f32 0.0, %v949
      %v951 = vpop.f32.mrf.mxu0
      %v952 = vadd.f32 0.0, %v951
      %953 = vdwg.mxu0
      %v954 = vadd.f32 %v930, %v950
      %v955 = vadd.f32 %v931, %v952
      %v956 = vmax.f32 %v870, %v954
      %v957 = vmax.f32 %v871, %v955
      %958 = vmatpush.bf16.msra.mxu0 0
      %959 = vmatpush.bf16.msra.mxu0 0
      %960 = vmatpush.bf16.msra.mxu0 %v604
      %961 = vmatpush.bf16.msra.mxu0 %v603
      %962 = vmatpush.bf16.msra.mxu0 %v602
      %963 = vmatpush.bf16.msra.mxu0 %v601
      %964 = vmatpush.bf16.msra.mxu0 %v600
      %965 = vmatpush.bf16.msra.mxu0 %v599
      %966 = vmatmul.bf16.gmra.mxu0 %v379
      %v967 = vpop.f32.mrf.mxu0
      %v968 = vadd.f32 0.0, %v967
      %v969 = vpop.f32.mrf.mxu0
      %v970 = vadd.f32 0.0, %v969
      %971 = vdwg.mxu0
      %972 = vmatpush.bf16.msra.mxu0 0
      %973 = vmatpush.bf16.msra.mxu0 0
      %974 = vmatpush.bf16.msra.mxu0 %v654
      %975 = vmatpush.bf16.msra.mxu0 %v653
      %976 = vmatpush.bf16.msra.mxu0 %v652
      %977 = vmatpush.bf16.msra.mxu0 %v651
      %978 = vmatpush.bf16.msra.mxu0 %v650
      %979 = vmatpush.bf16.msra.mxu0 %v649
      %980 = vmatmul.bf16.gmra.mxu0 %v244
      %v981 = vpop.f32.mrf.mxu0
      %v982 = vadd.f32 %v968, %v981
      %v983 = vpop.f32.mrf.mxu0
      %v984 = vadd.f32 %v970, %v983
      %985 = vdwg.mxu0
      %986 = vmatpush.bf16.msra.mxu0 0
      %987 = vmatpush.bf16.msra.mxu0 0
      %988 = vmatpush.bf16.msra.mxu0 %v717
      %989 = vmatpush.bf16.msra.mxu0 %v716
      %990 = vmatpush.bf16.msra.mxu0 %v715
      %991 = vmatpush.bf16.msra.mxu0 %v714
      %992 = vmatpush.bf16.msra.mxu0 %v713
      %993 = vmatpush.bf16.msra.mxu0 %v712
      %994 = vmatmul.bf16.gmra.mxu0 %v458
      %v995 = vpop.f32.mrf.mxu0
      %v996 = vadd.f32 0.0, %v995
      %v997 = vpop.f32.mrf.mxu0
      %v998 = vadd.f32 0.0, %v997
      %999 = vdwg.mxu0
      %v1000 = vadd.f32 %v982, %v996
      %v1001 = vadd.f32 %v984, %v998
      %1002 = vmatpush.bf16.msra.mxu0 0
      %1003 = vmatpush.bf16.msra.mxu0 0
      %1004 = vmatpush.bf16.msra.mxu0 %v782
      %1005 = vmatpush.bf16.msra.mxu0 %v781
      %1006 = vmatpush.bf16.msra.mxu0 %v780
      %1007 = vmatpush.bf16.msra.mxu0 %v779
      %1008 = vmatpush.bf16.msra.mxu0 %v778
      %1009 = vmatpush.bf16.msra.mxu0 %v777
      %1010 = vmatmul.bf16.gmra.mxu0 %v531
      %v1011 = vpop.f32.mrf.mxu0
      %v1012 = vadd.f32 0.0, %v1011
      %v1013 = vpop.f32.mrf.mxu0
      %v1014 = vadd.f32 0.0, %v1013
      %1015 = vdwg.mxu0
      %v1016 = vadd.f32 %v1000, %v1012
      %v1017 = vadd.f32 %v1001, %v1014
      %1018 = vmatpush.bf16.msra.mxu0 0
      %1019 = vmatpush.bf16.msra.mxu0 0
      %1020 = vmatpush.bf16.msra.mxu0 %v847
      %1021 = vmatpush.bf16.msra.mxu0 %v846
      %1022 = vmatpush.bf16.msra.mxu0 %v845
      %1023 = vmatpush.bf16.msra.mxu0 %v844
      %1024 = vmatpush.bf16.msra.mxu0 %v843
      %1025 = vmatpush.bf16.msra.mxu0 %v842
      %1026 = vmatmul.bf16.gmra.mxu0 %v938
      %v1027 = vpop.f32.mrf.mxu0
      %v1028 = vadd.f32 0.0, %v1027
      %v1029 = vpop.f32.mrf.mxu0
      %v1030 = vadd.f32 0.0, %v1029
      %1031 = vdwg.mxu0
      %v1032 = vadd.f32 %v1016, %v1028
      %v1033 = vadd.f32 %v1017, %v1030
      %v1034 = vmax.f32 %v956, %v1032
      %v1035 = vmax.f32 %v957, %v1033
      %v1036 = vld [vmem:[%s2] sm:$0x1]
      %v1038 = vperm.slane %v1036, 0
      %v1040 = vadd.f32 %v1034, %v1038
      %v1041 = vadd.f32 %v1035, %v1038
      %v1042 = vmax.f32 %v1040, 0.0
      %v1043 = vmax.f32 %v1041, 0.0
      %v1044 = vpack.c.bf16 %v1042, %v1042
      %v1045 = vpack.c.bf16 %v1043, %v1043
      %vm1046 = vcmask 683008
      %1047 = vst.msk [vmem:[%s170] sm:$0xf] %vm1046, %v1044
      %vm1048 = vcmask 681984
      %1049 = vst.msk [vmem:[%s170 + $0x4] sm:$0x7] %vm1048, %v1045
      %p1050 = scmp.lt.s32.totalorder %s14, 1
      %s1051 = scalar_select %p1050, %s14, 1
      %s1052 = smul.addr %s1051, 2
      %s1053 = smul.addr %s1052, 4
      %s1054 = scalar_lea.vmem %s3, %s1053
      // Predicated region
      $region33: #{cnn_forward.3} parent=31 // pred_check
        %p1055 = pneg %p100
      $region34: #{cnn_forward.3} parent=31 // pred_check_branch
        %1057 = sbr.rel (%p1055) target = $region36
      $region35: #{cnn_forward.3} parent=31 // pred_region
        _
      $region36: #{cnn_forward.3} parent=31 // pred_fallthru
        _
    $region32: #{cnn_forward.3} parent=5 // pred_fallthru
      _
    %p1058 = scmp.le.s32.totalorder 2, %s9
    // Predicated region
    $region37: #{cnn_forward.3} parent=5 // pred_check
      %p1059 = pneg %p1058
    $region38: #{cnn_forward.3} parent=5 // pred_check_branch
      %1061 = sbr.rel (%p1059) target = $region40
    $region39: #{cnn_forward.3} parent=5 // pred_region
      %s1062 = ssub.s32 %s9, 2
      // Predicated region
      $region41: #{cnn_forward.3} parent=39 // pred_check
        %p1063 = pneg %p106
      $region42: #{cnn_forward.3} parent=39 // pred_check_branch
        %1065 = sbr.rel (%p1063) target = $region44
      $region43: #{cnn_forward.3} parent=39 // pred_region
        %p1066 = scmp.lt.s32.totalorder %s15, 1
        %s1067 = scalar_select %p1066, %s15, 1
        %s1068 = smul.addr %s1067, 2
        %s1069 = smul.addr %s1068, 4
        %s1070 = scalar_lea.vmem %s3, %s1069
      $region44: #{cnn_forward.3} parent=39 // pred_fallthru
        _
    $region40: #{cnn_forward.3} parent=5 // pred_fallthru
      _
  $region6: #{cnn_forward.3} parent=0 // loop_footer
    %s13 = sadd.s32 1, %s9
  $region7: #{cnn_forward.3} parent=0 // loop_footer_branch
    %8 = sbr.rel target = $region3
  $region8: #{cnn_forward.3} parent=0 // loop_exit
    _

// kernel: cnn_forward.5
$region0: #{cnn_forward.5}
  #allocation0 [shape = 'u32[]', space=smem, size = 0x4, offset = 0x4, fixed_abs, tag = 'smem constant byte address 0x4 - core index']
  #allocation1 [shape = 'u32[72,128]{1,0:T(1,128)}', space=vmem, size = 0x9000, scoped, tag = 'internal scratch']
  %s0 = inlined_call_operand.vmem [shape: bf16[2,400], index: 0, kind: input, shape index: {}]
  %s1 = inlined_call_operand.vmem [shape: bf16[400,120], index: 1, kind: input, shape index: {}]
  %s2 = inlined_call_operand.vmem [shape: f32[1,120], index: 2, kind: input, shape index: {}]
  %s3 = inlined_call_operand.vmem [shape: bf16[120,84], index: 3, kind: input, shape index: {}]
  %s4 = inlined_call_operand.vmem [shape: f32[1,84], index: 4, kind: input, shape index: {}]
  %s5 = inlined_call_operand.vmem [shape: bf16[84,10], index: 5, kind: input, shape index: {}]
  %s6 = inlined_call_operand.vmem [shape: f32[1,10], index: 6, kind: input, shape index: {}]
  %s7 = inlined_call_operand.hbm [shape: f32[2,10], index: 7, kind: output, shape index: {}]
  %s8 = sld [smem:[#allocation0]]
  $region38: #{cnn_forward.5} parent=0
    _
  %s10 = ssub.s32 1, %s8
  %s11 = scalar_select 0, %s10, %s8
  $region1: #{cnn_forward.5} parent=0
    #allocation2 [shape = 'u8[1024]{0}', space=vmem, size = 0x400, scoped, tag = 'output window, operand 0, single buffered']
    #allocation3 [shape = 's32[1]{0}', space=sflag, size = 0x4, scoped, tag = 'scoped memory for cnn_forward.5']
    %12 = vsyncpa [#allocation3], 0
    // Predicated region
    $region2: #{cnn_forward.5} parent=1 // pred_check
      _
    $region3: #{cnn_forward.5} parent=1 // pred_check_branch
      %14 = sbr.rel (0) target = $region5
    $region4: #{cnn_forward.5} parent=1 // pred_region
      _
    $region5: #{cnn_forward.5} parent=1 // pred_fallthru
      _
    // Predicated region
    $region6: #{cnn_forward.5} parent=1 // pred_check
      _
    $region7: #{cnn_forward.5} parent=1 // pred_check_branch
      %16 = sbr.rel (0) target = $region9
    $region8: #{cnn_forward.5} parent=1 // pred_region
      _
    $region9: #{cnn_forward.5} parent=1 // pred_fallthru
      _
    // Predicated region
    $region10: #{cnn_forward.5} parent=1 // pred_check
      _
    $region11: #{cnn_forward.5} parent=1 // pred_check_branch
      %18 = sbr.rel (0) target = $region13
    $region12: #{cnn_forward.5} parent=1 // pred_region
      _
    $region13: #{cnn_forward.5} parent=1 // pred_fallthru
      _
    // Predicated region
    $region14: #{cnn_forward.5} parent=1 // pred_check
      _
    $region15: #{cnn_forward.5} parent=1 // pred_check_branch
      %20 = sbr.rel (0) target = $region17
    $region16: #{cnn_forward.5} parent=1 // pred_region
      _
    $region17: #{cnn_forward.5} parent=1 // pred_fallthru
      _
    // Predicated region
    $region18: #{cnn_forward.5} parent=1 // pred_check
      _
    $region19: #{cnn_forward.5} parent=1 // pred_check_branch
      %22 = sbr.rel (0) target = $region21
    $region20: #{cnn_forward.5} parent=1 // pred_region
      _
    $region21: #{cnn_forward.5} parent=1 // pred_fallthru
      _
    // Predicated region
    $region22: #{cnn_forward.5} parent=1 // pred_check
      _
    $region23: #{cnn_forward.5} parent=1 // pred_check_branch
      %24 = sbr.rel (0) target = $region25
    $region24: #{cnn_forward.5} parent=1 // pred_region
      _
    $region25: #{cnn_forward.5} parent=1 // pred_fallthru
      _
    // Predicated region
    $region26: #{cnn_forward.5} parent=1 // pred_check
      _
    $region27: #{cnn_forward.5} parent=1 // pred_check_branch
      %26 = sbr.rel (0) target = $region29
    $region28: #{cnn_forward.5} parent=1 // pred_region
      _
    $region29: #{cnn_forward.5} parent=1 // pred_fallthru
      _
    %v28 = vld [vmem:[%s0] sm:$0xf]
    %v29 = vld [vmem:[%s1] sm:$0xf]
    %v30 = vld [vmem:[%s1 + $0x4] sm:$0xf]
    %v31 = vld [vmem:[%s1 + $0x8] sm:$0xf]
    %v32 = vld [vmem:[%s1 + $0xc] sm:$0xf]
    %v33 = vld [vmem:[%s1 + $0x10] sm:$0xf]
    %v34 = vld [vmem:[%s1 + $0x14] sm:$0xf]
    %v35 = vld [vmem:[%s1 + $0x18] sm:$0xf]
    %v36 = vld [vmem:[%s1 + $0x1c] sm:$0xf]
    %v37 = vld [vmem:[%s1 + $0x20] sm:$0xf]
    %v38 = vld [vmem:[%s1 + $0x24] sm:$0xf]
    %v39 = vld [vmem:[%s1 + $0x28] sm:$0xf]
    %v40 = vld [vmem:[%s1 + $0x2c] sm:$0xf]
    %v41 = vld [vmem:[%s1 + $0x30] sm:$0xf]
    %v42 = vld [vmem:[%s1 + $0x34] sm:$0xf]
    %v43 = vld [vmem:[%s1 + $0x38] sm:$0xf]
    %v44 = vld [vmem:[%s1 + $0x3c] sm:$0xf]
    %v45 = vld [vmem:[%s1 + $0x40] sm:$0xf]
    %v46 = vld [vmem:[%s1 + $0x44] sm:$0xf]
    %v47 = vld [vmem:[%s1 + $0x48] sm:$0xf]
    %v48 = vld [vmem:[%s1 + $0x4c] sm:$0xf]
    %v49 = vld [vmem:[%s1 + $0x50] sm:$0xf]
    %v50 = vld [vmem:[%s1 + $0x54] sm:$0xf]
    %v51 = vld [vmem:[%s1 + $0x58] sm:$0xf]
    %v52 = vld [vmem:[%s1 + $0x5c] sm:$0xf]
    %v53 = vld [vmem:[%s1 + $0x60] sm:$0xf]
    %v54 = vld [vmem:[%s1 + $0x64] sm:$0xf]
    %v55 = vld [vmem:[%s1 + $0x68] sm:$0xf]
    %v56 = vld [vmem:[%s1 + $0x6c] sm:$0xf]
    %v57 = vld [vmem:[%s1 + $0x70] sm:$0xf]
    %v58 = vld [vmem:[%s1 + $0x74] sm:$0xf]
    %v59 = vld [vmem:[%s1 + $0x78] sm:$0xf]
    %v60 = vld [vmem:[%s1 + $0x7c] sm:$0xf]
    %v61 = vld [vmem:[%s1 + $0x80] sm:$0xf]
    %v62 = vld [vmem:[%s1 + $0x84] sm:$0xf]
    %v63 = vld [vmem:[%s1 + $0x88] sm:$0xf]
    %v64 = vld [vmem:[%s1 + $0x8c] sm:$0xf]
    %v65 = vld [vmem:[%s1 + $0x90] sm:$0xf]
    %v66 = vld [vmem:[%s1 + $0x94] sm:$0xf]
    %v67 = vld [vmem:[%s1 + $0x98] sm:$0xf]
    %v68 = vld [vmem:[%s1 + $0x9c] sm:$0xf]
    %v69 = vld [vmem:[%s1 + $0xa0] sm:$0xf]
    %v70 = vld [vmem:[%s1 + $0xa4] sm:$0xf]
    %v71 = vld [vmem:[%s1 + $0xa8] sm:$0xf]
    %v72 = vld [vmem:[%s1 + $0xac] sm:$0xf]
    %v73 = vld [vmem:[%s1 + $0xb0] sm:$0xf]
    %v74 = vld [vmem:[%s1 + $0xb4] sm:$0xf]
    %v75 = vld [vmem:[%s1 + $0xb8] sm:$0xf]
    %v76 = vld [vmem:[%s1 + $0xbc] sm:$0xf]
    %v77 = vld [vmem:[%s1 + $0xc0] sm:$0xf]
    %v78 = vld [vmem:[%s1 + $0xc4] sm:$0xf]
    %v79 = vld [vmem:[%s2] sm:$0x1]
    %v81 = vperm.slane %v79, 0
    %84 = vst [vmem:[#allocation1] ss:$9 sm:$0xff] %v28
    %v85 = vld [vmem:[#allocation1] sm:$0xff]
    %v86 = vld [vmem:[#allocation1 + $0x9] sm:$0xff]
    %v87 = vld [vmem:[#allocation1 + $0x12] sm:$0xff]
    %v88 = vld [vmem:[#allocation1 + $0x1b] sm:$0xff]
    %v142 = vunpack.c.l.b16 %v29
    %v143 = vunpack.c.l.b16 %v30
    %v144 = vunpack.c.l.b16 %v31
    %v145 = vunpack.c.l.b16 %v32
    %v146 = vunpack.c.l.b16 %v33
    %v147 = vunpack.c.l.b16 %v34
    %v148 = vunpack.c.l.b16 %v35
    %v149 = vunpack.c.l.b16 %v36
    %v150 = vunpack.c.l.b16 %v37
    %v151 = vunpack.c.l.b16 %v38
    %v152 = vunpack.c.l.b16 %v39
    %v153 = vunpack.c.l.b16 %v40
    %v154 = vunpack.c.l.b16 %v41
    %v155 = vunpack.c.l.b16 %v42
    %v156 = vunpack.c.l.b16 %v43
    %v157 = vunpack.c.l.b16 %v44
    %v158 = vunpack.c.l.b16 %v45
    %v159 = vunpack.c.l.b16 %v46
    %v160 = vunpack.c.l.b16 %v47
    %v161 = vunpack.c.l.b16 %v48
    %v162 = vunpack.c.l.b16 %v49
    %v163 = vunpack.c.l.b16 %v50
    %v164 = vunpack.c.l.b16 %v51
    %v165 = vunpack.c.l.b16 %v52
    %v166 = vunpack.c.l.b16 %v53
    %v167 = vunpack.c.l.b16 %v54
    %v168 = vunpack.c.l.b16 %v55
    %v169 = vunpack.c.l.b16 %v56
    %v170 = vunpack.c.l.b16 %v57
    %v171 = vunpack.c.l.b16 %v58
    %v172 = vunpack.c.l.b16 %v59
    %v173 = vunpack.c.l.b16 %v60
    %v174 = vunpack.c.l.b16 %v61
    %v175 = vunpack.c.l.b16 %v62
    %v176 = vunpack.c.l.b16 %v63
    %v177 = vunpack.c.l.b16 %v64
    %v178 = vunpack.c.l.b16 %v65
    %v179 = vunpack.c.l.b16 %v66
    %v180 = vunpack.c.l.b16 %v67
    %v181 = vunpack.c.l.b16 %v68
    %v182 = vunpack.c.l.b16 %v69
    %v183 = vunpack.c.l.b16 %v70
    %v184 = vunpack.c.l.b16 %v71
    %v185 = vunpack.c.l.b16 %v72
    %v186 = vunpack.c.l.b16 %v73
    %v187 = vunpack.c.l.b16 %v74
    %v188 = vunpack.c.l.b16 %v75
    %v189 = vunpack.c.l.b16 %v76
    %v190 = vunpack.c.l.b16 %v77
    %v191 = vunpack.c.l.b16 %v78
    %v192 = vpack.c.b16 %v143, %v142
    %v193 = vpack.c.b16 %v145, %v144
    %v194 = vpack.c.b16 %v147, %v146
    %v195 = vpack.c.b16 %v149, %v148
    %v196 = vpack.c.b16 %v151, %v150
    %v197 = vpack.c.b16 %v153, %v152
    %v198 = vpack.c.b16 %v155, %v154
    %v199 = vpack.c.b16 %v157, %v156
    %v200 = vpack.c.b16 %v159, %v158
    %v201 = vpack.c.b16 %v161, %v160
    %v202 = vpack.c.b16 %v163, %v162
    %v203 = vpack.c.b16 %v165, %v164
    %v204 = vpack.c.b16 %v167, %v166
    %v205 = vpack.c.b16 %v169, %v168
    %v206 = vpack.c.b16 %v171, %v170
    %v207 = vpack.c.b16 %v173, %v172
    %v208 = vpack.c.b16 %v175, %v174
    %v209 = vpack.c.b16 %v177, %v176
    %v210 = vpack.c.b16 %v179, %v178
    %v211 = vpack.c.b16 %v181, %v180
    %v212 = vpack.c.b16 %v183, %v182
    %v213 = vpack.c.b16 %v185, %v184
    %v214 = vpack.c.b16 %v187, %v186
    %v215 = vpack.c.b16 %v189, %v188
    %v216 = vpack.c.b16 %v191, %v190
    %vm242 = vcmask 130048
    %v243 = vsel %vm242, %v88, 0
    %245 = vmatpush.bf16.msra.mxu0 %v199
    %246 = vmatpush.bf16.msra.mxu0 %v198
    %247 = vmatpush.bf16.msra.mxu0 %v197
    %248 = vmatpush.bf16.msra.mxu0 %v196
    %249 = vmatpush.bf16.msra.mxu0 %v195
    %250 = vmatpush.bf16.msra.mxu0 %v194
    %251 = vmatpush.bf16.msra.mxu0 %v193
    %252 = vmatpush.bf16.msra.mxu0 %v192
    %253 = vmatmul.bf16.gmra.mxu0 %v85
    %v254 = vpop.f32.mrf.mxu0
    %v255 = vadd.f32 %v81, %v254
    %v256 = vpop.f32.mrf.mxu0
    %257 = vdwg.mxu0
    %258 = vmatpush.bf16.msra.mxu0 %v207
    %259 = vmatpush.bf16.msra.mxu0 %v206
    %260 = vmatpush.bf16.msra.mxu0 %v205
    %261 = vmatpush.bf16.msra.mxu0 %v204
    %262 = vmatpush.bf16.msra.mxu0 %v203
    %263 = vmatpush.bf16.msra.mxu0 %v202
    %264 = vmatpush.bf16.msra.mxu0 %v201
    %265 = vmatpush.bf16.msra.mxu0 %v200
    %266 = vmatmul.bf16.gmra.mxu0 %v86
    %v267 = vpop.f32.mrf.mxu0
    %v268 = vadd.f32 %v255, %v267
    %v269 = vpop.f32.mrf.mxu0
    %270 = vdwg.mxu0
    %271 = vmatpush.bf16.msra.mxu0 %v215
    %272 = vmatpush.bf16.msra.mxu0 %v214
    %273 = vmatpush.bf16.msra.mxu0 %v213
    %274 = vmatpush.bf16.msra.mxu0 %v212
    %275 = vmatpush.bf16.msra.mxu0 %v211
    %276 = vmatpush.bf16.msra.mxu0 %v210
    %277 = vmatpush.bf16.msra.mxu0 %v209
    %278 = vmatpush.bf16.msra.mxu0 %v208
    %279 = vmatmul.bf16.gmra.mxu0 %v87
    %v280 = vpop.f32.mrf.mxu0
    %v281 = vadd.f32 %v268, %v280
    %v282 = vpop.f32.mrf.mxu0
    %283 = vdwg.mxu0
    %284 = vmatpush.bf16.msra.mxu0 0
    %285 = vmatpush.bf16.msra.mxu0 0
    %286 = vmatpush.bf16.msra.mxu0 0
    %287 = vmatpush.bf16.msra.mxu0 0
    %288 = vmatpush.bf16.msra.mxu0 0
    %289 = vmatpush.bf16.msra.mxu0 0
    %290 = vmatpush.bf16.msra.mxu0 0
    %291 = vmatpush.bf16.msra.mxu0 %v216
    %292 = vmatmul.bf16.gmra.mxu0 %v243
    %v293 = vpop.f32.mrf.mxu0
    %v294 = vadd.f32 %v281, %v293
    %v295 = vpop.f32.mrf.mxu0
    %296 = vdwg.mxu0
    %v297 = vmax.f32 %v294, 0.0
    %v298 = vpack.c.bf16 %v297, %v297
    %v299 = vld [vmem:[%s3] sm:$0xf]
    %v300 = vld [vmem:[%s3 + $0x4] sm:$0xf]
    %v301 = vld [vmem:[%s3 + $0x8] sm:$0xf]
    %v302 = vld [vmem:[%s3 + $0xc] sm:$0xf]
    %v303 = vld [vmem:[%s3 + $0x10] sm:$0xf]
    %v304 = vld [vmem:[%s3 + $0x14] sm:$0xf]
    %v305 = vld [vmem:[%s3 + $0x18] sm:$0xf]
    %v306 = vld [vmem:[%s3 + $0x1c] sm:$0xf]
    %v307 = vld [vmem:[%s3 + $0x20] sm:$0xf]
    %v308 = vld [vmem:[%s3 + $0x24] sm:$0xf]
    %v309 = vld [vmem:[%s3 + $0x28] sm:$0xf]
    %v310 = vld [vmem:[%s3 + $0x2c] sm:$0xf]
    %v311 = vld [vmem:[%s3 + $0x30] sm:$0xf]
    %v312 = vld [vmem:[%s3 + $0x34] sm:$0xf]
    %v313 = vld [vmem:[%s3 + $0x38] sm:$0xf]
    %v314 = vld [vmem:[%s4] sm:$0x1]
    %v316 = vperm.slane %v314, 0
    %v333 = vunpack.c.l.b16 %v299
    %v334 = vunpack.c.l.b16 %v300
    %v335 = vunpack.c.l.b16 %v301
    %v336 = vunpack.c.l.b16 %v302
    %v337 = vunpack.c.l.b16 %v303
    %v338 = vunpack.c.l.b16 %v304
    %v339 = vunpack.c.l.b16 %v305
    %v340 = vunpack.c.l.b16 %v306
    %v341 = vunpack.c.l.b16 %v307
    %v342 = vunpack.c.l.b16 %v308
    %v343 = vunpack.c.l.b16 %v309
    %v344 = vunpack.c.l.b16 %v310
    %v345 = vunpack.c.l.b16 %v311
    %v346 = vunpack.c.l.b16 %v312
    %v347 = vunpack.c.l.b16 %v313
    %v348 = vpack.c.b16 %v334, %v333
    %v349 = vpack.c.b16 %v336, %v335
    %v350 = vpack.c.b16 %v338, %v337
    %v351 = vpack.c.b16 %v340, %v339
    %v352 = vpack.c.b16 %v342, %v341
    %v353 = vpack.c.b16 %v344, %v343
    %v354 = vpack.c.b16 %v346, %v345
    %v355 = vpack.c.b16 %v347, %v347
    %vm363 = vcmask 982016
    %v365 = vsel %vm363, %v298, 0
    %vm367 = vcmask 1043456
    %v369 = vsel %vm367, %v355, 0
    %371 = vmatpush.bf16.msra.mxu0 %v369
    %372 = vmatpush.bf16.msra.mxu0 %v354
    %373 = vmatpush.bf16.msra.mxu0 %v353
    %374 = vmatpush.bf16.msra.mxu0 %v352
    %375 = vmatpush.bf16.msra.mxu0 %v351
    %376 = vmatpush.bf16.msra.mxu0 %v350
    %377 = vmatpush.bf16.msra.mxu0 %v349
    %378 = vmatpush.bf16.msra.mxu0 %v348
    %379 = vmatmul.bf16.gmra.mxu0 %v365
    %v380 = vpop.f32.mrf.mxu0
    %v381 = vadd.f32 %v316, %v380
    %v382 = vpop.f32.mrf.mxu0
    %383 = vdwg.mxu0
    %v384 = vmax.f32 %v381, 0.0
    %v385 = vpack.c.bf16 %v384, %v384
    %v386 = vld [vmem:[%s5] sm:$0xf]
    %v387 = vld [vmem:[%s5 + $0x4] sm:$0xf]
    %v388 = vld [vmem:[%s5 + $0x8] sm:$0xf]
    %v389 = vld [vmem:[%s5 + $0xc] sm:$0xf]
    %v390 = vld [vmem:[%s5 + $0x10] sm:$0xf]
    %v391 = vld [vmem:[%s5 + $0x14] sm:$0xf]
    %v392 = vld [vmem:[%s5 + $0x18] sm:$0xf]
    %v393 = vld [vmem:[%s5 + $0x1c] sm:$0xf]
    %v394 = vld [vmem:[%s5 + $0x20] sm:$0xf]
    %v395 = vld [vmem:[%s5 + $0x24] sm:$0xf]
    %v396 = vld [vmem:[%s5 + $0x28] sm:$0x3]
    %v397 = vld [vmem:[%s6] sm:$0x1]
    %v399 = vperm.slane %v397, 0
    %v412 = vunpack.c.l.b16 %v386
    %v413 = vunpack.c.l.b16 %v387
    %v414 = vunpack.c.l.b16 %v388
    %v415 = vunpack.c.l.b16 %v389
    %v416 = vunpack.c.l.b16 %v390
    %v417 = vunpack.c.l.b16 %v391
    %v418 = vunpack.c.l.b16 %v392
    %v419 = vunpack.c.l.b16 %v393
    %v420 = vunpack.c.l.b16 %v394
    %v421 = vunpack.c.l.b16 %v395
    %v422 = vunpack.c.l.b16 %v396
    %v423 = vpack.c.b16 %v413, %v412
    %v424 = vpack.c.b16 %v415, %v414
    %v425 = vpack.c.b16 %v417, %v416
    %v426 = vpack.c.b16 %v419, %v418
    %v427 = vpack.c.b16 %v421, %v420
    %v428 = vpack.c.b16 %v422, %v422
    %vm434 = vcmask 687104
    %v436 = vsel %vm434, %v385, 0
    %vm438 = vcmask 1041408
    %v440 = vsel %vm438, %v428, 0
    %442 = vmatpush.bf16.msra.mxu0 0
    %443 = vmatpush.bf16.msra.mxu0 0
    %444 = vmatpush.bf16.msra.mxu0 %v440
    %445 = vmatpush.bf16.msra.mxu0 %v427
    %446 = vmatpush.bf16.msra.mxu0 %v426
    %447 = vmatpush.bf16.msra.mxu0 %v425
    %448 = vmatpush.bf16.msra.mxu0 %v424
    %449 = vmatpush.bf16.msra.mxu0 %v423
    %450 = vmatmul.bf16.gmra.mxu0 %v436
    %v451 = vpop.f32.mrf.mxu0
    %v452 = vadd.f32 %v399, %v451
    %v453 = vpop.f32.mrf.mxu0
    %454 = vdwg.mxu0
    %vm455 = vcmask 74752
    %456 = vst.msk [vmem:[#allocation2] sm:$0x3] %vm455, %v452
    // Predicated region
    $region30: #{cnn_forward.5} parent=1 // pred_check
      _
    $region31: #{cnn_forward.5} parent=1 // pred_check_branch
      %458 = sbr.rel (0) target = $region33
    $region32: #{cnn_forward.5} parent=1 // pred_region
      %460 = vsyncadd [#allocation3], 0
      %s462 = sshll.u32 [#allocation2], 4
      %s463 = int_to_ptr.vmem [resolvable:$true] %s462
      %s464 = sshll.u32 %s7, 4
      %s465 = int_to_ptr.hbm [resolvable:$true] %s464
      %467 = dma.vmem_to_hbm [thread:$0]  %s463, 32, %s465, [#allocation3]
    $region33: #{cnn_forward.5} parent=1 // pred_fallthru
      _
    // Predicated region
    $region34: #{cnn_forward.5} parent=1 // pred_check
      _
    $region35: #{cnn_forward.5} parent=1 // pred_check_branch
      %469 = sbr.rel (0) target = $region37
    $region36: #{cnn_forward.5} parent=1 // pred_region
      %471 = dma.done [#allocation3], 32
    $region37: #{cnn_forward.5} parent=1 // pred_fallthru
      _
    %472 = vsyncpa [#allocation3], 1

</llo_original>
